<compile_context>
chip_gen: v7x
topology: tpu7x:2x2x1
jax: 0.10.0
libtpu: 0.0.40
codegen_flags: <defaults>
</compile_context>

<pallas_src>
import hashlib

import jax
import jax.numpy as jnp
from jax import lax
from jax.experimental import pallas as pl
from jax.experimental.pallas import tpu as pltpu

# ----------------------- small config (scaled-down SAM) ----------------------
B = 2                  # batch
IMG = 32               # input image spatial size   (SAM: 1024)
PATCH = 4              # patch-embed conv stride    (SAM: 16)
HW_EMB = IMG // PATCH  # 8 -> 8x8 image embedding   (SAM: 64x64)
HW = HW_EMB * HW_EMB   # 64 image tokens
C = 32                 # embedding channels         (SAM: 256)
N_PTS = 2              # prompt points per image
RANK = 4               # LoRA rank
LORA_ALPHA = 16.0
SCALING = LORA_ALPHA / RANK
NUM_MASK_TOKENS = 4
UP_C = C // 8          # channels of upscaled embedding
UPSCALE = 4            # mask decoder output upscale factor
TASK_DIM = 16          # hypernetwork task-embedding dim
HYP_HIDDEN = 64
LORA_LAYERS = ("sa_q", "sa_v", "ca_q", "ca_v")  # LoRA-adapted decoder projections
N_LORA = len(LORA_LAYERS)
KRAW = 3 * PATCH * PATCH          # 48
KPAD = 64                         # patch K padded to a clean tile
T_TOK = 1 + NUM_MASK_TOKENS + N_PTS
ATTN_SCALE = 1.0 / float(C) ** 0.5

_VMEM = pltpu.MemorySpace.VMEM

# -------- packed-parameter index constants (stacked weights / bias rows) -----
(IDX_SA_Q, IDX_SA_K, IDX_SA_V, IDX_SA_O,
 IDX_CA_Q, IDX_CA_K, IDX_CA_V, IDX_CA_O,
 IDX_HYPER_W1, IDX_IOU_W1) = range(10)

(ROW_SA_Q_B, ROW_SA_K_B, ROW_SA_V_B, ROW_SA_O_B,
 ROW_CA_Q_B, ROW_CA_K_B, ROW_CA_V_B, ROW_CA_O_B,
 ROW_MLP_B2, ROW_HYPER_B1, ROW_IOU_B1, ROW_PATCH_B, ROW_NO_MASK,
 ROW_LN1_G, ROW_LN1_B, ROW_LN2_G, ROW_LN2_B, ROW_LN3_G, ROW_LN3_B) = range(19)


# --------------------------------- helpers -----------------------------------
def _mm(a, b):
    """bf16-operand matmul with f32 accumulation (MXU friendly on all gens)."""
    return jnp.dot(a.astype(jnp.bfloat16), b.astype(jnp.bfloat16),
                   preferred_element_type=jnp.float32)


# --------------------------------- kernels -----------------------------------
def _hypernet_kernel(t_ref, w1_ref, b1_ref, w2_ref, b2_ref, o_ref):
    # task embeddings -> flattened per-layer LoRA factors, whole batch at once
    hh = jax.nn.relu(_mm(t_ref[...], w1_ref[...]) + b1_ref[...])
    o_ref[...] = _mm(hh, w2_ref[...]) + b2_ref[...]


def _fused_decoder_kernel(
        # per-sample (blocked over grid axis b)
        patches_ref, tokens_ref, lat_ref, lbt_ref,
        # shared / frozen (broadcast blocks)
        patch_w_ref, image_pe_ref, w_cc_ref, b_c_ref,
        mlp_w1_ref, mlp_b1_ref, mlp_w2_ref,
        up_w_ref, up_b_ref, shuf_rep_ref, shuf_gather_ref,
        hyper_w2_ref, hyper_b2_ref, iou_w2_ref, iou_b2_ref,
        # outputs
        masks_ref, iou_ref):

    def row(i):
        return b_c_ref[i:i + 1, :]                      # (1, C) broadcast row

    def ln(x, gi, bi):
        mu = jnp.mean(x, axis=-1, keepdims=True)
        var = jnp.mean((x - mu) ** 2, axis=-1, keepdims=True)
        return (x - mu) * lax.rsqrt(var + 1e-5) * row(gi) + row(bi)

    def attn(q, k, v):
        # scale already folded into q; softmax with approx reciprocal (EUP)
        s = lax.dot_general(q.astype(jnp.bfloat16), k.astype(jnp.bfloat16),
                            (((1,), (1,)), ((), ())),
                            preferred_element_type=jnp.float32)
        m = jnp.max(s, axis=-1, keepdims=True)
        e = jnp.exp(s - m)
        p = e * pl.reciprocal(jnp.sum(e, axis=-1, keepdims=True), approx=True)
        return _mm(p, v)

    # ---- frozen image encoder: stride-4 patch-embed conv as a matmul ----
    # TODO(synk): the real module runs the full frozen SAM ViT-H image encoder;
    # only its patch-embedding projection is modeled here.
    img = _mm(patches_ref[0], patch_w_ref[...]) + row(ROW_PATCH_B)   # (HW, C)
    src = img + row(ROW_NO_MASK)            # + dense (no-mask) prompt embedding
    pos = image_pe_ref[...]                 # (HW, C) dense positional encoding
    tokens = tokens_ref[0]                  # (T, C)  [iou | mask tokens | points]

    # ---- fold per-sample LoRA deltas into the base weights ----
    def folded(w_idx, l_idx):
        dw = _mm(lat_ref[0, l_idx], lbt_ref[0, l_idx])               # (C, C)
        return w_cc_ref[w_idx] + SCALING * dw

    sa_q_w = folded(IDX_SA_Q, 0) * ATTN_SCALE
    sa_v_w = folded(IDX_SA_V, 1)
    ca_q_w = folded(IDX_CA_Q, 2) * ATTN_SCALE
    ca_v_w = folded(IDX_CA_V, 3)

    # ---- token self-attention (LoRA on q, v) ----
    q = _mm(tokens, sa_q_w) + row(ROW_SA_Q_B) * ATTN_SCALE
    k = _mm(tokens, w_cc_ref[IDX_SA_K]) + row(ROW_SA_K_B)
    v = _mm(tokens, sa_v_w) + row(ROW_SA_V_B)
    a = _mm(attn(q, k, v), w_cc_ref[IDX_SA_O]) + row(ROW_SA_O_B)
    tokens = ln(tokens + a, ROW_LN1_G, ROW_LN1_B)

    # ---- cross-attention: tokens attend to image (LoRA on q, v) ----
    q = _mm(tokens, ca_q_w) + row(ROW_CA_Q_B) * ATTN_SCALE
    k = _mm(src + pos, w_cc_ref[IDX_CA_K]) + row(ROW_CA_K_B)
    v = _mm(src, ca_v_w) + row(ROW_CA_V_B)
    a = _mm(attn(q, k, v), w_cc_ref[IDX_CA_O]) + row(ROW_CA_O_B)
    tokens = ln(tokens + a, ROW_LN2_G, ROW_LN2_B)

    # ---- token MLP ----
    hdn = jax.nn.relu(_mm(tokens, mlp_w1_ref[...]) + mlp_b1_ref[...])
    tokens = ln(tokens + _mm(hdn, mlp_w2_ref[...]) + row(ROW_MLP_B2),
                ROW_LN3_G, ROW_LN3_B)

    iou_token_out = tokens[0:1]             # (1, C)
    mask_token_0 = tokens[1:2]              # (1, C); multimask_output=False

    # ---- hyper-MLP on the selected mask token only ----
    hyp = jax.nn.relu(_mm(mask_token_0, w_cc_ref[IDX_HYPER_W1]) + row(ROW_HYPER_B1))
    hyper_sel = _mm(hyp, hyper_w2_ref[...]) + hyper_b2_ref[...]      # (1, UP_C)

    # ---- upscaling linear + dynamic mask filter, fused before pixel shuffle ----
    # TODO(synk): SAM uses two transposed convs here; modeled as a pixel-shuffle
    # linear.  masks_pre[p, s] = sum_c hyper_sel[c] * up[p, c*16 + s]
    up_all = jax.nn.gelu(_mm(src, up_w_ref[...]) + up_b_ref[...])    # (HW, UP_C*16)
    hyper_rep = _mm(hyper_sel, shuf_rep_ref[...])                    # (1, UP_C*16)
    masks_ref[0] = _mm(up_all * hyper_rep, shuf_gather_ref[...])     # (HW, 16)

    # ---- IoU prediction head ----
    ih = jax.nn.relu(_mm(iou_token_out, w_cc_ref[IDX_IOU_W1]) + row(ROW_IOU_B1))
    iou_ref[0] = _mm(ih, iou_w2_ref[...]) + iou_b2_ref[...]          # (1, NUM_MASK_TOKENS)


# --------------------------------- wrappers ----------------------------------
def pallas_hypernet(task_emb, w1, b1, w2, b2):
    bsz = task_emb.shape[0]
    return pl.pallas_call(
        _hypernet_kernel,
        out_shape=jax.ShapeDtypeStruct((bsz, w2.shape[1]), jnp.float32),
        in_specs=[pl.BlockSpec(memory_space=_VMEM)] * 5,
        out_specs=pl.BlockSpec(memory_space=_VMEM),
    )(task_emb, w1, b1, w2, b2)


def _per_sample_spec(shape):
    zeros = (0,) * (len(shape) - 1)
    return pl.BlockSpec((1,) + tuple(shape[1:]), lambda b: (b,) + zeros)


def _shared_spec(arr):
    idx = (0,) * arr.ndim
    return pl.BlockSpec(tuple(arr.shape), lambda b: idx)


def pallas_fused_decoder(patches, tokens, lat, lbt, pk):
    bsz = patches.shape[0]
    shared = [pk["patch_w"], pk["image_pe"], pk["w_cc"], pk["b_c"],
              pk["mlp_w1"], pk["mlp_b1"], pk["mlp_w2"],
              pk["up_w"], pk["up_b"], pk["shuf_rep"], pk["shuf_gather"],
              pk["hyper_w2"], pk["hyper_b2"], pk["iou_w2"], pk["iou_b2"]]
    in_specs = ([_per_sample_spec(patches.shape), _per_sample_spec(tokens.shape),
                 _per_sample_spec(lat.shape), _per_sample_spec(lbt.shape)]
                + [_shared_spec(a) for a in shared])
    out_shape = (jax.ShapeDtypeStruct((bsz, HW, UPSCALE * UPSCALE), jnp.float32),
                 jax.ShapeDtypeStruct((bsz, 1, NUM_MASK_TOKENS), jnp.float32))
    out_specs = (pl.BlockSpec((1, HW, UPSCALE * UPSCALE), lambda b: (b, 0, 0)),
                 pl.BlockSpec((1, 1, NUM_MASK_TOKENS), lambda b: (b, 0, 0)))
    return pl.pallas_call(
        _fused_decoder_kernel,
        grid=(bsz,),
        out_shape=out_shape,
        in_specs=in_specs,
        out_specs=out_specs,
        compiler_params=pltpu.CompilerParams(dimension_semantics=("parallel",)),
    )(patches, tokens, lat, lbt, *shared)


# ------------------------------ parameter init --------------------------------
def init_params(key):
    ks = iter(jax.random.split(key, 64))

    def w(shape, scale=0.02):
        return (scale * jax.random.normal(next(ks), shape)).astype(jnp.float32)

    def zeros(shape):
        return jnp.zeros(shape, jnp.float32)

    p = {}
    # frozen image encoder (patch-embed conv)
    p["patch_w"] = w((KRAW, C))
    p["patch_b"] = zeros((1, C))
    # prompt encoder (frozen)
    p["pe_gauss"] = jax.random.normal(next(ks), (2, C // 2)).astype(jnp.float32)
    p["point_label_embed"] = w((2, C))
    p["no_mask_embed"] = w((1, C))
    # mask decoder tokens
    p["iou_token"] = w((1, C))
    p["mask_tokens"] = w((NUM_MASK_TOKENS, C))
    # decoder attention projections (LoRA added on *_q and *_v)
    for pref in ("sa", "ca"):
        for proj in ("q", "k", "v", "o"):
            p[f"{pref}_{proj}_w"] = w((C, C))
            p[f"{pref}_{proj}_b"] = zeros((1, C))
    for ln in ("ln1", "ln2", "ln3"):
        p[f"{ln}_g"] = jnp.ones((C,), jnp.float32)
        p[f"{ln}_b"] = zeros((C,))
    # token MLP
    p["mlp_w1"] = w((C, 2 * C)); p["mlp_b1"] = zeros((1, 2 * C))
    p["mlp_w2"] = w((2 * C, C)); p["mlp_b2"] = zeros((1, C))
    # output upscaling (pixel-shuffle linear)
    p["up_w"] = w((C, UP_C * UPSCALE * UPSCALE))
    p["up_b"] = zeros((1, UP_C * UPSCALE * UPSCALE))
    # hyper-MLP: mask tokens -> dynamic mask filters
    p["hyper_w1"] = w((C, C)); p["hyper_b1"] = zeros((1, C))
    p["hyper_w2"] = w((C, UP_C)); p["hyper_b2"] = zeros((1, UP_C))
    # IoU prediction head
    p["iou_w1"] = w((C, C)); p["iou_b1"] = zeros((1, C))
    p["iou_w2"] = w((C, NUM_MASK_TOKENS)); p["iou_b2"] = zeros((1, NUM_MASK_TOKENS))
    # hypernetwork: task embedding -> flattened LoRA factors per adapted layer
    lora_flat = N_LORA * 2 * RANK * C
    p["hyp_w1"] = w((TASK_DIM, HYP_HIDDEN)); p["hyp_b1"] = zeros((1, HYP_HIDDEN))
    p["hyp_w2"] = w((HYP_HIDDEN, lora_flat)); p["hyp_b2"] = zeros((1, lora_flat))
    return p


# ----------------------------- glue components --------------------------------
def encode_tasks(task_descriptions):
    # TODO(synk): TaskAwareHyperNet uses a pretrained text encoder for the task
    # description; here each string maps to a deterministic pseudo-random embedding.
    embs = []
    for t in task_descriptions:
        seed = int(hashlib.sha256(t.encode("utf-8")).hexdigest(), 16) % (2 ** 31)
        embs.append(jax.random.normal(jax.random.PRNGKey(seed), (TASK_DIM,)))
    return jnp.stack(embs).astype(jnp.float32)


def _fourier_pe(coords01, gauss):
    c = 2.0 * coords01 - 1.0
    proj = (2.0 * jnp.pi) * (c @ gauss)
    return jnp.concatenate([jnp.sin(proj), jnp.cos(proj)], axis=-1)


def dense_positional_encoding_flat(params):
    ys = (jnp.arange(HW_EMB, dtype=jnp.float32) + 0.5) / HW_EMB
    xs = (jnp.arange(HW_EMB, dtype=jnp.float32) + 0.5) / HW_EMB
    gy, gx = jnp.meshgrid(ys, xs, indexing="ij")
    coords = jnp.stack([gx, gy], axis=-1)              # (H, W, 2)
    pe = _fourier_pe(coords, params["pe_gauss"])       # (H, W, C)
    return pe.reshape(HW, C)                           # row p = y*W + x


def encode_points(coords, labels, params):
    # coords: (B, N, 2) pixel coords; labels: (B, N) in {0, 1}
    pe = _fourier_pe(coords / float(IMG), params["pe_gauss"])        # (B, N, C)
    return pe + params["point_label_embed"][labels]


def pack_params(p):
    """Pack frozen weights into a few stacked, kernel-friendly arrays."""
    pk = {}
    pk["patch_w"] = jnp.pad(p["patch_w"], ((0, KPAD - KRAW), (0, 0)))
    w_order = ["sa_q_w", "sa_k_w", "sa_v_w", "sa_o_w",
               "ca_q_w", "ca_k_w", "ca_v_w", "ca_o_w",
               "hyper_w1", "iou_w1"]
    pk["w_cc"] = jnp.stack([p[n] for n in w_order], axis=0)          # (10, C, C)
    rows = [p["sa_q_b"], p["sa_k_b"], p["sa_v_b"], p["sa_o_b"],
            p["ca_q_b"], p["ca_k_b"], p["ca_v_b"], p["ca_o_b"],
            p["mlp_b2"], p["hyper_b1"], p["iou_b1"], p["patch_b"], p["no_mask_embed"],
            p["ln1_g"].reshape(1, C), p["ln1_b"].reshape(1, C),
            p["ln2_g"].reshape(1, C), p["ln2_b"].reshape(1, C),
            p["ln3_g"].reshape(1, C), p["ln3_b"].reshape(1, C)]
    pk["b_c"] = jnp.concatenate(rows, axis=0)                        # (19, C)
    pk["image_pe"] = dense_positional_encoding_flat(p)               # (HW, C)
    pk["mlp_w1"] = p["mlp_w1"]; pk["mlp_b1"] = p["mlp_b1"]; pk["mlp_w2"] = p["mlp_w2"]
    pk["up_w"] = p["up_w"]; pk["up_b"] = p["up_b"]
    # constant 0/1 matrices implementing the "repeat hyper filter / gather sub-pixel"
    # contraction of the pixel-shuffle inside the kernel (pure MXU work).
    pk["shuf_rep"] = jnp.repeat(jnp.eye(UP_C, dtype=jnp.float32),
                                UPSCALE * UPSCALE, axis=1)           # (UP_C, UP_C*16)
    pk["shuf_gather"] = jnp.tile(jnp.eye(UPSCALE * UPSCALE, dtype=jnp.float32),
                                 (UP_C, 1))                          # (UP_C*16, 16)
    pk["hyper_w2"] = p["hyper_w2"]; pk["hyper_b2"] = p["hyper_b2"]
    pk["iou_w2"] = p["iou_w2"]; pk["iou_b2"] = p["iou_b2"]
    return pk


# ------------------------------ TaskAwareSAM.forward ---------------------------
def task_aware_sam_forward(params, images, task_embeddings, point_coords, point_labels):
    """images: (B, 3, IMG, IMG) NCHW float32; returns masks (B,1,Hm,Wm), iou (B,1)."""
    bsz = images.shape[0]
    pk = pack_params(params)

    # image patches for the frozen patch-embed (K padded to a clean tile)
    patches = images.reshape(bsz, 3, HW_EMB, PATCH, HW_EMB, PATCH)
    patches = jnp.transpose(patches, (0, 2, 4, 1, 3, 5)).reshape(bsz, HW, KRAW)
    patches = jnp.pad(patches, ((0, 0), (0, 0), (0, KPAD - KRAW)))

    # hypernetwork: task embeddings -> per-sample LoRA factors A^T (C,r), B^T (r,C)
    lora_flat = pallas_hypernet(task_embeddings, params["hyp_w1"], params["hyp_b1"],
                                params["hyp_w2"], params["hyp_b2"])   # (B, 4*2*r*C)
    flat = lora_flat.reshape(bsz, N_LORA, 2 * RANK * C)
    lat = flat[:, :, :C * RANK].reshape(bsz, N_LORA, C, RANK)         # A^T
    lbt = flat[:, :, C * RANK:].reshape(bsz, N_LORA, RANK, C)         # B^T

    # frozen prompt encoder (points) + decoder prompt tokens, assembled in XLA
    sparse = encode_points(point_coords, point_labels, params)        # (B, N_PTS, C)
    fixed = jnp.concatenate([params["iou_token"], params["mask_tokens"]], axis=0)
    tokens = jnp.concatenate(
        [jnp.broadcast_to(fixed[None], (bsz, fixed.shape[0], C)), sparse], axis=1)

    # fused per-sample decoder (batched over a parallel grid axis)
    masks_pre, iou_all = pallas_fused_decoder(patches, tokens, lat, lbt, pk)

    # pixel shuffle of the tiny kernel output (pure permutation)
    masks = masks_pre.reshape(bsz, HW_EMB, HW_EMB, UPSCALE, UPSCALE)
    masks = jnp.transpose(masks, (0, 1, 3, 2, 4)).reshape(
        bsz, 1, HW_EMB * UPSCALE, HW_EMB * UPSCALE)
    iou = iou_all[:, 0, 0:1]                                          # multimask=False
    return masks, iou


# ------------------------------------ main -------------------------------------
if __name__ == "__main__":
    params = init_params(jax.random.PRNGKey(42))

    key = jax.random.PRNGKey(0)
    k_img, k_pts = jax.random.split(key)
    images = jax.random.uniform(k_img, (B, 3, IMG, IMG), jnp.float32)
    point_coords = jax.random.uniform(k_pts, (B, N_PTS, 2), jnp.float32,
                                      0.0, float(IMG))
    point_labels = jnp.ones((B, N_PTS), jnp.int32)
    task_descriptions = ["segment the left kidney", "segment the tumor region"]
    task_emb = encode_tasks(task_descriptions)

    fwd = jax.jit(task_aware_sam_forward)
    masks, ious = fwd(params, images, task_emb, point_coords, point_labels)
    jax.block_until_ready((masks, ious))

    assert masks.shape == (B, 1, HW_EMB * UPSCALE, HW_EMB * UPSCALE), masks.shape
    assert ious.shape == (B, 1), ious.shape
    assert masks.dtype == jnp.float32 and ious.dtype == jnp.float32
    print("KERNEL_OK")
</pallas_src>

<mosaic_0001>
module attributes {stable_mosaic.version = 11 : i64} {
  func.func @_hypernet_kernel(%arg0: memref<2x16xf32, #tpu.memory_space<vmem>>, %arg1: memref<16x64xf32, #tpu.memory_space<vmem>>, %arg2: memref<1x64xf32, #tpu.memory_space<vmem>>, %arg3: memref<64x1024xf32, #tpu.memory_space<vmem>>, %arg4: memref<1x1024xf32, #tpu.memory_space<vmem>>, %arg5: memref<2x1024xf32, #tpu.memory_space<vmem>>) attributes {dimension_semantics = [], scalar_prefetch = 0 : i64, scratch_operands = 0 : i64, tpu.core_type = #tpu.core_type<tc>} {
    %c0 = arith.constant 0 : index
    %c0_0 = arith.constant 0 : index
    %0 = vector.load %arg0[%c0, %c0_0] : memref<2x16xf32, #tpu.memory_space<vmem>>, vector<2x16xf32>
    %c0_1 = arith.constant 0 : index
    %c0_2 = arith.constant 0 : index
    %1 = vector.load %arg1[%c0_1, %c0_2] : memref<16x64xf32, #tpu.memory_space<vmem>>, vector<16x64xf32>
    %2 = arith.truncf %0 : vector<2x16xf32> to vector<2x16xbf16>
    %3 = arith.truncf %1 : vector<16x64xf32> to vector<16x64xbf16>
    %cst = arith.constant dense<0.000000e+00> : vector<2x64xf32>
    %4 = tpu.matmul %2, %3, %cst {dimension_numbers = #tpu.dot_dimension_numbers<[1], [0], [0], [1], [0, 0, 1, 1], [], []>} : vector<2x16xbf16>, vector<16x64xbf16>, vector<2x64xf32> -> vector<2x64xf32>
    %c0_3 = arith.constant 0 : index
    %c0_4 = arith.constant 0 : index
    %5 = vector.load %arg2[%c0_3, %c0_4] : memref<1x64xf32, #tpu.memory_space<vmem>>, vector<1x64xf32>
    %6 = vector.broadcast %5 : vector<1x64xf32> to vector<2x64xf32>
    %7 = arith.addf %4, %6 : vector<2x64xf32>
    %cst_5 = arith.constant 0.000000e+00 : f32
    %8 = vector.broadcast %cst_5 : f32 to vector<2x64xf32>
    %9 = arith.maximumf %7, %8 : vector<2x64xf32>
    %c0_6 = arith.constant 0 : index
    %c0_7 = arith.constant 0 : index
    %10 = vector.load %arg3[%c0_6, %c0_7] : memref<64x1024xf32, #tpu.memory_space<vmem>>, vector<64x1024xf32>
    %11 = arith.truncf %9 : vector<2x64xf32> to vector<2x64xbf16>
    %12 = arith.truncf %10 : vector<64x1024xf32> to vector<64x1024xbf16>
    %cst_8 = arith.constant dense<0.000000e+00> : vector<2x1024xf32>
    %13 = tpu.matmul %11, %12, %cst_8 {dimension_numbers = #tpu.dot_dimension_numbers<[1], [0], [0], [1], [0, 0, 1, 1], [], []>} : vector<2x64xbf16>, vector<64x1024xbf16>, vector<2x1024xf32> -> vector<2x1024xf32>
    %c0_9 = arith.constant 0 : index
    %c0_10 = arith.constant 0 : index
    %14 = vector.load %arg4[%c0_9, %c0_10] : memref<1x1024xf32, #tpu.memory_space<vmem>>, vector<1x1024xf32>
    %15 = vector.broadcast %14 : vector<1x1024xf32> to vector<2x1024xf32>
    %16 = arith.addf %13, %15 : vector<2x1024xf32>
    %c0_11 = arith.constant 0 : index
    %c0_12 = arith.constant 0 : index
    %17 = vector.load %arg5[%c0_11, %c0_12] : memref<2x1024xf32, #tpu.memory_space<vmem>>, vector<2x1024xf32>
    tpu.vector_store %arg5[%c0_11, %c0_12], %16 {strides = array<i32>} : memref<2x1024xf32, #tpu.memory_space<vmem>>, vector<2x1024xf32>,
    return
  }
}

module attributes {stable_mosaic.version = 11 : i64} {
  func.func @_fused_decoder_kernel(%arg0: i32, %arg1: memref<1x64x64xf32, #tpu.memory_space<vmem>>, %arg2: memref<1x7x32xf32, #tpu.memory_space<vmem>>, %arg3: memref<1x4x32x4xf32, #tpu.memory_space<vmem>>, %arg4: memref<1x4x4x32xf32, #tpu.memory_space<vmem>>, %arg5: memref<64x32xf32, #tpu.memory_space<vmem>>, %arg6: memref<64x32xf32, #tpu.memory_space<vmem>>, %arg7: memref<10x32x32xf32, #tpu.memory_space<vmem>>, %arg8: memref<19x32xf32, #tpu.memory_space<vmem>>, %arg9: memref<32x64xf32, #tpu.memory_space<vmem>>, %arg10: memref<1x64xf32, #tpu.memory_space<vmem>>, %arg11: memref<64x32xf32, #tpu.memory_space<vmem>>, %arg12: memref<32x64xf32, #tpu.memory_space<vmem>>, %arg13: memref<1x64xf32, #tpu.memory_space<vmem>>, %arg14: memref<4x64xf32, #tpu.memory_space<vmem>>, %arg15: memref<64x16xf32, #tpu.memory_space<vmem>>, %arg16: memref<32x4xf32, #tpu.memory_space<vmem>>, %arg17: memref<1x4xf32, #tpu.memory_space<vmem>>, %arg18: memref<32x4xf32, #tpu.memory_space<vmem>>, %arg19: memref<1x4xf32, #tpu.memory_space<vmem>>, %arg20: memref<1x64x16xf32, #tpu.memory_space<vmem>>, %arg21: memref<1x1x4xf32, #tpu.memory_space<vmem>>) attributes {dimension_semantics = [#tpu.dimension_semantics<parallel>], iteration_bounds = array<i64: 2>, scalar_prefetch = 0 : i64, scratch_operands = 0 : i64, tpu.core_type = #tpu.core_type<tc>, window_params = [{transform_indices = @transform_0, window_bounds = array<i64: 1, 64, 64>}, {transform_indices = @transform_1, window_bounds = array<i64: 1, 7, 32>}, {transform_indices = @transform_2, window_bounds = array<i64: 1, 4, 32, 4>}, {transform_indices = @transform_3, window_bounds = array<i64: 1, 4, 4, 32>}, {pipeline_mode = #tpu.pipeline_mode<synchronous>, transform_indices = @transform_4, window_bounds = array<i64: 64, 32>}, {pipeline_mode = #tpu.pipeline_mode<synchronous>, transform_indices = @transform_5, window_bounds = array<i64: 64, 32>}, {pipeline_mode = #tpu.pipeline_mode<synchronous>, transform_indices = @transform_6, window_bounds = array<i64: 10, 32, 32>}, {pipeline_mode = #tpu.pipeline_mode<synchronous>, transform_indices = @transform_7, window_bounds = array<i64: 19, 32>}, {pipeline_mode = #tpu.pipeline_mode<synchronous>, transform_indices = @transform_8, window_bounds = array<i64: 32, 64>}, {pipeline_mode = #tpu.pipeline_mode<synchronous>, transform_indices = @transform_9, window_bounds = array<i64: 1, 64>}, {pipeline_mode = #tpu.pipeline_mode<synchronous>, transform_indices = @transform_10, window_bounds = array<i64: 64, 32>}, {pipeline_mode = #tpu.pipeline_mode<synchronous>, transform_indices = @transform_11, window_bounds = array<i64: 32, 64>}, {pipeline_mode = #tpu.pipeline_mode<synchronous>, transform_indices = @transform_12, window_bounds = array<i64: 1, 64>}, {pipeline_mode = #tpu.pipeline_mode<synchronous>, transform_indices = @transform_13, window_bounds = array<i64: 4, 64>}, {pipeline_mode = #tpu.pipeline_mode<synchronous>, transform_indices = @transform_14, window_bounds = array<i64: 64, 16>}, {pipeline_mode = #tpu.pipeline_mode<synchronous>, transform_indices = @transform_15, window_bounds = array<i64: 32, 4>}, {pipeline_mode = #tpu.pipeline_mode<synchronous>, transform_indices = @transform_16, window_bounds = array<i64: 1, 4>}, {pipeline_mode = #tpu.pipeline_mode<synchronous>, transform_indices = @transform_17, window_bounds = array<i64: 32, 4>}, {pipeline_mode = #tpu.pipeline_mode<synchronous>, transform_indices = @transform_18, window_bounds = array<i64: 1, 4>}, {transform_indices = @transform_19, window_bounds = array<i64: 1, 64, 16>}, {transform_indices = @transform_20, window_bounds = array<i64: 1, 1, 4>}]} {
    %c0 = arith.constant 0 : index
    %c0_0 = arith.constant 0 : index
    %c0_1 = arith.constant 0 : index
    %0 = vector.load %arg1[%c0, %c0_0, %c0_1] : memref<1x64x64xf32, #tpu.memory_space<vmem>>, vector<1x64x64xf32>
    %1 = vector.shape_cast %0 : vector<1x64x64xf32> to vector<64x64xf32>
    %c0_2 = arith.constant 0 : index
    %c0_3 = arith.constant 0 : index
    %2 = vector.load %arg5[%c0_2, %c0_3] : memref<64x32xf32, #tpu.memory_space<vmem>>, vector<64x32xf32>
    %3 = arith.truncf %1 : vector<64x64xf32> to vector<64x64xbf16>
    %4 = arith.truncf %2 : vector<64x32xf32> to vector<64x32xbf16>
    %cst = arith.constant dense<0.000000e+00> : vector<64x32xf32>
    %5 = tpu.matmul %3, %4, %cst {dimension_numbers = #tpu.dot_dimension_numbers<[1], [0], [0], [1], [0, 0, 1, 1], [], []>} : vector<64x64xbf16>, vector<64x32xbf16>, vector<64x32xf32> -> vector<64x32xf32>
    %c11 = arith.constant 11 : index
    %c0_4 = arith.constant 0 : index
    %6 = vector.load %arg8[%c11, %c0_4] : memref<19x32xf32, #tpu.memory_space<vmem>>, vector<1x32xf32>
    %7 = vector.broadcast %6 : vector<1x32xf32> to vector<64x32xf32>
    %8 = arith.addf %5, %7 : vector<64x32xf32>
    %c12 = arith.constant 12 : index
    %c0_5 = arith.constant 0 : index
    %9 = vector.load %arg8[%c12, %c0_5] : memref<19x32xf32, #tpu.memory_space<vmem>>, vector<1x32xf32>
    %10 = vector.broadcast %9 : vector<1x32xf32> to vector<64x32xf32>
    %11 = arith.addf %8, %10 : vector<64x32xf32>
    %c0_6 = arith.constant 0 : index
    %c0_7 = arith.constant 0 : index
    %12 = vector.load %arg6[%c0_6, %c0_7] : memref<64x32xf32, #tpu.memory_space<vmem>>, vector<64x32xf32>
    %c0_8 = arith.constant 0 : index
    %c0_9 = arith.constant 0 : index
    %c0_10 = arith.constant 0 : index
    %13 = vector.load %arg2[%c0_8, %c0_9, %c0_10] : memref<1x7x32xf32, #tpu.memory_space<vmem>>, vector<1x7x32xf32>
    %14 = vector.shape_cast %13 : vector<1x7x32xf32> to vector<7x32xf32>
    %c0_11 = arith.constant 0 : index
    %c0_12 = arith.constant 0 : index
    %c0_13 = arith.constant 0 : index
    %c0_14 = arith.constant 0 : index
    %15 = vector.load %arg3[%c0_11, %c0_12, %c0_13, %c0_14] : memref<1x4x32x4xf32, #tpu.memory_space<vmem>>, vector<1x1x32x4xf32>
    %16 = vector.shape_cast %15 : vector<1x1x32x4xf32> to vector<32x4xf32>
    %c0_15 = arith.constant 0 : index
    %c0_16 = arith.constant 0 : index
    %c0_17 = arith.constant 0 : index
    %c0_18 = arith.constant 0 : index
    %17 = vector.load %arg4[%c0_15, %c0_16, %c0_17, %c0_18] : memref<1x4x4x32xf32, #tpu.memory_space<vmem>>, vector<1x1x4x32xf32>
    %18 = vector.shape_cast %17 : vector<1x1x4x32xf32> to vector<4x32xf32>
    %19 = arith.truncf %16 : vector<32x4xf32> to vector<32x4xbf16>
    %20 = arith.truncf %18 : vector<4x32xf32> to vector<4x32xbf16>
    %cst_19 = arith.constant dense<0.000000e+00> : vector<32x32xf32>
    %21 = tpu.matmul %19, %20, %cst_19 {dimension_numbers = #tpu.dot_dimension_numbers<[1], [0], [0], [1], [0, 0, 1, 1], [], []>} : vector<32x4xbf16>, vector<4x32xbf16>, vector<32x32xf32> -> vector<32x32xf32>
    %c0_20 = arith.constant 0 : index
    %c0_21 = arith.constant 0 : index
    %c0_22 = arith.constant 0 : index
    %22 = vector.load %arg7[%c0_20, %c0_21, %c0_22] : memref<10x32x32xf32, #tpu.memory_space<vmem>>, vector<1x32x32xf32>
    %23 = vector.shape_cast %22 : vector<1x32x32xf32> to vector<32x32xf32>
    %cst_23 = arith.constant 4.000000e+00 : f32
    %24 = vector.broadcast %cst_23 : f32 to vector<32x32xf32>
    %25 = arith.mulf %24, %21 : vector<32x32xf32>
    %26 = arith.addf %23, %25 : vector<32x32xf32>
    %cst_24 = arith.constant 0.176776692 : f32
    %27 = vector.broadcast %cst_24 : f32 to vector<32x32xf32>
    %28 = arith.mulf %26, %27 : vector<32x32xf32>
    %c0_25 = arith.constant 0 : index
    %c1 = arith.constant 1 : index
    %c0_26 = arith.constant 0 : index
    %c0_27 = arith.constant 0 : index
    %29 = vector.load %arg3[%c0_25, %c1, %c0_26, %c0_27] : memref<1x4x32x4xf32, #tpu.memory_space<vmem>>, vector<1x1x32x4xf32>
    %30 = vector.shape_cast %29 : vector<1x1x32x4xf32> to vector<32x4xf32>
    %c0_28 = arith.constant 0 : index
    %c1_29 = arith.constant 1 : index
    %c0_30 = arith.constant 0 : index
    %c0_31 = arith.constant 0 : index
    %31 = vector.load %arg4[%c0_28, %c1_29, %c0_30, %c0_31] : memref<1x4x4x32xf32, #tpu.memory_space<vmem>>, vector<1x1x4x32xf32>
    %32 = vector.shape_cast %31 : vector<1x1x4x32xf32> to vector<4x32xf32>
    %33 = arith.truncf %30 : vector<32x4xf32> to vector<32x4xbf16>
    %34 = arith.truncf %32 : vector<4x32xf32> to vector<4x32xbf16>
    %cst_32 = arith.constant dense<0.000000e+00> : vector<32x32xf32>
    %35 = tpu.matmul %33, %34, %cst_32 {dimension_numbers = #tpu.dot_dimension_numbers<[1], [0], [0], [1], [0, 0, 1, 1], [], []>} : vector<32x4xbf16>, vector<4x32xbf16>, vector<32x32xf32> -> vector<32x32xf32>
    %c2 = arith.constant 2 : index
    %c0_33 = arith.constant 0 : index
    %c0_34 = arith.constant 0 : index
    %36 = vector.load %arg7[%c2, %c0_33, %c0_34] : memref<10x32x32xf32, #tpu.memory_space<vmem>>, vector<1x32x32xf32>
    %37 = vector.shape_cast %36 : vector<1x32x32xf32> to vector<32x32xf32>
    %cst_35 = arith.constant 4.000000e+00 : f32
    %38 = vector.broadcast %cst_35 : f32 to vector<32x32xf32>
    %39 = arith.mulf %38, %35 : vector<32x32xf32>
    %40 = arith.addf %37, %39 : vector<32x32xf32>
    %c0_36 = arith.constant 0 : index
    %c2_37 = arith.constant 2 : index
    %c0_38 = arith.constant 0 : index
    %c0_39 = arith.constant 0 : index
    %41 = vector.load %arg3[%c0_36, %c2_37, %c0_38, %c0_39] : memref<1x4x32x4xf32, #tpu.memory_space<vmem>>, vector<1x1x32x4xf32>
    %42 = vector.shape_cast %41 : vector<1x1x32x4xf32> to vector<32x4xf32>
    %c0_40 = arith.constant 0 : index
    %c2_41 = arith.constant 2 : index
    %c0_42 = arith.constant 0 : index
    %c0_43 = arith.constant 0 : index
    %43 = vector.load %arg4[%c0_40, %c2_41, %c0_42, %c0_43] : memref<1x4x4x32xf32, #tpu.memory_space<vmem>>, vector<1x1x4x32xf32>
    %44 = vector.shape_cast %43 : vector<1x1x4x32xf32> to vector<4x32xf32>
    %45 = arith.truncf %42 : vector<32x4xf32> to vector<32x4xbf16>
    %46 = arith.truncf %44 : vector<4x32xf32> to vector<4x32xbf16>
    %cst_44 = arith.constant dense<0.000000e+00> : vector<32x32xf32>
    %47 = tpu.matmul %45, %46, %cst_44 {dimension_numbers = #tpu.dot_dimension_numbers<[1], [0], [0], [1], [0, 0, 1, 1], [], []>} : vector<32x4xbf16>, vector<4x32xbf16>, vector<32x32xf32> -> vector<32x32xf32>
    %c4 = arith.constant 4 : index
    %c0_45 = arith.constant 0 : index
    %c0_46 = arith.constant 0 : index
    %48 = vector.load %arg7[%c4, %c0_45, %c0_46] : memref<10x32x32xf32, #tpu.memory_space<vmem>>, vector<1x32x32xf32>
    %49 = vector.shape_cast %48 : vector<1x32x32xf32> to vector<32x32xf32>
    %cst_47 = arith.constant 4.000000e+00 : f32
    %50 = vector.broadcast %cst_47 : f32 to vector<32x32xf32>
    %51 = arith.mulf %50, %47 : vector<32x32xf32>
    %52 = arith.addf %49, %51 : vector<32x32xf32>
    %cst_48 = arith.constant 0.176776692 : f32
    %53 = vector.broadcast %cst_48 : f32 to vector<32x32xf32>
    %54 = arith.mulf %52, %53 : vector<32x32xf32>
    %c0_49 = arith.constant 0 : index
    %c3 = arith.constant 3 : index
    %c0_50 = arith.constant 0 : index
    %c0_51 = arith.constant 0 : index
    %55 = vector.load %arg3[%c0_49, %c3, %c0_50, %c0_51] : memref<1x4x32x4xf32, #tpu.memory_space<vmem>>, vector<1x1x32x4xf32>
    %56 = vector.shape_cast %55 : vector<1x1x32x4xf32> to vector<32x4xf32>
    %c0_52 = arith.constant 0 : index
    %c3_53 = arith.constant 3 : index
    %c0_54 = arith.constant 0 : index
    %c0_55 = arith.constant 0 : index
    %57 = vector.load %arg4[%c0_52, %c3_53, %c0_54, %c0_55] : memref<1x4x4x32xf32, #tpu.memory_space<vmem>>, vector<1x1x4x32xf32>
    %58 = vector.shape_cast %57 : vector<1x1x4x32xf32> to vector<4x32xf32>
    %59 = arith.truncf %56 : vector<32x4xf32> to vector<32x4xbf16>
    %60 = arith.truncf %58 : vector<4x32xf32> to vector<4x32xbf16>
    %cst_56 = arith.constant dense<0.000000e+00> : vector<32x32xf32>
    %61 = tpu.matmul %59, %60, %cst_56 {dimension_numbers = #tpu.dot_dimension_numbers<[1], [0], [0], [1], [0, 0, 1, 1], [], []>} : vector<32x4xbf16>, vector<4x32xbf16>, vector<32x32xf32> -> vector<32x32xf32>
    %c6 = arith.constant 6 : index
    %c0_57 = arith.constant 0 : index
    %c0_58 = arith.constant 0 : index
    %62 = vector.load %arg7[%c6, %c0_57, %c0_58] : memref<10x32x32xf32, #tpu.memory_space<vmem>>, vector<1x32x32xf32>
    %63 = vector.shape_cast %62 : vector<1x32x32xf32> to vector<32x32xf32>
    %cst_59 = arith.constant 4.000000e+00 : f32
    %64 = vector.broadcast %cst_59 : f32 to vector<32x32xf32>
    %65 = arith.mulf %64, %61 : vector<32x32xf32>
    %66 = arith.addf %63, %65 : vector<32x32xf32>
    %67 = arith.truncf %14 : vector<7x32xf32> to vector<7x32xbf16>
    %68 = arith.truncf %28 : vector<32x32xf32> to vector<32x32xbf16>
    %cst_60 = arith.constant dense<0.000000e+00> : vector<7x32xf32>
    %69 = tpu.matmul %67, %68, %cst_60 {dimension_numbers = #tpu.dot_dimension_numbers<[1], [0], [0], [1], [0, 0, 1, 1], [], []>} : vector<7x32xbf16>, vector<32x32xbf16>, vector<7x32xf32> -> vector<7x32xf32>
    %c0_61 = arith.constant 0 : index
    %c0_62 = arith.constant 0 : index
    %70 = vector.load %arg8[%c0_61, %c0_62] : memref<19x32xf32, #tpu.memory_space<vmem>>, vector<1x32xf32>
    %cst_63 = arith.constant 0.176776692 : f32
    %71 = vector.broadcast %cst_63 : f32 to vector<1x32xf32>
    %72 = arith.mulf %70, %71 : vector<1x32xf32>
    %73 = vector.broadcast %72 : vector<1x32xf32> to vector<7x32xf32>
    %74 = arith.addf %69, %73 : vector<7x32xf32>
    %c1_64 = arith.constant 1 : index
    %c0_65 = arith.constant 0 : index
    %c0_66 = arith.constant 0 : index
    %75 = vector.load %arg7[%c1_64, %c0_65, %c0_66] : memref<10x32x32xf32, #tpu.memory_space<vmem>>, vector<1x32x32xf32>
    %76 = vector.shape_cast %75 : vector<1x32x32xf32> to vector<32x32xf32>
    %77 = arith.truncf %14 : vector<7x32xf32> to vector<7x32xbf16>
    %78 = arith.truncf %76 : vector<32x32xf32> to vector<32x32xbf16>
    %cst_67 = arith.constant dense<0.000000e+00> : vector<7x32xf32>
    %79 = tpu.matmul %77, %78, %cst_67 {dimension_numbers = #tpu.dot_dimension_numbers<[1], [0], [0], [1], [0, 0, 1, 1], [], []>} : vector<7x32xbf16>, vector<32x32xbf16>, vector<7x32xf32> -> vector<7x32xf32>
    %c1_68 = arith.constant 1 : index
    %c0_69 = arith.constant 0 : index
    %80 = vector.load %arg8[%c1_68, %c0_69] : memref<19x32xf32, #tpu.memory_space<vmem>>, vector<1x32xf32>
    %81 = vector.broadcast %80 : vector<1x32xf32> to vector<7x32xf32>
    %82 = arith.addf %79, %81 : vector<7x32xf32>
    %83 = arith.truncf %14 : vector<7x32xf32> to vector<7x32xbf16>
    %84 = arith.truncf %40 : vector<32x32xf32> to vector<32x32xbf16>
    %cst_70 = arith.constant dense<0.000000e+00> : vector<7x32xf32>
    %85 = tpu.matmul %83, %84, %cst_70 {dimension_numbers = #tpu.dot_dimension_numbers<[1], [0], [0], [1], [0, 0, 1, 1], [], []>} : vector<7x32xbf16>, vector<32x32xbf16>, vector<7x32xf32> -> vector<7x32xf32>
    %c2_71 = arith.constant 2 : index
    %c0_72 = arith.constant 0 : index
    %86 = vector.load %arg8[%c2_71, %c0_72] : memref<19x32xf32, #tpu.memory_space<vmem>>, vector<1x32xf32>
    %87 = vector.broadcast %86 : vector<1x32xf32> to vector<7x32xf32>
    %88 = arith.addf %85, %87 : vector<7x32xf32>
    %89 = arith.truncf %74 : vector<7x32xf32> to vector<7x32xbf16>
    %90 = arith.truncf %82 : vector<7x32xf32> to vector<7x32xbf16>
    %cst_73 = arith.constant dense<0.000000e+00> : vector<7x7xf32>
    %91 = tpu.matmul %89, %90, %cst_73 {dimension_numbers = #tpu.dot_dimension_numbers<[1], [1], [0], [0], [0, 0, 1, 0], [], []>} : vector<7x32xbf16>, vector<7x32xbf16>, vector<7x7xf32> -> vector<7x7xf32>
    %cst_74 = arith.constant dense<0xFF800000> : vector<7xf32>
    %92 = vector.multi_reduction <maximumf>, %91, %cst_74 [1] : vector<7x7xf32> to vector<7xf32>
    %93 = vector.shape_cast %92 : vector<7xf32> to vector<7x1xf32>
    %94 = vector.broadcast %93 : vector<7x1xf32> to vector<7x7xf32>
    %95 = arith.subf %91, %94 : vector<7x7xf32>
    %96 = math.exp %95 : vector<7x7xf32>
    %cst_75 = arith.constant dense<0.000000e+00> : vector<7xf32>
    %97 = vector.multi_reduction <add>, %96, %cst_75 [1] : vector<7x7xf32> to vector<7xf32>
    %98 = vector.shape_cast %97 : vector<7xf32> to vector<7x1xf32>
    %99 = tpu.reciprocal %98 {approx = true} : vector<7x1xf32> -> vector<7x1xf32>
    %100 = vector.broadcast %99 : vector<7x1xf32> to vector<7x7xf32>
    %101 = arith.mulf %96, %100 : vector<7x7xf32>
    %102 = arith.truncf %101 : vector<7x7xf32> to vector<7x7xbf16>
    %103 = arith.truncf %88 : vector<7x32xf32> to vector<7x32xbf16>
    %cst_76 = arith.constant dense<0.000000e+00> : vector<7x32xf32>
    %104 = tpu.matmul %102, %103, %cst_76 {dimension_numbers = #tpu.dot_dimension_numbers<[1], [0], [0], [1], [0, 0, 1, 1], [], []>} : vector<7x7xbf16>, vector<7x32xbf16>, vector<7x32xf32> -> vector<7x32xf32>
    %c3_77 = arith.constant 3 : index
    %c0_78 = arith.constant 0 : index
    %c0_79 = arith.constant 0 : index
    %105 = vector.load %arg7[%c3_77, %c0_78, %c0_79] : memref<10x32x32xf32, #tpu.memory_space<vmem>>, vector<1x32x32xf32>
    %106 = vector.shape_cast %105 : vector<1x32x32xf32> to vector<32x32xf32>
    %107 = arith.truncf %104 : vector<7x32xf32> to vector<7x32xbf16>
    %108 = arith.truncf %106 : vector<32x32xf32> to vector<32x32xbf16>
    %cst_80 = arith.constant dense<0.000000e+00> : vector<7x32xf32>
    %109 = tpu.matmul %107, %108, %cst_80 {dimension_numbers = #tpu.dot_dimension_numbers<[1], [0], [0], [1], [0, 0, 1, 1], [], []>} : vector<7x32xbf16>, vector<32x32xbf16>, vector<7x32xf32> -> vector<7x32xf32>
    %c3_81 = arith.constant 3 : index
    %c0_82 = arith.constant 0 : index
    %110 = vector.load %arg8[%c3_81, %c0_82] : memref<19x32xf32, #tpu.memory_space<vmem>>, vector<1x32xf32>
    %111 = vector.broadcast %110 : vector<1x32xf32> to vector<7x32xf32>
    %112 = arith.addf %109, %111 : vector<7x32xf32>
    %113 = arith.addf %14, %112 : vector<7x32xf32>
    %cst_83 = arith.constant dense<0.000000e+00> : vector<7xf32>
    %114 = vector.multi_reduction <add>, %113, %cst_83 [1] : vector<7x32xf32> to vector<7xf32>
    %115 = vector.shape_cast %114 : vector<7xf32> to vector<7x1xf32>
    %cst_84 = arith.constant 3.200000e+01 : f32
    %116 = vector.broadcast %cst_84 : f32 to vector<7x1xf32>
    %117 = arith.divf %115, %116 : vector<7x1xf32>
    %118 = vector.broadcast %117 : vector<7x1xf32> to vector<7x32xf32>
    %119 = arith.subf %113, %118 : vector<7x32xf32>
    %120 = arith.mulf %119, %119 : vector<7x32xf32>
    %cst_85 = arith.constant dense<0.000000e+00> : vector<7xf32>
    %121 = vector.multi_reduction <add>, %120, %cst_85 [1] : vector<7x32xf32> to vector<7xf32>
    %122 = vector.shape_cast %121 : vector<7xf32> to vector<7x1xf32>
    %cst_86 = arith.constant 3.200000e+01 : f32
    %123 = vector.broadcast %cst_86 : f32 to vector<7x1xf32>
    %124 = arith.divf %122, %123 : vector<7x1xf32>
    %125 = vector.broadcast %117 : vector<7x1xf32> to vector<7x32xf32>
    %126 = arith.subf %113, %125 : vector<7x32xf32>
    %cst_87 = arith.constant 9.99999974E-6 : f32
    %127 = vector.broadcast %cst_87 : f32 to vector<7x1xf32>
    %128 = arith.addf %124, %127 : vector<7x1xf32>
    %129 = math.rsqrt %128 : vector<7x1xf32>
    %130 = vector.broadcast %129 : vector<7x1xf32> to vector<7x32xf32>
    %131 = arith.mulf %126, %130 : vector<7x32xf32>
    %c13 = arith.constant 13 : index
    %c0_88 = arith.constant 0 : index
    %132 = vector.load %arg8[%c13, %c0_88] : memref<19x32xf32, #tpu.memory_space<vmem>>, vector<1x32xf32>
    %133 = vector.broadcast %132 : vector<1x32xf32> to vector<7x32xf32>
    %134 = arith.mulf %131, %133 : vector<7x32xf32>
    %c14 = arith.constant 14 : index
    %c0_89 = arith.constant 0 : index
    %135 = vector.load %arg8[%c14, %c0_89] : memref<19x32xf32, #tpu.memory_space<vmem>>, vector<1x32xf32>
    %136 = vector.broadcast %135 : vector<1x32xf32> to vector<7x32xf32>
    %137 = arith.addf %134, %136 : vector<7x32xf32>
    %138 = arith.truncf %137 : vector<7x32xf32> to vector<7x32xbf16>
    %139 = arith.truncf %54 : vector<32x32xf32> to vector<32x32xbf16>
    %cst_90 = arith.constant dense<0.000000e+00> : vector<7x32xf32>
    %140 = tpu.matmul %138, %139, %cst_90 {dimension_numbers = #tpu.dot_dimension_numbers<[1], [0], [0], [1], [0, 0, 1, 1], [], []>} : vector<7x32xbf16>, vector<32x32xbf16>, vector<7x32xf32> -> vector<7x32xf32>
    %c4_91 = arith.constant 4 : index
    %c0_92 = arith.constant 0 : index
    %141 = vector.load %arg8[%c4_91, %c0_92] : memref<19x32xf32, #tpu.memory_space<vmem>>, vector<1x32xf32>
    %cst_93 = arith.constant 0.176776692 : f32
    %142 = vector.broadcast %cst_93 : f32 to vector<1x32xf32>
    %143 = arith.mulf %141, %142 : vector<1x32xf32>
    %144 = vector.broadcast %143 : vector<1x32xf32> to vector<7x32xf32>
    %145 = arith.addf %140, %144 : vector<7x32xf32>
    %146 = arith.addf %11, %12 : vector<64x32xf32>
    %c5 = arith.constant 5 : index
    %c0_94 = arith.constant 0 : index
    %c0_95 = arith.constant 0 : index
    %147 = vector.load %arg7[%c5, %c0_94, %c0_95] : memref<10x32x32xf32, #tpu.memory_space<vmem>>, vector<1x32x32xf32>
    %148 = vector.shape_cast %147 : vector<1x32x32xf32> to vector<32x32xf32>
    %149 = arith.truncf %146 : vector<64x32xf32> to vector<64x32xbf16>
    %150 = arith.truncf %148 : vector<32x32xf32> to vector<32x32xbf16>
    %cst_96 = arith.constant dense<0.000000e+00> : vector<64x32xf32>
    %151 = tpu.matmul %149, %150, %cst_96 {dimension_numbers = #tpu.dot_dimension_numbers<[1], [0], [0], [1], [0, 0, 1, 1], [], []>} : vector<64x32xbf16>, vector<32x32xbf16>, vector<64x32xf32> -> vector<64x32xf32>
    %c5_97 = arith.constant 5 : index
    %c0_98 = arith.constant 0 : index
    %152 = vector.load %arg8[%c5_97, %c0_98] : memref<19x32xf32, #tpu.memory_space<vmem>>, vector<1x32xf32>
    %153 = vector.broadcast %152 : vector<1x32xf32> to vector<64x32xf32>
    %154 = arith.addf %151, %153 : vector<64x32xf32>
    %155 = arith.truncf %11 : vector<64x32xf32> to vector<64x32xbf16>
    %156 = arith.truncf %66 : vector<32x32xf32> to vector<32x32xbf16>
    %cst_99 = arith.constant dense<0.000000e+00> : vector<64x32xf32>
    %157 = tpu.matmul %155, %156, %cst_99 {dimension_numbers = #tpu.dot_dimension_numbers<[1], [0], [0], [1], [0, 0, 1, 1], [], []>} : vector<64x32xbf16>, vector<32x32xbf16>, vector<64x32xf32> -> vector<64x32xf32>
    %c6_100 = arith.constant 6 : index
    %c0_101 = arith.constant 0 : index
    %158 = vector.load %arg8[%c6_100, %c0_101] : memref<19x32xf32, #tpu.memory_space<vmem>>, vector<1x32xf32>
    %159 = vector.broadcast %158 : vector<1x32xf32> to vector<64x32xf32>
    %160 = arith.addf %157, %159 : vector<64x32xf32>
    %161 = arith.truncf %145 : vector<7x32xf32> to vector<7x32xbf16>
    %162 = arith.truncf %154 : vector<64x32xf32> to vector<64x32xbf16>
    %cst_102 = arith.constant dense<0.000000e+00> : vector<7x64xf32>
    %163 = tpu.matmul %161, %162, %cst_102 {dimension_numbers = #tpu.dot_dimension_numbers<[1], [1], [0], [0], [0, 0, 1, 0], [], []>} : vector<7x32xbf16>, vector<64x32xbf16>, vector<7x64xf32> -> vector<7x64xf32>
    %cst_103 = arith.constant dense<0xFF800000> : vector<7xf32>
    %164 = vector.multi_reduction <maximumf>, %163, %cst_103 [1] : vector<7x64xf32> to vector<7xf32>
    %165 = vector.shape_cast %164 : vector<7xf32> to vector<7x1xf32>
    %166 = vector.broadcast %165 : vector<7x1xf32> to vector<7x64xf32>
    %167 = arith.subf %163, %166 : vector<7x64xf32>
    %168 = math.exp %167 : vector<7x64xf32>
    %cst_104 = arith.constant dense<0.000000e+00> : vector<7xf32>
    %169 = vector.multi_reduction <add>, %168, %cst_104 [1] : vector<7x64xf32> to vector<7xf32>
    %170 = vector.shape_cast %169 : vector<7xf32> to vector<7x1xf32>
    %171 = tpu.reciprocal %170 {approx = true} : vector<7x1xf32> -> vector<7x1xf32>
    %172 = vector.broadcast %171 : vector<7x1xf32> to vector<7x64xf32>
    %173 = arith.mulf %168, %172 : vector<7x64xf32>
    %174 = arith.truncf %173 : vector<7x64xf32> to vector<7x64xbf16>
    %175 = arith.truncf %160 : vector<64x32xf32> to vector<64x32xbf16>
    %cst_105 = arith.constant dense<0.000000e+00> : vector<7x32xf32>
    %176 = tpu.matmul %174, %175, %cst_105 {dimension_numbers = #tpu.dot_dimension_numbers<[1], [0], [0], [1], [0, 0, 1, 1], [], []>} : vector<7x64xbf16>, vector<64x32xbf16>, vector<7x32xf32> -> vector<7x32xf32>
    %c7 = arith.constant 7 : index
    %c0_106 = arith.constant 0 : index
    %c0_107 = arith.constant 0 : index
    %177 = vector.load %arg7[%c7, %c0_106, %c0_107] : memref<10x32x32xf32, #tpu.memory_space<vmem>>, vector<1x32x32xf32>
    %178 = vector.shape_cast %177 : vector<1x32x32xf32> to vector<32x32xf32>
    %179 = arith.truncf %176 : vector<7x32xf32> to vector<7x32xbf16>
    %180 = arith.truncf %178 : vector<32x32xf32> to vector<32x32xbf16>
    %cst_108 = arith.constant dense<0.000000e+00> : vector<7x32xf32>
    %181 = tpu.matmul %179, %180, %cst_108 {dimension_numbers = #tpu.dot_dimension_numbers<[1], [0], [0], [1], [0, 0, 1, 1], [], []>} : vector<7x32xbf16>, vector<32x32xbf16>, vector<7x32xf32> -> vector<7x32xf32>
    %c7_109 = arith.constant 7 : index
    %c0_110 = arith.constant 0 : index
    %182 = vector.load %arg8[%c7_109, %c0_110] : memref<19x32xf32, #tpu.memory_space<vmem>>, vector<1x32xf32>
    %183 = vector.broadcast %182 : vector<1x32xf32> to vector<7x32xf32>
    %184 = arith.addf %181, %183 : vector<7x32xf32>
    %185 = arith.addf %137, %184 : vector<7x32xf32>
    %cst_111 = arith.constant dense<0.000000e+00> : vector<7xf32>
    %186 = vector.multi_reduction <add>, %185, %cst_111 [1] : vector<7x32xf32> to vector<7xf32>
    %187 = vector.shape_cast %186 : vector<7xf32> to vector<7x1xf32>
    %cst_112 = arith.constant 3.200000e+01 : f32
    %188 = vector.broadcast %cst_112 : f32 to vector<7x1xf32>
    %189 = arith.divf %187, %188 : vector<7x1xf32>
    %190 = vector.broadcast %189 : vector<7x1xf32> to vector<7x32xf32>
    %191 = arith.subf %185, %190 : vector<7x32xf32>
    %192 = arith.mulf %191, %191 : vector<7x32xf32>
    %cst_113 = arith.constant dense<0.000000e+00> : vector<7xf32>
    %193 = vector.multi_reduction <add>, %192, %cst_113 [1] : vector<7x32xf32> to vector<7xf32>
    %194 = vector.shape_cast %193 : vector<7xf32> to vector<7x1xf32>
    %cst_114 = arith.constant 3.200000e+01 : f32
    %195 = vector.broadcast %cst_114 : f32 to vector<7x1xf32>
    %196 = arith.divf %194, %195 : vector<7x1xf32>
    %197 = vector.broadcast %189 : vector<7x1xf32> to vector<7x32xf32>
    %198 = arith.subf %185, %197 : vector<7x32xf32>
    %cst_115 = arith.constant 9.99999974E-6 : f32
    %199 = vector.broadcast %cst_115 : f32 to vector<7x1xf32>
    %200 = arith.addf %196, %199 : vector<7x1xf32>
    %201 = math.rsqrt %200 : vector<7x1xf32>
    %202 = vector.broadcast %201 : vector<7x1xf32> to vector<7x32xf32>
    %203 = arith.mulf %198, %202 : vector<7x32xf32>
    %c15 = arith.constant 15 : index
    %c0_116 = arith.constant 0 : index
    %204 = vector.load %arg8[%c15, %c0_116] : memref<19x32xf32, #tpu.memory_space<vmem>>, vector<1x32xf32>
    %205 = vector.broadcast %204 : vector<1x32xf32> to vector<7x32xf32>
    %206 = arith.mulf %203, %205 : vector<7x32xf32>
    %c16 = arith.constant 16 : index
    %c0_117 = arith.constant 0 : index
    %207 = vector.load %arg8[%c16, %c0_117] : memref<19x32xf32, #tpu.memory_space<vmem>>, vector<1x32xf32>
    %208 = vector.broadcast %207 : vector<1x32xf32> to vector<7x32xf32>
    %209 = arith.addf %206, %208 : vector<7x32xf32>
    %c0_118 = arith.constant 0 : index
    %c0_119 = arith.constant 0 : index
    %210 = vector.load %arg9[%c0_118, %c0_119] : memref<32x64xf32, #tpu.memory_space<vmem>>, vector<32x64xf32>
    %211 = arith.truncf %209 : vector<7x32xf32> to vector<7x32xbf16>
    %212 = arith.truncf %210 : vector<32x64xf32> to vector<32x64xbf16>
    %cst_120 = arith.constant dense<0.000000e+00> : vector<7x64xf32>
    %213 = tpu.matmul %211, %212, %cst_120 {dimension_numbers = #tpu.dot_dimension_numbers<[1], [0], [0], [1], [0, 0, 1, 1], [], []>} : vector<7x32xbf16>, vector<32x64xbf16>, vector<7x64xf32> -> vector<7x64xf32>
    %c0_121 = arith.constant 0 : index
    %c0_122 = arith.constant 0 : index
    %214 = vector.load %arg10[%c0_121, %c0_122] : memref<1x64xf32, #tpu.memory_space<vmem>>, vector<1x64xf32>
    %215 = vector.broadcast %214 : vector<1x64xf32> to vector<7x64xf32>
    %216 = arith.addf %213, %215 : vector<7x64xf32>
    %cst_123 = arith.constant 0.000000e+00 : f32
    %217 = vector.broadcast %cst_123 : f32 to vector<7x64xf32>
    %218 = arith.maximumf %216, %217 : vector<7x64xf32>
    %c0_124 = arith.constant 0 : index
    %c0_125 = arith.constant 0 : index
    %219 = vector.load %arg11[%c0_124, %c0_125] : memref<64x32xf32, #tpu.memory_space<vmem>>, vector<64x32xf32>
    %220 = arith.truncf %218 : vector<7x64xf32> to vector<7x64xbf16>
    %221 = arith.truncf %219 : vector<64x32xf32> to vector<64x32xbf16>
    %cst_126 = arith.constant dense<0.000000e+00> : vector<7x32xf32>
    %222 = tpu.matmul %220, %221, %cst_126 {dimension_numbers = #tpu.dot_dimension_numbers<[1], [0], [0], [1], [0, 0, 1, 1], [], []>} : vector<7x64xbf16>, vector<64x32xbf16>, vector<7x32xf32> -> vector<7x32xf32>
    %223 = arith.addf %209, %222 : vector<7x32xf32>
    %c8 = arith.constant 8 : index
    %c0_127 = arith.constant 0 : index
    %224 = vector.load %arg8[%c8, %c0_127] : memref<19x32xf32, #tpu.memory_space<vmem>>, vector<1x32xf32>
    %225 = vector.broadcast %224 : vector<1x32xf32> to vector<7x32xf32>
    %226 = arith.addf %223, %225 : vector<7x32xf32>
    %cst_128 = arith.constant dense<0.000000e+00> : vector<7xf32>
    %227 = vector.multi_reduction <add>, %226, %cst_128 [1] : vector<7x32xf32> to vector<7xf32>
    %228 = vector.shape_cast %227 : vector<7xf32> to vector<7x1xf32>
    %cst_129 = arith.constant 3.200000e+01 : f32
    %229 = vector.broadcast %cst_129 : f32 to vector<7x1xf32>
    %230 = arith.divf %228, %229 : vector<7x1xf32>
    %231 = vector.broadcast %230 : vector<7x1xf32> to vector<7x32xf32>
    %232 = arith.subf %226, %231 : vector<7x32xf32>
    %233 = arith.mulf %232, %232 : vector<7x32xf32>
    %cst_130 = arith.constant dense<0.000000e+00> : vector<7xf32>
    %234 = vector.multi_reduction <add>, %233, %cst_130 [1] : vector<7x32xf32> to vector<7xf32>
    %235 = vector.shape_cast %234 : vector<7xf32> to vector<7x1xf32>
    %cst_131 = arith.constant 3.200000e+01 : f32
    %236 = vector.broadcast %cst_131 : f32 to vector<7x1xf32>
    %237 = arith.divf %235, %236 : vector<7x1xf32>
    %238 = vector.broadcast %230 : vector<7x1xf32> to vector<7x32xf32>
    %239 = arith.subf %226, %238 : vector<7x32xf32>
    %cst_132 = arith.constant 9.99999974E-6 : f32
    %240 = vector.broadcast %cst_132 : f32 to vector<7x1xf32>
    %241 = arith.addf %237, %240 : vector<7x1xf32>
    %242 = math.rsqrt %241 : vector<7x1xf32>
    %243 = vector.broadcast %242 : vector<7x1xf32> to vector<7x32xf32>
    %244 = arith.mulf %239, %243 : vector<7x32xf32>
    %c17 = arith.constant 17 : index
    %c0_133 = arith.constant 0 : index
    %245 = vector.load %arg8[%c17, %c0_133] : memref<19x32xf32, #tpu.memory_space<vmem>>, vector<1x32xf32>
    %246 = vector.broadcast %245 : vector<1x32xf32> to vector<7x32xf32>
    %247 = arith.mulf %244, %246 : vector<7x32xf32>
    %c18 = arith.constant 18 : index
    %c0_134 = arith.constant 0 : index
    %248 = vector.load %arg8[%c18, %c0_134] : memref<19x32xf32, #tpu.memory_space<vmem>>, vector<1x32xf32>
    %249 = vector.broadcast %248 : vector<1x32xf32> to vector<7x32xf32>
    %250 = arith.addf %247, %249 : vector<7x32xf32>
    %251 = vector.extract_strided_slice %250 {offsets = [0, 0], sizes = [1, 32], strides = [1, 1]} : vector<7x32xf32> to vector<1x32xf32>
    %252 = vector.extract_strided_slice %250 {offsets = [1, 0], sizes = [1, 32], strides = [1, 1]} : vector<7x32xf32> to vector<1x32xf32>
    %c8_135 = arith.constant 8 : index
    %c0_136 = arith.constant 0 : index
    %c0_137 = arith.constant 0 : index
    %253 = vector.load %arg7[%c8_135, %c0_136, %c0_137] : memref<10x32x32xf32, #tpu.memory_space<vmem>>, vector<1x32x32xf32>
    %254 = vector.shape_cast %253 : vector<1x32x32xf32> to vector<32x32xf32>
    %255 = arith.truncf %252 : vector<1x32xf32> to vector<1x32xbf16>
    %256 = arith.truncf %254 : vector<32x32xf32> to vector<32x32xbf16>
    %cst_138 = arith.constant dense<0.000000e+00> : vector<1x32xf32>
    %257 = tpu.matmul %255, %256, %cst_138 {dimension_numbers = #tpu.dot_dimension_numbers<[1], [0], [0], [1], [0, 0, 1, 1], [], []>} : vector<1x32xbf16>, vector<32x32xbf16>, vector<1x32xf32> -> vector<1x32xf32>
    %c9 = arith.constant 9 : index
    %c0_139 = arith.constant 0 : index
    %258 = vector.load %arg8[%c9, %c0_139] : memref<19x32xf32, #tpu.memory_space<vmem>>, vector<1x32xf32>
    %259 = arith.addf %257, %258 : vector<1x32xf32>
    %cst_140 = arith.constant 0.000000e+00 : f32
    %260 = vector.broadcast %cst_140 : f32 to vector<1x32xf32>
    %261 = arith.maximumf %259, %260 : vector<1x32xf32>
    %c0_141 = arith.constant 0 : index
    %c0_142 = arith.constant 0 : index
    %262 = vector.load %arg16[%c0_141, %c0_142] : memref<32x4xf32, #tpu.memory_space<vmem>>, vector<32x4xf32>
    %263 = arith.truncf %261 : vector<1x32xf32> to vector<1x32xbf16>
    %264 = arith.truncf %262 : vector<32x4xf32> to vector<32x4xbf16>
    %cst_143 = arith.constant dense<0.000000e+00> : vector<1x4xf32>
    %265 = tpu.matmul %263, %264, %cst_143 {dimension_numbers = #tpu.dot_dimension_numbers<[1], [0], [0], [1], [0, 0, 1, 1], [], []>} : vector<1x32xbf16>, vector<32x4xbf16>, vector<1x4xf32> -> vector<1x4xf32>
    %c0_144 = arith.constant 0 : index
    %c0_145 = arith.constant 0 : index
    %266 = vector.load %arg17[%c0_144, %c0_145] : memref<1x4xf32, #tpu.memory_space<vmem>>, vector<1x4xf32>
    %267 = arith.addf %265, %266 : vector<1x4xf32>
    %c0_146 = arith.constant 0 : index
    %c0_147 = arith.constant 0 : index
    %268 = vector.load %arg12[%c0_146, %c0_147] : memref<32x64xf32, #tpu.memory_space<vmem>>, vector<32x64xf32>
    %269 = arith.truncf %11 : vector<64x32xf32> to vector<64x32xbf16>
    %270 = arith.truncf %268 : vector<32x64xf32> to vector<32x64xbf16>
    %cst_148 = arith.constant dense<0.000000e+00> : vector<64x64xf32>
    %271 = tpu.matmul %269, %270, %cst_148 {dimension_numbers = #tpu.dot_dimension_numbers<[1], [0], [0], [1], [0, 0, 1, 1], [], []>} : vector<64x32xbf16>, vector<32x64xbf16>, vector<64x64xf32> -> vector<64x64xf32>
    %c0_149 = arith.constant 0 : index
    %c0_150 = arith.constant 0 : index
    %272 = vector.load %arg13[%c0_149, %c0_150] : memref<1x64xf32, #tpu.memory_space<vmem>>, vector<1x64xf32>
    %273 = vector.broadcast %272 : vector<1x64xf32> to vector<64x64xf32>
    %274 = arith.addf %271, %273 : vector<64x64xf32>
    %275 = arith.mulf %274, %274 : vector<64x64xf32>
    %276 = arith.mulf %274, %275 : vector<64x64xf32>
    %cst_151 = arith.constant 4.471500e-02 : f32
    %277 = vector.broadcast %cst_151 : f32 to vector<64x64xf32>
    %278 = arith.mulf %277, %276 : vector<64x64xf32>
    %279 = arith.addf %274, %278 : vector<64x64xf32>
    %cst_152 = arith.constant 0.797884583 : f32
    %280 = vector.broadcast %cst_152 : f32 to vector<64x64xf32>
    %281 = arith.mulf %280, %279 : vector<64x64xf32>
    %282 = math.tanh %281 : vector<64x64xf32>
    %cst_153 = arith.constant 1.000000e+00 : f32
    %283 = vector.broadcast %cst_153 : f32 to vector<64x64xf32>
    %284 = arith.addf %283, %282 : vector<64x64xf32>
    %cst_154 = arith.constant 5.000000e-01 : f32
    %285 = vector.broadcast %cst_154 : f32 to vector<64x64xf32>
    %286 = arith.mulf %285, %284 : vector<64x64xf32>
    %287 = arith.mulf %274, %286 : vector<64x64xf32>
    %c0_155 = arith.constant 0 : index
    %c0_156 = arith.constant 0 : index
    %288 = vector.load %arg14[%c0_155, %c0_156] : memref<4x64xf32, #tpu.memory_space<vmem>>, vector<4x64xf32>
    %289 = arith.truncf %267 : vector<1x4xf32> to vector<1x4xbf16>
    %290 = arith.truncf %288 : vector<4x64xf32> to vector<4x64xbf16>
    %cst_157 = arith.constant dense<0.000000e+00> : vector<1x64xf32>
    %291 = tpu.matmul %289, %290, %cst_157 {dimension_numbers = #tpu.dot_dimension_numbers<[1], [0], [0], [1], [0, 0, 1, 1], [], []>} : vector<1x4xbf16>, vector<4x64xbf16>, vector<1x64xf32> -> vector<1x64xf32>
    %292 = vector.broadcast %291 : vector<1x64xf32> to vector<64x64xf32>
    %293 = arith.mulf %287, %292 : vector<64x64xf32>
    %c0_158 = arith.constant 0 : index
    %c0_159 = arith.constant 0 : index
    %294 = vector.load %arg15[%c0_158, %c0_159] : memref<64x16xf32, #tpu.memory_space<vmem>>, vector<64x16xf32>
    %295 = arith.truncf %293 : vector<64x64xf32> to vector<64x64xbf16>
    %296 = arith.truncf %294 : vector<64x16xf32> to vector<64x16xbf16>
    %cst_160 = arith.constant dense<0.000000e+00> : vector<64x16xf32>
    %297 = tpu.matmul %295, %296, %cst_160 {dimension_numbers = #tpu.dot_dimension_numbers<[1], [0], [0], [1], [0, 0, 1, 1], [], []>} : vector<64x64xbf16>, vector<64x16xbf16>, vector<64x16xf32> -> vector<64x16xf32>
    %c0_161 = arith.constant 0 : index
    %c0_162 = arith.constant 0 : index
    %c0_163 = arith.constant 0 : index
    %298 = vector.load %arg20[%c0_161, %c0_162, %c0_163] : memref<1x64x16xf32, #tpu.memory_space<vmem>>, vector<1x64x16xf32>
    %299 = vector.shape_cast %298 : vector<1x64x16xf32> to vector<64x16xf32>
    %300 = vector.shape_cast %297 : vector<64x16xf32> to vector<1x64x16xf32>
    tpu.vector_store %arg20[%c0_161, %c0_162, %c0_163], %300 {strides = array<i32>} : memref<1x64x16xf32, #tpu.memory_space<vmem>>, vector<1x64x16xf32>,
    %c9_164 = arith.constant 9 : index
    %c0_165 = arith.constant 0 : index
    %c0_166 = arith.constant 0 : index
    %301 = vector.load %arg7[%c9_164, %c0_165, %c0_166] : memref<10x32x32xf32, #tpu.memory_space<vmem>>, vector<1x32x32xf32>
    %302 = vector.shape_cast %301 : vector<1x32x32xf32> to vector<32x32xf32>
    %303 = arith.truncf %251 : vector<1x32xf32> to vector<1x32xbf16>
    %304 = arith.truncf %302 : vector<32x32xf32> to vector<32x32xbf16>
    %cst_167 = arith.constant dense<0.000000e+00> : vector<1x32xf32>
    %305 = tpu.matmul %303, %304, %cst_167 {dimension_numbers = #tpu.dot_dimension_numbers<[1], [0], [0], [1], [0, 0, 1, 1], [], []>} : vector<1x32xbf16>, vector<32x32xbf16>, vector<1x32xf32> -> vector<1x32xf32>
    %c10 = arith.constant 10 : index
    %c0_168 = arith.constant 0 : index
    %306 = vector.load %arg8[%c10, %c0_168] : memref<19x32xf32, #tpu.memory_space<vmem>>, vector<1x32xf32>
    %307 = arith.addf %305, %306 : vector<1x32xf32>
    %cst_169 = arith.constant 0.000000e+00 : f32
    %308 = vector.broadcast %cst_169 : f32 to vector<1x32xf32>
    %309 = arith.maximumf %307, %308 : vector<1x32xf32>
    %c0_170 = arith.constant 0 : index
    %c0_171 = arith.constant 0 : index
    %310 = vector.load %arg18[%c0_170, %c0_171] : memref<32x4xf32, #tpu.memory_space<vmem>>, vector<32x4xf32>
    %311 = arith.truncf %309 : vector<1x32xf32> to vector<1x32xbf16>
    %312 = arith.truncf %310 : vector<32x4xf32> to vector<32x4xbf16>
    %cst_172 = arith.constant dense<0.000000e+00> : vector<1x4xf32>
    %313 = tpu.matmul %311, %312, %cst_172 {dimension_numbers = #tpu.dot_dimension_numbers<[1], [0], [0], [1], [0, 0, 1, 1], [], []>} : vector<1x32xbf16>, vector<32x4xbf16>, vector<1x4xf32> -> vector<1x4xf32>
    %c0_173 = arith.constant 0 : index
    %c0_174 = arith.constant 0 : index
    %314 = vector.load %arg19[%c0_173, %c0_174] : memref<1x4xf32, #tpu.memory_space<vmem>>, vector<1x4xf32>
    %315 = arith.addf %313, %314 : vector<1x4xf32>
    %c0_175 = arith.constant 0 : index
    %c0_176 = arith.constant 0 : index
    %c0_177 = arith.constant 0 : index
    %316 = vector.load %arg21[%c0_175, %c0_176, %c0_177] : memref<1x1x4xf32, #tpu.memory_space<vmem>>, vector<1x1x4xf32>
    %317 = vector.shape_cast %316 : vector<1x1x4xf32> to vector<1x4xf32>
    %318 = vector.shape_cast %315 : vector<1x4xf32> to vector<1x1x4xf32>
    tpu.vector_store %arg21[%c0_175, %c0_176, %c0_177], %318 {strides = array<i32>} : memref<1x1x4xf32, #tpu.memory_space<vmem>>, vector<1x1x4xf32>,
    return
  }
  func.func @transform_0(%arg0: i32) -> (i32, i32, i32) {
    %c0_i32 = arith.constant 0 : i32
    %c0_i32_0 = arith.constant 0 : i32
    %c0_i32_1 = arith.constant 0 : i32
    return %arg0, %c0_i32, %c0_i32_0 : i32, i32, i32
  }
  func.func @transform_1(%arg0: i32) -> (i32, i32, i32) {
    %c0_i32 = arith.constant 0 : i32
    %c0_i32_0 = arith.constant 0 : i32
    %c0_i32_1 = arith.constant 0 : i32
    return %arg0, %c0_i32, %c0_i32_0 : i32, i32, i32
  }
  func.func @transform_2(%arg0: i32) -> (i32, i32, i32, i32) {
    %c0_i32 = arith.constant 0 : i32
    %c0_i32_0 = arith.constant 0 : i32
    %c0_i32_1 = arith.constant 0 : i32
    %c0_i32_2 = arith.constant 0 : i32
    return %arg0, %c0_i32, %c0_i32_0, %c0_i32_1 : i32, i32, i32, i32
  }
  func.func @transform_3(%arg0: i32) -> (i32, i32, i32, i32) {
    %c0_i32 = arith.constant 0 : i32
    %c0_i32_0 = arith.constant 0 : i32
    %c0_i32_1 = arith.constant 0 : i32
    %c0_i32_2 = arith.constant 0 : i32
    return %arg0, %c0_i32, %c0_i32_0, %c0_i32_1 : i32, i32, i32, i32
  }
  func.func @transform_4(%arg0: i32) -> (i32, i32) {
    %c0_i32 = arith.constant 0 : i32
    %c0_i32_0 = arith.constant 0 : i32
    %c0_i32_1 = arith.constant 0 : i32
    return %c0_i32, %c0_i32_0 : i32, i32
  }
  func.func @transform_5(%arg0: i32) -> (i32, i32) {
    %c0_i32 = arith.constant 0 : i32
    %c0_i32_0 = arith.constant 0 : i32
    %c0_i32_1 = arith.constant 0 : i32
    return %c0_i32, %c0_i32_0 : i32, i32
  }
  func.func @transform_6(%arg0: i32) -> (i32, i32, i32) {
    %c0_i32 = arith.constant 0 : i32
    %c0_i32_0 = arith.constant 0 : i32
    %c0_i32_1 = arith.constant 0 : i32
    %c0_i32_2 = arith.constant 0 : i32
    return %c0_i32, %c0_i32_0, %c0_i32_1 : i32, i32, i32
  }
  func.func @transform_7(%arg0: i32) -> (i32, i32) {
    %c0_i32 = arith.constant 0 : i32
    %c0_i32_0 = arith.constant 0 : i32
    %c0_i32_1 = arith.constant 0 : i32
    return %c0_i32, %c0_i32_0 : i32, i32
  }
  func.func @transform_8(%arg0: i32) -> (i32, i32) {
    %c0_i32 = arith.constant 0 : i32
    %c0_i32_0 = arith.constant 0 : i32
    %c0_i32_1 = arith.constant 0 : i32
    return %c0_i32, %c0_i32_0 : i32, i32
  }
  func.func @transform_9(%arg0: i32) -> (i32, i32) {
    %c0_i32 = arith.constant 0 : i32
    %c0_i32_0 = arith.constant 0 : i32
    %c0_i32_1 = arith.constant 0 : i32
    return %c0_i32, %c0_i32_0 : i32, i32
  }
  func.func @transform_10(%arg0: i32) -> (i32, i32) {
    %c0_i32 = arith.constant 0 : i32
    %c0_i32_0 = arith.constant 0 : i32
    %c0_i32_1 = arith.constant 0 : i32
    return %c0_i32, %c0_i32_0 : i32, i32
  }
  func.func @transform_11(%arg0: i32) -> (i32, i32) {
    %c0_i32 = arith.constant 0 : i32
    %c0_i32_0 = arith.constant 0 : i32
    %c0_i32_1 = arith.constant 0 : i32
    return %c0_i32, %c0_i32_0 : i32, i32
  }
  func.func @transform_12(%arg0: i32) -> (i32, i32) {
    %c0_i32 = arith.constant 0 : i32
    %c0_i32_0 = arith.constant 0 : i32
    %c0_i32_1 = arith.constant 0 : i32
    return %c0_i32, %c0_i32_0 : i32, i32
  }
  func.func @transform_13(%arg0: i32) -> (i32, i32) {
    %c0_i32 = arith.constant 0 : i32
    %c0_i32_0 = arith.constant 0 : i32
    %c0_i32_1 = arith.constant 0 : i32
    return %c0_i32, %c0_i32_0 : i32, i32
  }
  func.func @transform_14(%arg0: i32) -> (i32, i32) {
    %c0_i32 = arith.constant 0 : i32
    %c0_i32_0 = arith.constant 0 : i32
    %c0_i32_1 = arith.constant 0 : i32
    return %c0_i32, %c0_i32_0 : i32, i32
  }
  func.func @transform_15(%arg0: i32) -> (i32, i32) {
    %c0_i32 = arith.constant 0 : i32
    %c0_i32_0 = arith.constant 0 : i32
    %c0_i32_1 = arith.constant 0 : i32
    return %c0_i32, %c0_i32_0 : i32, i32
  }
  func.func @transform_16(%arg0: i32) -> (i32, i32) {
    %c0_i32 = arith.constant 0 : i32
    %c0_i32_0 = arith.constant 0 : i32
    %c0_i32_1 = arith.constant 0 : i32
    return %c0_i32, %c0_i32_0 : i32, i32
  }
  func.func @transform_17(%arg0: i32) -> (i32, i32) {
    %c0_i32 = arith.constant 0 : i32
    %c0_i32_0 = arith.constant 0 : i32
    %c0_i32_1 = arith.constant 0 : i32
    return %c0_i32, %c0_i32_0 : i32, i32
  }
  func.func @transform_18(%arg0: i32) -> (i32, i32) {
    %c0_i32 = arith.constant 0 : i32
    %c0_i32_0 = arith.constant 0 : i32
    %c0_i32_1 = arith.constant 0 : i32
    return %c0_i32, %c0_i32_0 : i32, i32
  }
  func.func @transform_19(%arg0: i32) -> (i32, i32, i32) {
    %c0_i32 = arith.constant 0 : i32
    %c0_i32_0 = arith.constant 0 : i32
    %c0_i32_1 = arith.constant 0 : i32
    return %arg0, %c0_i32, %c0_i32_0 : i32, i32, i32
  }
  func.func @transform_20(%arg0: i32) -> (i32, i32, i32) {
    %c0_i32 = arith.constant 0 : i32
    %c0_i32_0 = arith.constant 0 : i32
    %c0_i32_1 = arith.constant 0 : i32
    return %arg0, %c0_i32, %c0_i32_0 : i32, i32, i32
  }
}

</mosaic_0001>

<llo_original>
// kernel: task_aware_sam_forward.2
$region0: #{task_aware_sam_forward.2}
  #allocation0 [shape = 'u32[]', space=smem, size = 0x4, offset = 0x4, fixed_abs, tag = 'smem constant byte address 0x4 - core index']
  #allocation1 [shape = 'u32[144,128]{1,0:T(1,128)}', space=vmem, size = 0x12000, scoped, tag = 'internal scratch']
  %s0 = inlined_call_operand.vmem [shape: f32[2,16], index: 0, kind: input, shape index: {}]
  %s1 = inlined_call_operand.vmem [shape: f32[16,64], index: 1, kind: input, shape index: {}]
  %s2 = inlined_call_operand.vmem [shape: f32[1,64], index: 2, kind: input, shape index: {}]
  %s3 = inlined_call_operand.vmem [shape: f32[64,1024], index: 3, kind: input, shape index: {}]
  %s4 = inlined_call_operand.vmem [shape: f32[1,1024], index: 4, kind: input, shape index: {}]
  %s5 = inlined_call_operand.vmem [shape: f32[2,1024], index: 5, kind: output, shape index: {}]
  %s6 = sld [smem:[#allocation0]]
  $region30: #{task_aware_sam_forward.2} parent=0
    _
  %s8 = ssub.s32 1, %s6
  %s9 = scalar_select 0, %s8, %s6
  // Predicated region
  $region2: #{task_aware_sam_forward.2} parent=0 // pred_check
    _
  $region3: #{task_aware_sam_forward.2} parent=0 // pred_check_branch
    %11 = sbr.rel (0) target = $region5
  $region4: #{task_aware_sam_forward.2} parent=0 // pred_region
    _
  $region5: #{task_aware_sam_forward.2} parent=0 // pred_fallthru
    _
  // Predicated region
  $region6: #{task_aware_sam_forward.2} parent=0 // pred_check
    _
  $region7: #{task_aware_sam_forward.2} parent=0 // pred_check_branch
    %13 = sbr.rel (0) target = $region9
  $region8: #{task_aware_sam_forward.2} parent=0 // pred_region
    _
  $region9: #{task_aware_sam_forward.2} parent=0 // pred_fallthru
    _
  // Predicated region
  $region10: #{task_aware_sam_forward.2} parent=0 // pred_check
    _
  $region11: #{task_aware_sam_forward.2} parent=0 // pred_check_branch
    %15 = sbr.rel (0) target = $region13
  $region12: #{task_aware_sam_forward.2} parent=0 // pred_region
    _
  $region13: #{task_aware_sam_forward.2} parent=0 // pred_fallthru
    _
  // Predicated region
  $region14: #{task_aware_sam_forward.2} parent=0 // pred_check
    _
  $region15: #{task_aware_sam_forward.2} parent=0 // pred_check_branch
    %17 = sbr.rel (0) target = $region17
  $region16: #{task_aware_sam_forward.2} parent=0 // pred_region
    _
  $region17: #{task_aware_sam_forward.2} parent=0 // pred_fallthru
    _
  // Predicated region
  $region18: #{task_aware_sam_forward.2} parent=0 // pred_check
    _
  $region19: #{task_aware_sam_forward.2} parent=0 // pred_check_branch
    %19 = sbr.rel (0) target = $region21
  $region20: #{task_aware_sam_forward.2} parent=0 // pred_region
    _
  $region21: #{task_aware_sam_forward.2} parent=0 // pred_fallthru
    _
  %v21 = vld [vmem:[%s0] sm:$0x3]
  %v22 = vld [vmem:[%s1] sm:$0xff]
  %v23 = vld [vmem:[%s1 + $0x8] sm:$0xff]
  %v24 = vpack.c.bf16 %v21, %v21
  %v25 = vpack.c.bf16 %v23, %v22
  %v26 = vld [vmem:[%s2] sm:$0x1]
  %v28 = vlaneseq
  %v29 = vshrl.u32 %v28, 7
  %v30 = vsub.s32 0, %v29
  %v31 = vrot.slane %v26, %v30
  %vm33 = vcmask 130048
  %v35 = vsel %vm33, %v24, 0
  %37 = vmatprep.subr.bf16.mxu0 0
  %38 = vmatpush1.bf16.msra.mxu0 %v25
  %39 = vmatprep.subr.bf16.mxu0 0
  %40 = vmatpush1.bf16.msra.mxu0 0
  %41 = vmatprep.subr.bf16.mxu0 0
  %42 = vmatpush1.bf16.msra.mxu0 0
  %43 = vmatprep.subr.bf16.mxu0 0
  %44 = vmatpush1.bf16.msra.mxu0 0
  %45 = vmatprep.subr.bf16.mxu0 0
  %46 = vmatpush1.bf16.msra.mxu0 0
  %47 = vmatprep.subr.bf16.mxu0 0
  %48 = vmatpush1.bf16.msra.mxu0 0
  %49 = vmatprep.subr.bf16.mxu0 0
  %50 = vmatpush1.bf16.msra.mxu0 0
  %51 = vmatprep.subr.bf16.mxu0 0
  %52 = vmatpush1.bf16.msra.mxu0 0
  %53 = vmatprep.subr.bf16.mxu0 0
  %54 = vmatpush1.bf16.msra.mxu0 0
  %55 = vmatprep.subr.bf16.mxu0 0
  %56 = vmatpush1.bf16.msra.mxu0 0
  %57 = vmatprep.subr.bf16.mxu0 0
  %58 = vmatpush1.bf16.msra.mxu0 0
  %59 = vmatprep.subr.bf16.mxu0 0
  %60 = vmatpush1.bf16.msra.mxu0 0
  %61 = vmatprep.subr.bf16.mxu0 0
  %62 = vmatpush1.bf16.msra.mxu0 0
  %63 = vmatprep.subr.bf16.mxu0 0
  %64 = vmatpush1.bf16.msra.mxu0 0
  %65 = vmatprep.subr.bf16.mxu0 0
  %66 = vmatpush1.bf16.msra.mxu0 0
  %67 = vmatprep.subr.bf16.mxu0 0
  %68 = vmatpush1.bf16.msra.mxu0 0
  %69 = vmatprep.mubr.bf16.mxu0 0
  %70 = vmatmul.mubr.bf16.gmra.mrb[0].mxu0 %v35
  %v71 = vpop.f32.mrb[0].mxu0
  %v72 = vadd.f32 %v31, %v71
  %v73 = vpop.f32.mrb[0].mxu0
  %v74 = vpop.f32.mrb[0].mxu0
  %v75 = vpop.f32.mrb[0].mxu0
  %76 = vdwg.mxu0
  %v77 = vmax.f32 %v72, 0.0
  %v78 = vld [vmem:[%s3] sm:$0xff]
  %v79 = vld [vmem:[%s3 + $0x8] sm:$0xff]
  %v80 = vld [vmem:[%s3 + $0x10] sm:$0xff]
  %v81 = vld [vmem:[%s3 + $0x18] sm:$0xff]
  %v82 = vld [vmem:[%s3 + $0x20] sm:$0xff]
  %v83 = vld [vmem:[%s3 + $0x28] sm:$0xff]
  %v84 = vld [vmem:[%s3 + $0x30] sm:$0xff]
  %v85 = vld [vmem:[%s3 + $0x38] sm:$0xff]
  %v86 = vld [vmem:[%s3 + $0x40] sm:$0xff]
  %v87 = vld [vmem:[%s3 + $0x48] sm:$0xff]
  %v88 = vld [vmem:[%s3 + $0x50] sm:$0xff]
  %v89 = vld [vmem:[%s3 + $0x58] sm:$0xff]
  %v90 = vld [vmem:[%s3 + $0x60] sm:$0xff]
  %v91 = vld [vmem:[%s3 + $0x68] sm:$0xff]
  %v92 = vld [vmem:[%s3 + $0x70] sm:$0xff]
  %v93 = vld [vmem:[%s3 + $0x78] sm:$0xff]
  %v94 = vld [vmem:[%s3 + $0x80] sm:$0xff]
  %v95 = vld [vmem:[%s3 + $0x88] sm:$0xff]
  %v96 = vld [vmem:[%s3 + $0x90] sm:$0xff]
  %v97 = vld [vmem:[%s3 + $0x98] sm:$0xff]
  %v98 = vld [vmem:[%s3 + $0xa0] sm:$0xff]
  %v99 = vld [vmem:[%s3 + $0xa8] sm:$0xff]
  %v100 = vld [vmem:[%s3 + $0xb0] sm:$0xff]
  %v101 = vld [vmem:[%s3 + $0xb8] sm:$0xff]
  %v102 = vld [vmem:[%s3 + $0xc0] sm:$0xff]
  %v103 = vld [vmem:[%s3 + $0xc8] sm:$0xff]
  %v104 = vld [vmem:[%s3 + $0xd0] sm:$0xff]
  %v105 = vld [vmem:[%s3 + $0xd8] sm:$0xff]
  %v106 = vld [vmem:[%s3 + $0xe0] sm:$0xff]
  %v107 = vld [vmem:[%s3 + $0xe8] sm:$0xff]
  %v108 = vld [vmem:[%s3 + $0xf0] sm:$0xff]
  %v109 = vld [vmem:[%s3 + $0xf8] sm:$0xff]
  %v110 = vld [vmem:[%s3 + $0x100] sm:$0xff]
  %v111 = vld [vmem:[%s3 + $0x108] sm:$0xff]
  %v112 = vld [vmem:[%s3 + $0x110] sm:$0xff]
  %v113 = vld [vmem:[%s3 + $0x118] sm:$0xff]
  %v114 = vld [vmem:[%s3 + $0x120] sm:$0xff]
  %v115 = vld [vmem:[%s3 + $0x128] sm:$0xff]
  %v116 = vld [vmem:[%s3 + $0x130] sm:$0xff]
  %v117 = vld [vmem:[%s3 + $0x138] sm:$0xff]
  %v118 = vld [vmem:[%s3 + $0x140] sm:$0xff]
  %v119 = vld [vmem:[%s3 + $0x148] sm:$0xff]
  %v120 = vld [vmem:[%s3 + $0x150] sm:$0xff]
  %v121 = vld [vmem:[%s3 + $0x158] sm:$0xff]
  %v122 = vld [vmem:[%s3 + $0x160] sm:$0xff]
  %v123 = vld [vmem:[%s3 + $0x168] sm:$0xff]
  %v124 = vld [vmem:[%s3 + $0x170] sm:$0xff]
  %v125 = vld [vmem:[%s3 + $0x178] sm:$0xff]
  %v126 = vld [vmem:[%s3 + $0x180] sm:$0xff]
  %v127 = vld [vmem:[%s3 + $0x188] sm:$0xff]
  %v128 = vld [vmem:[%s3 + $0x190] sm:$0xff]
  %v129 = vld [vmem:[%s3 + $0x198] sm:$0xff]
  %v130 = vld [vmem:[%s3 + $0x1a0] sm:$0xff]
  %v131 = vld [vmem:[%s3 + $0x1a8] sm:$0xff]
  %v132 = vld [vmem:[%s3 + $0x1b0] sm:$0xff]
  %v133 = vld [vmem:[%s3 + $0x1b8] sm:$0xff]
  %v134 = vld [vmem:[%s3 + $0x1c0] sm:$0xff]
  %v135 = vld [vmem:[%s3 + $0x1c8] sm:$0xff]
  %v136 = vld [vmem:[%s3 + $0x1d0] sm:$0xff]
  %v137 = vld [vmem:[%s3 + $0x1d8] sm:$0xff]
  %v138 = vld [vmem:[%s3 + $0x1e0] sm:$0xff]
  %v139 = vld [vmem:[%s3 + $0x1e8] sm:$0xff]
  %v140 = vld [vmem:[%s3 + $0x1f0] sm:$0xff]
  %v141 = vld [vmem:[%s3 + $0x1f8] sm:$0xff]
  %v142 = vpack.c.bf16 %v77, %v77
  %v143 = vpack.c.bf16 %v86, %v78
  %v144 = vpack.c.bf16 %v87, %v79
  %v145 = vpack.c.bf16 %v88, %v80
  %v146 = vpack.c.bf16 %v89, %v81
  %v147 = vpack.c.bf16 %v90, %v82
  %v148 = vpack.c.bf16 %v91, %v83
  %v149 = vpack.c.bf16 %v92, %v84
  %v150 = vpack.c.bf16 %v93, %v85
  %v151 = vpack.c.bf16 %v102, %v94
  %v152 = vpack.c.bf16 %v103, %v95
  %v153 = vpack.c.bf16 %v104, %v96
  %v154 = vpack.c.bf16 %v105, %v97
  %v155 = vpack.c.bf16 %v106, %v98
  %v156 = vpack.c.bf16 %v107, %v99
  %v157 = vpack.c.bf16 %v108, %v100
  %v158 = vpack.c.bf16 %v109, %v101
  %v159 = vpack.c.bf16 %v118, %v110
  %v160 = vpack.c.bf16 %v119, %v111
  %v161 = vpack.c.bf16 %v120, %v112
  %v162 = vpack.c.bf16 %v121, %v113
  %v163 = vpack.c.bf16 %v122, %v114
  %v164 = vpack.c.bf16 %v123, %v115
  %v165 = vpack.c.bf16 %v124, %v116
  %v166 = vpack.c.bf16 %v125, %v117
  %v167 = vpack.c.bf16 %v134, %v126
  %v168 = vpack.c.bf16 %v135, %v127
  %v169 = vpack.c.bf16 %v136, %v128
  %v170 = vpack.c.bf16 %v137, %v129
  %v171 = vpack.c.bf16 %v138, %v130
  %v172 = vpack.c.bf16 %v139, %v131
  %v173 = vpack.c.bf16 %v140, %v132
  %v174 = vpack.c.bf16 %v141, %v133
  %v175 = vld [vmem:[%s4] sm:$0xff]
  %v177 = vlaneseq
  %v178 = vshrl.u32 %v177, 7
  %v179 = vsub.s32 0, %v178
  %v180 = vrot.slane %v175, %v179
  %v181 = vlaneseq
  %v182 = vshrl.u32 %v181, 7
  %v183 = vsub.s32 1, %v182
  %v184 = vrot.slane %v175, %v183
  %v185 = vlaneseq
  %v186 = vshrl.u32 %v185, 7
  %v187 = vsub.s32 2, %v186
  %v188 = vrot.slane %v175, %v187
  %v189 = vlaneseq
  %v190 = vshrl.u32 %v189, 7
  %v191 = vsub.s32 3, %v190
  %v192 = vrot.slane %v175, %v191
  %v193 = vlaneseq
  %v194 = vshrl.u32 %v193, 7
  %v195 = vsub.s32 4, %v194
  %v196 = vrot.slane %v175, %v195
  %v197 = vlaneseq
  %v198 = vshrl.u32 %v197, 7
  %v199 = vsub.s32 5, %v198
  %v200 = vrot.slane %v175, %v199
  %v201 = vlaneseq
  %v202 = vshrl.u32 %v201, 7
  %v203 = vsub.s32 6, %v202
  %v204 = vrot.slane %v175, %v203
  %v205 = vlaneseq
  %v206 = vshrl.u32 %v205, 7
  %v207 = vsub.s32 7, %v206
  %v208 = vrot.slane %v175, %v207
  %vm217 = vcmask 523264
  %v219 = vsel %vm217, %v142, 0
  %221 = vmatprep.subr.bf16.mxu0 %v144
  %222 = vmatpush1.bf16.msra.mxu0 %v143
  %223 = vmatprep.subr.bf16.mxu0 %v152
  %224 = vmatpush1.bf16.msra.mxu0 %v151
  %225 = vmatprep.subr.bf16.mxu0 %v160
  %226 = vmatpush1.bf16.msra.mxu0 %v159
  %227 = vmatprep.subr.bf16.mxu0 %v168
  %228 = vmatpush1.bf16.msra.mxu0 %v167
  %229 = vmatprep.subr.bf16.mxu0 0
  %230 = vmatpush1.bf16.msra.mxu0 0
  %231 = vmatprep.subr.bf16.mxu0 0
  %232 = vmatpush1.bf16.msra.mxu0 0
  %233 = vmatprep.subr.bf16.mxu0 0
  %234 = vmatpush1.bf16.msra.mxu0 0
  %235 = vmatprep.subr.bf16.mxu0 0
  %236 = vmatpush1.bf16.msra.mxu0 0
  %237 = vmatprep.subr.bf16.mxu0 0
  %238 = vmatpush1.bf16.msra.mxu0 0
  %239 = vmatprep.subr.bf16.mxu0 0
  %240 = vmatpush1.bf16.msra.mxu0 0
  %241 = vmatprep.subr.bf16.mxu0 0
  %242 = vmatpush1.bf16.msra.mxu0 0
  %243 = vmatprep.subr.bf16.mxu0 0
  %244 = vmatpush1.bf16.msra.mxu0 0
  %245 = vmatprep.subr.bf16.mxu0 0
  %246 = vmatpush1.bf16.msra.mxu0 0
  %247 = vmatprep.subr.bf16.mxu0 0
  %248 = vmatpush1.bf16.msra.mxu0 0
  %249 = vmatprep.subr.bf16.mxu0 0
  %250 = vmatpush1.bf16.msra.mxu0 0
  %251 = vmatprep.subr.bf16.mxu0 0
  %252 = vmatpush1.bf16.msra.mxu0 0
  %253 = vmatprep.mubr.bf16.mxu0 0
  %254 = vmatmul.mubr.bf16.gmra.mrb[0].mxu0 %v219
  %v255 = vpop.f32.mrb[0].mxu0
  %v256 = vadd.f32 %v180, %v255
  %v257 = vpop.f32.mrb[0].mxu0
  %v258 = vadd.f32 %v184, %v257
  %v259 = vpop.f32.mrb[0].mxu0
  %v260 = vpop.f32.mrb[0].mxu0
  %261 = vdwg.mxu0
  %262 = vmatprep.subr.bf16.mxu0 %v146
  %263 = vmatpush1.bf16.msra.mxu0 %v145
  %264 = vmatprep.subr.bf16.mxu0 %v154
  %265 = vmatpush1.bf16.msra.mxu0 %v153
  %266 = vmatprep.subr.bf16.mxu0 %v162
  %267 = vmatpush1.bf16.msra.mxu0 %v161
  %268 = vmatprep.subr.bf16.mxu0 %v170
  %269 = vmatpush1.bf16.msra.mxu0 %v169
  %270 = vmatprep.subr.bf16.mxu0 0
  %271 = vmatpush1.bf16.msra.mxu0 0
  %272 = vmatprep.subr.bf16.mxu0 0
  %273 = vmatpush1.bf16.msra.mxu0 0
  %274 = vmatprep.subr.bf16.mxu0 0
  %275 = vmatpush1.bf16.msra.mxu0 0
  %276 = vmatprep.subr.bf16.mxu0 0
  %277 = vmatpush1.bf16.msra.mxu0 0
  %278 = vmatprep.subr.bf16.mxu0 0
  %279 = vmatpush1.bf16.msra.mxu0 0
  %280 = vmatprep.subr.bf16.mxu0 0
  %281 = vmatpush1.bf16.msra.mxu0 0
  %282 = vmatprep.subr.bf16.mxu0 0
  %283 = vmatpush1.bf16.msra.mxu0 0
  %284 = vmatprep.subr.bf16.mxu0 0
  %285 = vmatpush1.bf16.msra.mxu0 0
  %286 = vmatprep.subr.bf16.mxu0 0
  %287 = vmatpush1.bf16.msra.mxu0 0
  %288 = vmatprep.subr.bf16.mxu0 0
  %289 = vmatpush1.bf16.msra.mxu0 0
  %290 = vmatprep.subr.bf16.mxu0 0
  %291 = vmatpush1.bf16.msra.mxu0 0
  %292 = vmatprep.subr.bf16.mxu0 0
  %293 = vmatpush1.bf16.msra.mxu0 0
  %294 = vmatprep.mubr.bf16.mxu0 0
  %295 = vmatmul.mubr.bf16.gmra.mrb[0].mxu0 %v219
  %v296 = vpop.f32.mrb[0].mxu0
  %v297 = vadd.f32 %v188, %v296
  %v298 = vpop.f32.mrb[0].mxu0
  %v299 = vadd.f32 %v192, %v298
  %v300 = vpop.f32.mrb[0].mxu0
  %v301 = vpop.f32.mrb[0].mxu0
  %302 = vdwg.mxu0
  %303 = vmatprep.subr.bf16.mxu0 %v148
  %304 = vmatpush1.bf16.msra.mxu0 %v147
  %305 = vmatprep.subr.bf16.mxu0 %v156
  %306 = vmatpush1.bf16.msra.mxu0 %v155
  %307 = vmatprep.subr.bf16.mxu0 %v164
  %308 = vmatpush1.bf16.msra.mxu0 %v163
  %309 = vmatprep.subr.bf16.mxu0 %v172
  %310 = vmatpush1.bf16.msra.mxu0 %v171
  %311 = vmatprep.subr.bf16.mxu0 0
  %312 = vmatpush1.bf16.msra.mxu0 0
  %313 = vmatprep.subr.bf16.mxu0 0
  %314 = vmatpush1.bf16.msra.mxu0 0
  %315 = vmatprep.subr.bf16.mxu0 0
  %316 = vmatpush1.bf16.msra.mxu0 0
  %317 = vmatprep.subr.bf16.mxu0 0
  %318 = vmatpush1.bf16.msra.mxu0 0
  %319 = vmatprep.subr.bf16.mxu0 0
  %320 = vmatpush1.bf16.msra.mxu0 0
  %321 = vmatprep.subr.bf16.mxu0 0
  %322 = vmatpush1.bf16.msra.mxu0 0
  %323 = vmatprep.subr.bf16.mxu0 0
  %324 = vmatpush1.bf16.msra.mxu0 0
  %325 = vmatprep.subr.bf16.mxu0 0
  %326 = vmatpush1.bf16.msra.mxu0 0
  %327 = vmatprep.subr.bf16.mxu0 0
  %328 = vmatpush1.bf16.msra.mxu0 0
  %329 = vmatprep.subr.bf16.mxu0 0
  %330 = vmatpush1.bf16.msra.mxu0 0
  %331 = vmatprep.subr.bf16.mxu0 0
  %332 = vmatpush1.bf16.msra.mxu0 0
  %333 = vmatprep.subr.bf16.mxu0 0
  %334 = vmatpush1.bf16.msra.mxu0 0
  %335 = vmatprep.mubr.bf16.mxu0 0
  %336 = vmatmul.mubr.bf16.gmra.mrb[0].mxu0 %v219
  %v337 = vpop.f32.mrb[0].mxu0
  %v338 = vadd.f32 %v196, %v337
  %v339 = vpop.f32.mrb[0].mxu0
  %v340 = vadd.f32 %v200, %v339
  %v341 = vpop.f32.mrb[0].mxu0
  %v342 = vpop.f32.mrb[0].mxu0
  %343 = vdwg.mxu0
  %344 = vmatprep.subr.bf16.mxu0 %v150
  %345 = vmatpush1.bf16.msra.mxu0 %v149
  %346 = vmatprep.subr.bf16.mxu0 %v158
  %347 = vmatpush1.bf16.msra.mxu0 %v157
  %348 = vmatprep.subr.bf16.mxu0 %v166
  %349 = vmatpush1.bf16.msra.mxu0 %v165
  %350 = vmatprep.subr.bf16.mxu0 %v174
  %351 = vmatpush1.bf16.msra.mxu0 %v173
  %352 = vmatprep.subr.bf16.mxu0 0
  %353 = vmatpush1.bf16.msra.mxu0 0
  %354 = vmatprep.subr.bf16.mxu0 0
  %355 = vmatpush1.bf16.msra.mxu0 0
  %356 = vmatprep.subr.bf16.mxu0 0
  %357 = vmatpush1.bf16.msra.mxu0 0
  %358 = vmatprep.subr.bf16.mxu0 0
  %359 = vmatpush1.bf16.msra.mxu0 0
  %360 = vmatprep.subr.bf16.mxu0 0
  %361 = vmatpush1.bf16.msra.mxu0 0
  %362 = vmatprep.subr.bf16.mxu0 0
  %363 = vmatpush1.bf16.msra.mxu0 0
  %364 = vmatprep.subr.bf16.mxu0 0
  %365 = vmatpush1.bf16.msra.mxu0 0
  %366 = vmatprep.subr.bf16.mxu0 0
  %367 = vmatpush1.bf16.msra.mxu0 0
  %368 = vmatprep.subr.bf16.mxu0 0
  %369 = vmatpush1.bf16.msra.mxu0 0
  %370 = vmatprep.subr.bf16.mxu0 0
  %371 = vmatpush1.bf16.msra.mxu0 0
  %372 = vmatprep.subr.bf16.mxu0 0
  %373 = vmatpush1.bf16.msra.mxu0 0
  %374 = vmatprep.subr.bf16.mxu0 0
  %375 = vmatpush1.bf16.msra.mxu0 0
  %376 = vmatprep.mubr.bf16.mxu0 0
  %377 = vmatmul.mubr.bf16.gmra.mrb[0].mxu0 %v219
  %v378 = vpop.f32.mrb[0].mxu0
  %v379 = vadd.f32 %v204, %v378
  %v380 = vpop.f32.mrb[0].mxu0
  %v381 = vadd.f32 %v208, %v380
  %v382 = vpop.f32.mrb[0].mxu0
  %v383 = vpop.f32.mrb[0].mxu0
  %384 = vdwg.mxu0
  %v393 = vcombine.low %v256, %v258
  %v394 = vcombine.low %v297, %v299
  %v396 = vunpack.c.l.s4 1983009808
  %v397 = vunpack.c.0.s8 %v396
  %v398 = vlaneseq
  %v399 = vshrl.u32 %v398, 7
  %v400 = vsub.s32 %v397, %v399
  %v401 = vrot.slane %v393, %v400
  %v403 = vunpack.c.l.s4 1983009808
  %v404 = vunpack.c.0.s8 %v403
  %v405 = vlaneseq
  %v406 = vshrl.u32 %v405, 7
  %v407 = vsub.s32 %v404, %v406
  %v408 = vrot.slane %v394, %v407
  %v409 = vcombine.low %v401, %v408
  %v410 = vcombine.low %v338, %v340
  %v411 = vcombine.low %v379, %v381
  %v413 = vunpack.c.l.s4 1983009808
  %v414 = vunpack.c.0.s8 %v413
  %v415 = vlaneseq
  %v416 = vshrl.u32 %v415, 7
  %v417 = vsub.s32 %v414, %v416
  %v418 = vrot.slane %v410, %v417
  %v420 = vunpack.c.l.s4 1983009808
  %v421 = vunpack.c.0.s8 %v420
  %v422 = vlaneseq
  %v423 = vshrl.u32 %v422, 7
  %v424 = vsub.s32 %v421, %v423
  %v425 = vrot.slane %v411, %v424
  %v426 = vcombine.low %v418, %v425
  %429 = vst [vmem:[%s5] sm:$0xff] %v409
  %430 = vst [vmem:[%s5 + $0x8] sm:$0xff] %v426
  // Predicated region
  $region22: #{task_aware_sam_forward.2} parent=0 // pred_check
    _
  $region23: #{task_aware_sam_forward.2} parent=0 // pred_check_branch
    %432 = sbr.rel (0) target = $region25
  $region24: #{task_aware_sam_forward.2} parent=0 // pred_region
    _
  $region25: #{task_aware_sam_forward.2} parent=0 // pred_fallthru
    _
  // Predicated region
  $region26: #{task_aware_sam_forward.2} parent=0 // pred_check
    _
  $region27: #{task_aware_sam_forward.2} parent=0 // pred_check_branch
    %434 = sbr.rel (0) target = $region29
  $region28: #{task_aware_sam_forward.2} parent=0 // pred_region
    _
  $region29: #{task_aware_sam_forward.2} parent=0 // pred_fallthru
    _

// kernel: task_aware_sam_forward.3
$region0: #{task_aware_sam_forward.3}
  #allocation0 [shape = 'u32[]', space=smem, size = 0x4, offset = 0x4, fixed_abs, tag = 'smem constant byte address 0x4 - core index']
  #allocation1 [shape = 'u32[144,128]{1,0:T(1,128)}', space=vmem, size = 0x12000, scoped, tag = 'internal scratch']
  %s0 = inlined_call_operand.vmem [shape: f32[2,64,64], index: 0, kind: input, shape index: {}]
  %s1 = inlined_call_operand.vmem [shape: f32[2,7,32], index: 1, kind: input, shape index: {}]
  %s2 = inlined_call_operand.vmem [shape: f32[2,4,32,4], index: 2, kind: input, shape index: {}]
  %s3 = inlined_call_operand.vmem [shape: f32[2,4,4,32], index: 3, kind: input, shape index: {}]
  %s4 = inlined_call_operand.vmem [shape: f32[64,32], index: 4, kind: input, shape index: {}]
  %s5 = inlined_call_operand.vmem [shape: f32[64,32], index: 5, kind: input, shape index: {}]
  %s6 = inlined_call_operand.vmem [shape: f32[10,32,32], index: 6, kind: input, shape index: {}]
  %s7 = inlined_call_operand.vmem [shape: f32[19,32], index: 7, kind: input, shape index: {}]
  %s8 = inlined_call_operand.vmem [shape: f32[32,64], index: 8, kind: input, shape index: {}]
  %s9 = inlined_call_operand.vmem [shape: f32[1,64], index: 9, kind: input, shape index: {}]
  %s10 = inlined_call_operand.vmem [shape: f32[64,32], index: 10, kind: input, shape index: {}]
  %s11 = inlined_call_operand.vmem [shape: f32[32,64], index: 11, kind: input, shape index: {}]
  %s12 = inlined_call_operand.vmem [shape: f32[1,64], index: 12, kind: input, shape index: {}]
  %s13 = inlined_call_operand.vmem [shape: f32[4,64], index: 13, kind: input, shape index: {}]
  %s14 = inlined_call_operand.vmem [shape: f32[64,16], index: 14, kind: input, shape index: {}]
  %s15 = inlined_call_operand.vmem [shape: f32[32,4], index: 15, kind: input, shape index: {}]
  %s16 = inlined_call_operand.vmem [shape: f32[1,4], index: 16, kind: input, shape index: {}]
  %s17 = inlined_call_operand.vmem [shape: f32[32,4], index: 17, kind: input, shape index: {}]
  %s18 = inlined_call_operand.vmem [shape: f32[1,4], index: 18, kind: input, shape index: {}]
  %s19 = inlined_call_operand.vmem [shape: f32[2,64,16], index: 19, kind: output, shape index: {0}]
  %s20 = inlined_call_operand.vmem [shape: f32[2,1,4], index: 20, kind: output, shape index: {1}]
  %21 = xla_tuple %s19, %s20
  %s22 = sld [smem:[#allocation0]]
  $region117: #{task_aware_sam_forward.3} parent=0
    _
  %s24 = ssub.s32 1, %s22
  %s25 = scalar_select 0, %s24, %s22
  loop: start=0, step=1, limit=4
  $region2: #{task_aware_sam_forward.3} parent=0 // loop_pre_header
    _
  $region3: #{task_aware_sam_forward.3} parent=0 // loop_header
    %s27 = sphi 0, %s31
    %p28 = scmp.ge.s32.totalorder %s27, 4
    %s37 = sphi 0, %s39
    %s40 = sphi 0, %s37
    %s41 = sphi 0, %s40
    %s57 = sphi 0, %s41
    %s63 = sphi 0, %s65
    %s66 = sphi 0, %s63
    %s67 = sphi 0, %s66
    %s83 = sphi 0, %s67
    %s89 = sphi 0, %s91
    %s92 = sphi 0, %s89
    %s93 = sphi 0, %s92
    %s109 = sphi 0, %s93
    %s115 = sphi 0, %s117
    %s118 = sphi 0, %s115
    %s119 = sphi 0, %s118
    %s135 = sphi 0, %s119
    %s139 = sphi 0, %s139
    %s141 = sphi 0, %s139
    %s142 = sphi 0, %s141
    %s156 = sphi 0, %s142
    %s160 = sphi 0, %s160
    %s162 = sphi 0, %s160
    %s163 = sphi 0, %s162
    %s177 = sphi 0, %s163
    %s181 = sphi 0, %s181
    %s183 = sphi 0, %s181
    %s184 = sphi 0, %s183
    %s198 = sphi 0, %s184
    %s202 = sphi 0, %s202
    %s204 = sphi 0, %s202
    %s205 = sphi 0, %s204
    %s219 = sphi 0, %s205
    %s223 = sphi 0, %s223
    %s225 = sphi 0, %s223
    %s226 = sphi 0, %s225
    %s240 = sphi 0, %s226
    %s244 = sphi 0, %s244
    %s246 = sphi 0, %s244
    %s247 = sphi 0, %s246
    %s261 = sphi 0, %s247
    %s265 = sphi 0, %s265
    %s267 = sphi 0, %s265
    %s268 = sphi 0, %s267
    %s282 = sphi 0, %s268
    %s286 = sphi 0, %s286
    %s288 = sphi 0, %s286
    %s289 = sphi 0, %s288
    %s303 = sphi 0, %s289
    %s307 = sphi 0, %s307
    %s309 = sphi 0, %s307
    %s310 = sphi 0, %s309
    %s324 = sphi 0, %s310
    %s328 = sphi 0, %s328
    %s330 = sphi 0, %s328
    %s331 = sphi 0, %s330
    %s345 = sphi 0, %s331
    %s349 = sphi 0, %s349
    %s351 = sphi 0, %s349
    %s352 = sphi 0, %s351
    %s366 = sphi 0, %s352
    %s370 = sphi 0, %s370
    %s372 = sphi 0, %s370
    %s373 = sphi 0, %s372
    %s387 = sphi 0, %s373
    %s391 = sphi 0, %s391
    %s393 = sphi 0, %s391
    %s394 = sphi 0, %s393
    %s408 = sphi 0, %s394
    %s412 = sphi 0, %s412
    %s414 = sphi 0, %s412
    %s415 = sphi 0, %s414
    %s429 = sphi 0, %s415
    %s433 = sphi 0, %s433
    %s435 = sphi 0, %s433
    %s436 = sphi 0, %s435
    %s450 = sphi 0, %s436
    %s456 = sphi 0, %s458
    %s459 = sphi 0, %s456
    %s460 = sphi 0, %s459
    %s476 = sphi 0, %s460
    %s482 = sphi 0, %s484
    %s485 = sphi 0, %s482
    %s486 = sphi 0, %s485
    %s502 = sphi 0, %s486
  $region4: #{task_aware_sam_forward.3} parent=0 // loop_header_branch
    %30 = sbr.rel (%p28) target = $region8
  $region5: #{task_aware_sam_forward.3} parent=0 // loop_body
    %s32 = ssub.s32 %s27, 1
    %s33 = ssub.s32 %s27, 2
    %s34 = sadd.s32 %s27, 1
    %s35 = ssub.s32 %s27, %s34
    %p36 = scmp.eq.s32.totalorder %s35, 0
    %s38 = sadd.s32 %s37, 1
    %s39 = scalar_select %p36, %s37, %s38
    %p42 = pneg %p36
    %p43 = scmp.eq.s32.totalorder %s27, 1
    %p44 = por %p42, %p43
    %p45 = scmp.ne.s32.totalorder %s37, %s40
    %p46 = scmp.eq.s32.totalorder %s27, 0
    %p47 = por %p45, %p46
    %p48 = scmp.ne.s32.totalorder %s37, %s40
    %p49 = scmp.eq.s32.totalorder %s32, 1
    %p50 = por %p48, %p49
    %p51 = scmp.ne.s32.totalorder %s40, %s41
    %p52 = scmp.eq.s32.totalorder %s32, 0
    %p53 = por %p51, %p52
    %p54 = scmp.ne.s32.totalorder %s40, %s41
    %p55 = scmp.eq.s32.totalorder %s33, 1
    %p56 = por %p54, %p55
    %p58 = scmp.ne.s32.totalorder %s41, %s57
    %p59 = scmp.eq.s32.totalorder %s33, 0
    %p60 = por %p58, %p59
    %s61 = ssub.s32 %s27, %s34
    %p62 = scmp.eq.s32.totalorder %s61, 0
    %s64 = sadd.s32 %s63, 1
    %s65 = scalar_select %p62, %s63, %s64
    %p68 = pneg %p62
    %p69 = scmp.eq.s32.totalorder %s27, 1
    %p70 = por %p68, %p69
    %p71 = scmp.ne.s32.totalorder %s63, %s66
    %p72 = scmp.eq.s32.totalorder %s27, 0
    %p73 = por %p71, %p72
    %p74 = scmp.ne.s32.totalorder %s63, %s66
    %p75 = scmp.eq.s32.totalorder %s32, 1
    %p76 = por %p74, %p75
    %p77 = scmp.ne.s32.totalorder %s66, %s67
    %p78 = scmp.eq.s32.totalorder %s32, 0
    %p79 = por %p77, %p78
    %p80 = scmp.ne.s32.totalorder %s66, %s67
    %p81 = scmp.eq.s32.totalorder %s33, 1
    %p82 = por %p80, %p81
    %p84 = scmp.ne.s32.totalorder %s67, %s83
    %p85 = scmp.eq.s32.totalorder %s33, 0
    %p86 = por %p84, %p85
    %s87 = ssub.s32 %s27, %s34
    %p88 = scmp.eq.s32.totalorder %s87, 0
    %s90 = sadd.s32 %s89, 1
    %s91 = scalar_select %p88, %s89, %s90
    %p94 = pneg %p88
    %p95 = scmp.eq.s32.totalorder %s27, 1
    %p96 = por %p94, %p95
    %p97 = scmp.ne.s32.totalorder %s89, %s92
    %p98 = scmp.eq.s32.totalorder %s27, 0
    %p99 = por %p97, %p98
    %p100 = scmp.ne.s32.totalorder %s89, %s92
    %p101 = scmp.eq.s32.totalorder %s32, 1
    %p102 = por %p100, %p101
    %p103 = scmp.ne.s32.totalorder %s92, %s93
    %p104 = scmp.eq.s32.totalorder %s32, 0
    %p105 = por %p103, %p104
    %p106 = scmp.ne.s32.totalorder %s92, %s93
    %p107 = scmp.eq.s32.totalorder %s33, 1
    %p108 = por %p106, %p107
    %p110 = scmp.ne.s32.totalorder %s93, %s109
    %p111 = scmp.eq.s32.totalorder %s33, 0
    %p112 = por %p110, %p111
    %s113 = ssub.s32 %s27, %s34
    %p114 = scmp.eq.s32.totalorder %s113, 0
    %s116 = sadd.s32 %s115, 1
    %s117 = scalar_select %p114, %s115, %s116
    %p120 = pneg %p114
    %p121 = scmp.eq.s32.totalorder %s27, 1
    %p122 = por %p120, %p121
    %p123 = scmp.ne.s32.totalorder %s115, %s118
    %p124 = scmp.eq.s32.totalorder %s27, 0
    %p125 = por %p123, %p124
    %p126 = scmp.ne.s32.totalorder %s115, %s118
    %p127 = scmp.eq.s32.totalorder %s32, 1
    %p128 = por %p126, %p127
    %p129 = scmp.ne.s32.totalorder %s118, %s119
    %p130 = scmp.eq.s32.totalorder %s32, 0
    %p131 = por %p129, %p130
    %p132 = scmp.ne.s32.totalorder %s118, %s119
    %p133 = scmp.eq.s32.totalorder %s33, 1
    %p134 = por %p132, %p133
    %p136 = scmp.ne.s32.totalorder %s119, %s135
    %p137 = scmp.eq.s32.totalorder %s33, 0
    %p138 = por %p136, %p137
    %s140 = sadd.s32 %s139, 1
    %p143 = scmp.eq.s32.totalorder %s27, 1
    %p144 = scmp.ne.s32.totalorder %s139, %s141
    %p145 = scmp.eq.s32.totalorder %s27, 0
    %p146 = por %p144, %p145
    %p147 = scmp.ne.s32.totalorder %s139, %s141
    %p148 = scmp.eq.s32.totalorder %s32, 1
    %p149 = por %p147, %p148
    %p150 = scmp.ne.s32.totalorder %s141, %s142
    %p151 = scmp.eq.s32.totalorder %s32, 0
    %p152 = por %p150, %p151
    %p153 = scmp.ne.s32.totalorder %s141, %s142
    %p154 = scmp.eq.s32.totalorder %s33, 1
    %p155 = por %p153, %p154
    %p157 = scmp.ne.s32.totalorder %s142, %s156
    %p158 = scmp.eq.s32.totalorder %s33, 0
    %p159 = por %p157, %p158
    %s161 = sadd.s32 %s160, 1
    %p164 = scmp.eq.s32.totalorder %s27, 1
    %p165 = scmp.ne.s32.totalorder %s160, %s162
    %p166 = scmp.eq.s32.totalorder %s27, 0
    %p167 = por %p165, %p166
    %p168 = scmp.ne.s32.totalorder %s160, %s162
    %p169 = scmp.eq.s32.totalorder %s32, 1
    %p170 = por %p168, %p169
    %p171 = scmp.ne.s32.totalorder %s162, %s163
    %p172 = scmp.eq.s32.totalorder %s32, 0
    %p173 = por %p171, %p172
    %p174 = scmp.ne.s32.totalorder %s162, %s163
    %p175 = scmp.eq.s32.totalorder %s33, 1
    %p176 = por %p174, %p175
    %p178 = scmp.ne.s32.totalorder %s163, %s177
    %p179 = scmp.eq.s32.totalorder %s33, 0
    %p180 = por %p178, %p179
    %s182 = sadd.s32 %s181, 1
    %p185 = scmp.eq.s32.totalorder %s27, 1
    %p186 = scmp.ne.s32.totalorder %s181, %s183
    %p187 = scmp.eq.s32.totalorder %s27, 0
    %p188 = por %p186, %p187
    %p189 = scmp.ne.s32.totalorder %s181, %s183
    %p190 = scmp.eq.s32.totalorder %s32, 1
    %p191 = por %p189, %p190
    %p192 = scmp.ne.s32.totalorder %s183, %s184
    %p193 = scmp.eq.s32.totalorder %s32, 0
    %p194 = por %p192, %p193
    %p195 = scmp.ne.s32.totalorder %s183, %s184
    %p196 = scmp.eq.s32.totalorder %s33, 1
    %p197 = por %p195, %p196
    %p199 = scmp.ne.s32.totalorder %s184, %s198
    %p200 = scmp.eq.s32.totalorder %s33, 0
    %p201 = por %p199, %p200
    %s203 = sadd.s32 %s202, 1
    %p206 = scmp.eq.s32.totalorder %s27, 1
    %p207 = scmp.ne.s32.totalorder %s202, %s204
    %p208 = scmp.eq.s32.totalorder %s27, 0
    %p209 = por %p207, %p208
    %p210 = scmp.ne.s32.totalorder %s202, %s204
    %p211 = scmp.eq.s32.totalorder %s32, 1
    %p212 = por %p210, %p211
    %p213 = scmp.ne.s32.totalorder %s204, %s205
    %p214 = scmp.eq.s32.totalorder %s32, 0
    %p215 = por %p213, %p214
    %p216 = scmp.ne.s32.totalorder %s204, %s205
    %p217 = scmp.eq.s32.totalorder %s33, 1
    %p218 = por %p216, %p217
    %p220 = scmp.ne.s32.totalorder %s205, %s219
    %p221 = scmp.eq.s32.totalorder %s33, 0
    %p222 = por %p220, %p221
    %s224 = sadd.s32 %s223, 1
    %p227 = scmp.eq.s32.totalorder %s27, 1
    %p228 = scmp.ne.s32.totalorder %s223, %s225
    %p229 = scmp.eq.s32.totalorder %s27, 0
    %p230 = por %p228, %p229
    %p231 = scmp.ne.s32.totalorder %s223, %s225
    %p232 = scmp.eq.s32.totalorder %s32, 1
    %p233 = por %p231, %p232
    %p234 = scmp.ne.s32.totalorder %s225, %s226
    %p235 = scmp.eq.s32.totalorder %s32, 0
    %p236 = por %p234, %p235
    %p237 = scmp.ne.s32.totalorder %s225, %s226
    %p238 = scmp.eq.s32.totalorder %s33, 1
    %p239 = por %p237, %p238
    %p241 = scmp.ne.s32.totalorder %s226, %s240
    %p242 = scmp.eq.s32.totalorder %s33, 0
    %p243 = por %p241, %p242
    %s245 = sadd.s32 %s244, 1
    %p248 = scmp.eq.s32.totalorder %s27, 1
    %p249 = scmp.ne.s32.totalorder %s244, %s246
    %p250 = scmp.eq.s32.totalorder %s27, 0
    %p251 = por %p249, %p250
    %p252 = scmp.ne.s32.totalorder %s244, %s246
    %p253 = scmp.eq.s32.totalorder %s32, 1
    %p254 = por %p252, %p253
    %p255 = scmp.ne.s32.totalorder %s246, %s247
    %p256 = scmp.eq.s32.totalorder %s32, 0
    %p257 = por %p255, %p256
    %p258 = scmp.ne.s32.totalorder %s246, %s247
    %p259 = scmp.eq.s32.totalorder %s33, 1
    %p260 = por %p258, %p259
    %p262 = scmp.ne.s32.totalorder %s247, %s261
    %p263 = scmp.eq.s32.totalorder %s33, 0
    %p264 = por %p262, %p263
    %s266 = sadd.s32 %s265, 1
    %p269 = scmp.eq.s32.totalorder %s27, 1
    %p270 = scmp.ne.s32.totalorder %s265, %s267
    %p271 = scmp.eq.s32.totalorder %s27, 0
    %p272 = por %p270, %p271
    %p273 = scmp.ne.s32.totalorder %s265, %s267
    %p274 = scmp.eq.s32.totalorder %s32, 1
    %p275 = por %p273, %p274
    %p276 = scmp.ne.s32.totalorder %s267, %s268
    %p277 = scmp.eq.s32.totalorder %s32, 0
    %p278 = por %p276, %p277
    %p279 = scmp.ne.s32.totalorder %s267, %s268
    %p280 = scmp.eq.s32.totalorder %s33, 1
    %p281 = por %p279, %p280
    %p283 = scmp.ne.s32.totalorder %s268, %s282
    %p284 = scmp.eq.s32.totalorder %s33, 0
    %p285 = por %p283, %p284
    %s287 = sadd.s32 %s286, 1
    %p290 = scmp.eq.s32.totalorder %s27, 1
    %p291 = scmp.ne.s32.totalorder %s286, %s288
    %p292 = scmp.eq.s32.totalorder %s27, 0
    %p293 = por %p291, %p292
    %p294 = scmp.ne.s32.totalorder %s286, %s288
    %p295 = scmp.eq.s32.totalorder %s32, 1
    %p296 = por %p294, %p295
    %p297 = scmp.ne.s32.totalorder %s288, %s289
    %p298 = scmp.eq.s32.totalorder %s32, 0
    %p299 = por %p297, %p298
    %p300 = scmp.ne.s32.totalorder %s288, %s289
    %p301 = scmp.eq.s32.totalorder %s33, 1
    %p302 = por %p300, %p301
    %p304 = scmp.ne.s32.totalorder %s289, %s303
    %p305 = scmp.eq.s32.totalorder %s33, 0
    %p306 = por %p304, %p305
    %s308 = sadd.s32 %s307, 1
    %p311 = scmp.eq.s32.totalorder %s27, 1
    %p312 = scmp.ne.s32.totalorder %s307, %s309
    %p313 = scmp.eq.s32.totalorder %s27, 0
    %p314 = por %p312, %p313
    %p315 = scmp.ne.s32.totalorder %s307, %s309
    %p316 = scmp.eq.s32.totalorder %s32, 1
    %p317 = por %p315, %p316
    %p318 = scmp.ne.s32.totalorder %s309, %s310
    %p319 = scmp.eq.s32.totalorder %s32, 0
    %p320 = por %p318, %p319
    %p321 = scmp.ne.s32.totalorder %s309, %s310
    %p322 = scmp.eq.s32.totalorder %s33, 1
    %p323 = por %p321, %p322
    %p325 = scmp.ne.s32.totalorder %s310, %s324
    %p326 = scmp.eq.s32.totalorder %s33, 0
    %p327 = por %p325, %p326
    %s329 = sadd.s32 %s328, 1
    %p332 = scmp.eq.s32.totalorder %s27, 1
    %p333 = scmp.ne.s32.totalorder %s328, %s330
    %p334 = scmp.eq.s32.totalorder %s27, 0
    %p335 = por %p333, %p334
    %p336 = scmp.ne.s32.totalorder %s328, %s330
    %p337 = scmp.eq.s32.totalorder %s32, 1
    %p338 = por %p336, %p337
    %p339 = scmp.ne.s32.totalorder %s330, %s331
    %p340 = scmp.eq.s32.totalorder %s32, 0
    %p341 = por %p339, %p340
    %p342 = scmp.ne.s32.totalorder %s330, %s331
    %p343 = scmp.eq.s32.totalorder %s33, 1
    %p344 = por %p342, %p343
    %p346 = scmp.ne.s32.totalorder %s331, %s345
    %p347 = scmp.eq.s32.totalorder %s33, 0
    %p348 = por %p346, %p347
    %s350 = sadd.s32 %s349, 1
    %p353 = scmp.eq.s32.totalorder %s27, 1
    %p354 = scmp.ne.s32.totalorder %s349, %s351
    %p355 = scmp.eq.s32.totalorder %s27, 0
    %p356 = por %p354, %p355
    %p357 = scmp.ne.s32.totalorder %s349, %s351
    %p358 = scmp.eq.s32.totalorder %s32, 1
    %p359 = por %p357, %p358
    %p360 = scmp.ne.s32.totalorder %s351, %s352
    %p361 = scmp.eq.s32.totalorder %s32, 0
    %p362 = por %p360, %p361
    %p363 = scmp.ne.s32.totalorder %s351, %s352
    %p364 = scmp.eq.s32.totalorder %s33, 1
    %p365 = por %p363, %p364
    %p367 = scmp.ne.s32.totalorder %s352, %s366
    %p368 = scmp.eq.s32.totalorder %s33, 0
    %p369 = por %p367, %p368
    %s371 = sadd.s32 %s370, 1
    %p374 = scmp.eq.s32.totalorder %s27, 1
    %p375 = scmp.ne.s32.totalorder %s370, %s372
    %p376 = scmp.eq.s32.totalorder %s27, 0
    %p377 = por %p375, %p376
    %p378 = scmp.ne.s32.totalorder %s370, %s372
    %p379 = scmp.eq.s32.totalorder %s32, 1
    %p380 = por %p378, %p379
    %p381 = scmp.ne.s32.totalorder %s372, %s373
    %p382 = scmp.eq.s32.totalorder %s32, 0
    %p383 = por %p381, %p382
    %p384 = scmp.ne.s32.totalorder %s372, %s373
    %p385 = scmp.eq.s32.totalorder %s33, 1
    %p386 = por %p384, %p385
    %p388 = scmp.ne.s32.totalorder %s373, %s387
    %p389 = scmp.eq.s32.totalorder %s33, 0
    %p390 = por %p388, %p389
    %s392 = sadd.s32 %s391, 1
    %p395 = scmp.eq.s32.totalorder %s27, 1
    %p396 = scmp.ne.s32.totalorder %s391, %s393
    %p397 = scmp.eq.s32.totalorder %s27, 0
    %p398 = por %p396, %p397
    %p399 = scmp.ne.s32.totalorder %s391, %s393
    %p400 = scmp.eq.s32.totalorder %s32, 1
    %p401 = por %p399, %p400
    %p402 = scmp.ne.s32.totalorder %s393, %s394
    %p403 = scmp.eq.s32.totalorder %s32, 0
    %p404 = por %p402, %p403
    %p405 = scmp.ne.s32.totalorder %s393, %s394
    %p406 = scmp.eq.s32.totalorder %s33, 1
    %p407 = por %p405, %p406
    %p409 = scmp.ne.s32.totalorder %s394, %s408
    %p410 = scmp.eq.s32.totalorder %s33, 0
    %p411 = por %p409, %p410
    %s413 = sadd.s32 %s412, 1
    %p416 = scmp.eq.s32.totalorder %s27, 1
    %p417 = scmp.ne.s32.totalorder %s412, %s414
    %p418 = scmp.eq.s32.totalorder %s27, 0
    %p419 = por %p417, %p418
    %p420 = scmp.ne.s32.totalorder %s412, %s414
    %p421 = scmp.eq.s32.totalorder %s32, 1
    %p422 = por %p420, %p421
    %p423 = scmp.ne.s32.totalorder %s414, %s415
    %p424 = scmp.eq.s32.totalorder %s32, 0
    %p425 = por %p423, %p424
    %p426 = scmp.ne.s32.totalorder %s414, %s415
    %p427 = scmp.eq.s32.totalorder %s33, 1
    %p428 = por %p426, %p427
    %p430 = scmp.ne.s32.totalorder %s415, %s429
    %p431 = scmp.eq.s32.totalorder %s33, 0
    %p432 = por %p430, %p431
    %s434 = sadd.s32 %s433, 1
    %p437 = scmp.eq.s32.totalorder %s27, 1
    %p438 = scmp.ne.s32.totalorder %s433, %s435
    %p439 = scmp.eq.s32.totalorder %s27, 0
    %p440 = por %p438, %p439
    %p441 = scmp.ne.s32.totalorder %s433, %s435
    %p442 = scmp.eq.s32.totalorder %s32, 1
    %p443 = por %p441, %p442
    %p444 = scmp.ne.s32.totalorder %s435, %s436
    %p445 = scmp.eq.s32.totalorder %s32, 0
    %p446 = por %p444, %p445
    %p447 = scmp.ne.s32.totalorder %s435, %s436
    %p448 = scmp.eq.s32.totalorder %s33, 1
    %p449 = por %p447, %p448
    %p451 = scmp.ne.s32.totalorder %s436, %s450
    %p452 = scmp.eq.s32.totalorder %s33, 0
    %p453 = por %p451, %p452
    %s454 = ssub.s32 %s27, %s34
    %p455 = scmp.eq.s32.totalorder %s454, 0
    %s457 = sadd.s32 %s456, 1
    %s458 = scalar_select %p455, %s456, %s457
    %p461 = pneg %p455
    %p462 = scmp.eq.s32.totalorder %s27, 1
    %p463 = por %p461, %p462
    %p464 = scmp.ne.s32.totalorder %s456, %s459
    %p465 = scmp.eq.s32.totalorder %s27, 0
    %p466 = por %p464, %p465
    %p467 = scmp.ne.s32.totalorder %s456, %s459
    %p468 = scmp.eq.s32.totalorder %s32, 1
    %p469 = por %p467, %p468
    %p470 = scmp.ne.s32.totalorder %s459, %s460
    %p471 = scmp.eq.s32.totalorder %s32, 0
    %p472 = por %p470, %p471
    %p473 = scmp.ne.s32.totalorder %s459, %s460
    %p474 = scmp.eq.s32.totalorder %s33, 1
    %p475 = por %p473, %p474
    %p477 = scmp.ne.s32.totalorder %s460, %s476
    %p478 = scmp.eq.s32.totalorder %s33, 0
    %p479 = por %p477, %p478
    %s480 = ssub.s32 %s27, %s34
    %p481 = scmp.eq.s32.totalorder %s480, 0
    %s483 = sadd.s32 %s482, 1
    %s484 = scalar_select %p481, %s482, %s483
    %p487 = pneg %p481
    %p488 = scmp.eq.s32.totalorder %s27, 1
    %p489 = por %p487, %p488
    %p490 = scmp.ne.s32.totalorder %s482, %s485
    %p491 = scmp.eq.s32.totalorder %s27, 0
    %p492 = por %p490, %p491
    %p493 = scmp.ne.s32.totalorder %s482, %s485
    %p494 = scmp.eq.s32.totalorder %s32, 1
    %p495 = por %p493, %p494
    %p496 = scmp.ne.s32.totalorder %s485, %s486
    %p497 = scmp.eq.s32.totalorder %s32, 0
    %p498 = por %p496, %p497
    %p499 = scmp.ne.s32.totalorder %s485, %s486
    %p500 = scmp.eq.s32.totalorder %s33, 1
    %p501 = por %p499, %p500
    %p503 = scmp.ne.s32.totalorder %s486, %s502
    %p504 = scmp.eq.s32.totalorder %s33, 0
    %p505 = por %p503, %p504
    %p506 = scmp.le.s32.totalorder 1, %s27
    %p507 = scmp.lt.s32.totalorder %s27, 3
    %p508 = pnand %p506, %p507
    %p509 = pneg %p508
    // Predicated region
    $region9: #{task_aware_sam_forward.3} parent=5 // pred_check
      _
    $region10: #{task_aware_sam_forward.3} parent=5 // pred_check_branch
      %511 = sbr.rel (%p508) target = $region12
    $region11: #{task_aware_sam_forward.3} parent=5 // pred_region
      %s512 = ssub.s32 %s27, 1
      // Predicated region
      $region13: #{task_aware_sam_forward.3} parent=11 // pred_check
        %p513 = pneg %p152
      $region14: #{task_aware_sam_forward.3} parent=11 // pred_check_branch
        %515 = sbr.rel (%p513) target = $region16
      $region15: #{task_aware_sam_forward.3} parent=11 // pred_region
        _
      $region16: #{task_aware_sam_forward.3} parent=11 // pred_fallthru
        _
      // Predicated region
      $region17: #{task_aware_sam_forward.3} parent=11 // pred_check
        %p516 = pneg %p173
      $region18: #{task_aware_sam_forward.3} parent=11 // pred_check_branch
        %518 = sbr.rel (%p516) target = $region20
      $region19: #{task_aware_sam_forward.3} parent=11 // pred_region
        _
      $region20: #{task_aware_sam_forward.3} parent=11 // pred_fallthru
        _
      // Predicated region
      $region21: #{task_aware_sam_forward.3} parent=11 // pred_check
        %p519 = pneg %p194
      $region22: #{task_aware_sam_forward.3} parent=11 // pred_check_branch
        %521 = sbr.rel (%p519) target = $region24
      $region23: #{task_aware_sam_forward.3} parent=11 // pred_region
        _
      $region24: #{task_aware_sam_forward.3} parent=11 // pred_fallthru
        _
      // Predicated region
      $region25: #{task_aware_sam_forward.3} parent=11 // pred_check
        %p522 = pneg %p215
      $region26: #{task_aware_sam_forward.3} parent=11 // pred_check_branch
        %524 = sbr.rel (%p522) target = $region28
      $region27: #{task_aware_sam_forward.3} parent=11 // pred_region
        _
      $region28: #{task_aware_sam_forward.3} parent=11 // pred_fallthru
        _
      // Predicated region
      $region29: #{task_aware_sam_forward.3} parent=11 // pred_check
        %p525 = pneg %p236
      $region30: #{task_aware_sam_forward.3} parent=11 // pred_check_branch
        %527 = sbr.rel (%p525) target = $region32
      $region31: #{task_aware_sam_forward.3} parent=11 // pred_region
        _
      $region32: #{task_aware_sam_forward.3} parent=11 // pred_fallthru
        _
      // Predicated region
      $region33: #{task_aware_sam_forward.3} parent=11 // pred_check
        %p528 = pneg %p257
      $region34: #{task_aware_sam_forward.3} parent=11 // pred_check_branch
        %530 = sbr.rel (%p528) target = $region36
      $region35: #{task_aware_sam_forward.3} parent=11 // pred_region
        _
      $region36: #{task_aware_sam_forward.3} parent=11 // pred_fallthru
        _
      // Predicated region
      $region37: #{task_aware_sam_forward.3} parent=11 // pred_check
        %p531 = pneg %p278
      $region38: #{task_aware_sam_forward.3} parent=11 // pred_check_branch
        %533 = sbr.rel (%p531) target = $region40
      $region39: #{task_aware_sam_forward.3} parent=11 // pred_region
        _
      $region40: #{task_aware_sam_forward.3} parent=11 // pred_fallthru
        _
      // Predicated region
      $region41: #{task_aware_sam_forward.3} parent=11 // pred_check
        %p534 = pneg %p299
      $region42: #{task_aware_sam_forward.3} parent=11 // pred_check_branch
        %536 = sbr.rel (%p534) target = $region44
      $region43: #{task_aware_sam_forward.3} parent=11 // pred_region
        _
      $region44: #{task_aware_sam_forward.3} parent=11 // pred_fallthru
        _
      // Predicated region
      $region45: #{task_aware_sam_forward.3} parent=11 // pred_check
        %p537 = pneg %p320
      $region46: #{task_aware_sam_forward.3} parent=11 // pred_check_branch
        %539 = sbr.rel (%p537) target = $region48
      $region47: #{task_aware_sam_forward.3} parent=11 // pred_region
        _
      $region48: #{task_aware_sam_forward.3} parent=11 // pred_fallthru
        _
      // Predicated region
      $region49: #{task_aware_sam_forward.3} parent=11 // pred_check
        %p540 = pneg %p341
      $region50: #{task_aware_sam_forward.3} parent=11 // pred_check_branch
        %542 = sbr.rel (%p540) target = $region52
      $region51: #{task_aware_sam_forward.3} parent=11 // pred_region
        _
      $region52: #{task_aware_sam_forward.3} parent=11 // pred_fallthru
        _
      // Predicated region
      $region53: #{task_aware_sam_forward.3} parent=11 // pred_check
        %p543 = pneg %p362
      $region54: #{task_aware_sam_forward.3} parent=11 // pred_check_branch
        %545 = sbr.rel (%p543) target = $region56
      $region55: #{task_aware_sam_forward.3} parent=11 // pred_region
        _
      $region56: #{task_aware_sam_forward.3} parent=11 // pred_fallthru
        _
      // Predicated region
      $region57: #{task_aware_sam_forward.3} parent=11 // pred_check
        %p546 = pneg %p383
      $region58: #{task_aware_sam_forward.3} parent=11 // pred_check_branch
        %548 = sbr.rel (%p546) target = $region60
      $region59: #{task_aware_sam_forward.3} parent=11 // pred_region
        _
      $region60: #{task_aware_sam_forward.3} parent=11 // pred_fallthru
        _
      // Predicated region
      $region61: #{task_aware_sam_forward.3} parent=11 // pred_check
        %p549 = pneg %p404
      $region62: #{task_aware_sam_forward.3} parent=11 // pred_check_branch
        %551 = sbr.rel (%p549) target = $region64
      $region63: #{task_aware_sam_forward.3} parent=11 // pred_region
        _
      $region64: #{task_aware_sam_forward.3} parent=11 // pred_fallthru
        _
      // Predicated region
      $region65: #{task_aware_sam_forward.3} parent=11 // pred_check
        %p552 = pneg %p425
      $region66: #{task_aware_sam_forward.3} parent=11 // pred_check_branch
        %554 = sbr.rel (%p552) target = $region68
      $region67: #{task_aware_sam_forward.3} parent=11 // pred_region
        _
      $region68: #{task_aware_sam_forward.3} parent=11 // pred_fallthru
        _
      // Predicated region
      $region69: #{task_aware_sam_forward.3} parent=11 // pred_check
        %p555 = pneg %p446
      $region70: #{task_aware_sam_forward.3} parent=11 // pred_check_branch
        %557 = sbr.rel (%p555) target = $region72
      $region71: #{task_aware_sam_forward.3} parent=11 // pred_region
        _
      $region72: #{task_aware_sam_forward.3} parent=11 // pred_fallthru
        _
    $region12: #{task_aware_sam_forward.3} parent=5 // pred_fallthru
      _
    %p558 = scmp.lt.s32.totalorder %s27, 2
    // Predicated region
    $region73: #{task_aware_sam_forward.3} parent=5 // pred_check
      %p559 = pneg %p558
    $region74: #{task_aware_sam_forward.3} parent=5 // pred_check_branch
      %561 = sbr.rel (%p559) target = $region76
    $region75: #{task_aware_sam_forward.3} parent=5 // pred_region
      // Predicated region
      $region77: #{task_aware_sam_forward.3} parent=75 // pred_check
        %p562 = pneg %p47
      $region78: #{task_aware_sam_forward.3} parent=75 // pred_check_branch
        %564 = sbr.rel (%p562) target = $region80
      $region79: #{task_aware_sam_forward.3} parent=75 // pred_region
        %p565 = scmp.lt.s32.totalorder %s27, 1
        %s566 = scalar_select %p565, %s27, 1
        %s567 = smul.addr %s566, 8
        %s568 = smul.addr %s567, 8
        %s569 = scalar_lea.vmem %s0, %s568
      $region80: #{task_aware_sam_forward.3} parent=75 // pred_fallthru
        _
      // Predicated region
      $region81: #{task_aware_sam_forward.3} parent=75 // pred_check
        %p570 = pneg %p73
      $region82: #{task_aware_sam_forward.3} parent=75 // pred_check_branch
        %572 = sbr.rel (%p570) target = $region84
      $region83: #{task_aware_sam_forward.3} parent=75 // pred_region
        %p573 = scmp.lt.s32.totalorder %s27, 1
        %s574 = scalar_select %p573, %s27, 1
        %s575 = smul.addr %s574, 8
        %s576 = scalar_lea.vmem %s1, %s575
      $region84: #{task_aware_sam_forward.3} parent=75 // pred_fallthru
        _
      // Predicated region
      $region85: #{task_aware_sam_forward.3} parent=75 // pred_check
        %p577 = pneg %p99
      $region86: #{task_aware_sam_forward.3} parent=75 // pred_check_branch
        %579 = sbr.rel (%p577) target = $region88
      $region87: #{task_aware_sam_forward.3} parent=75 // pred_region
        %p580 = scmp.lt.s32.totalorder %s27, 1
        %s581 = scalar_select %p580, %s27, 1
        %s582 = smul.addr %s581, 16
        %s583 = smul.addr %s582, 8
        %s584 = scalar_lea.vmem %s2, %s583
      $region88: #{task_aware_sam_forward.3} parent=75 // pred_fallthru
        _
      // Predicated region
      $region89: #{task_aware_sam_forward.3} parent=75 // pred_check
        %p585 = pneg %p125
      $region90: #{task_aware_sam_forward.3} parent=75 // pred_check_branch
        %587 = sbr.rel (%p585) target = $region92
      $region91: #{task_aware_sam_forward.3} parent=75 // pred_region
        %p588 = scmp.lt.s32.totalorder %s27, 1
        %s589 = scalar_select %p588, %s27, 1
        %s590 = smul.addr %s589, 4
        %s591 = smul.addr %s590, 4
        %s592 = scalar_lea.vmem %s3, %s591
      $region92: #{task_aware_sam_forward.3} parent=75 // pred_fallthru
        _
    $region76: #{task_aware_sam_forward.3} parent=5 // pred_fallthru
      _
    %p593 = scmp.le.s32.totalorder 1, %s27
    %p594 = scmp.lt.s32.totalorder %s27, 3
    %p595 = pnand %p593, %p594
    %p596 = pneg %p595
    // Predicated region
    $region93: #{task_aware_sam_forward.3} parent=5 // pred_check
      _
    $region94: #{task_aware_sam_forward.3} parent=5 // pred_check_branch
      %598 = sbr.rel (%p595) target = $region96
    $region95: #{task_aware_sam_forward.3} parent=5 // pred_region
      %s599 = ssub.s32 %s27, 1
      %p600 = scmp.lt.s32.totalorder %s32, 1
      %s601 = scalar_select %p600, %s32, 1
      %s602 = smul.addr %s601, 8
      %s603 = smul.addr %s602, 8
      %s604 = scalar_lea.vmem %s0, %s603
      %p605 = pneg %p53
      %p606 = pneg %p50
      %p607 = scmp.lt.s32.totalorder %s32, 1
      %s608 = scalar_select %p607, %s32, 1
      %s609 = smul.addr %s608, 8
      %s610 = scalar_lea.vmem %s1, %s609
      %p611 = pneg %p79
      %p612 = pneg %p76
      %p613 = scmp.lt.s32.totalorder %s32, 1
      %s614 = scalar_select %p613, %s32, 1
      %s615 = smul.addr %s614, 16
      %s616 = smul.addr %s615, 8
      %s617 = scalar_lea.vmem %s2, %s616
      %p618 = pneg %p105
      %p619 = pneg %p102
      %p620 = scmp.lt.s32.totalorder %s32, 1
      %s621 = scalar_select %p620, %s32, 1
      %s622 = smul.addr %s621, 4
      %s623 = smul.addr %s622, 4
      %s624 = scalar_lea.vmem %s3, %s623
      %p625 = pneg %p131
      %p626 = pneg %p128
      %p627 = pneg %p152
      %p628 = pneg %p149
      %p629 = pneg %p173
      %p630 = pneg %p170
      %p631 = pneg %p194
      %p632 = pneg %p191
      %p633 = pneg %p215
      %p634 = pneg %p212
      %p635 = pneg %p236
      %p636 = pneg %p233
      %p637 = pneg %p257
      %p638 = pneg %p254
      %p639 = pneg %p278
      %p640 = pneg %p275
      %p641 = pneg %p299
      %p642 = pneg %p296
      %p643 = pneg %p320
      %p644 = pneg %p317
      %p645 = pneg %p341
      %p646 = pneg %p338
      %p647 = pneg %p362
      %p648 = pneg %p359
      %p649 = pneg %p383
      %p650 = pneg %p380
      %p651 = pneg %p404
      %p652 = pneg %p401
      %p653 = pneg %p425
      %p654 = pneg %p422
      %p655 = pneg %p446
      %p656 = pneg %p443
      %p657 = pneg %p472
      %p658 = pneg %p469
      %p659 = scmp.lt.s32.totalorder %s32, 1
      %s660 = scalar_select %p659, %s32, 1
      %s661 = smul.addr %s660, 8
      %s662 = smul.addr %s661, 8
      %s663 = scalar_lea.vmem %s19, %s662
      %p664 = pneg %p498
      %p665 = pneg %p495
      %p666 = scmp.lt.s32.totalorder %s32, 1
      %s667 = scalar_select %p666, %s32, 1
      %s668 = scalar_lea.vmem %s20, %s667
      %p669 = scmp.lt.s32.totalorder %s32, 1
      %s670 = scalar_select %p669, %s32, 1
      %s671 = smul.addr %s670, 8
      %s672 = smul.addr %s671, 8
      %s673 = scalar_lea.vmem %s0, %s672
      %p674 = scmp.lt.s32.totalorder %s32, 1
      %s675 = scalar_select %p674, %s32, 1
      %s676 = smul.addr %s675, 8
      %s677 = scalar_lea.vmem %s1, %s676
      %p678 = scmp.lt.s32.totalorder %s32, 1
      %s679 = scalar_select %p678, %s32, 1
      %s680 = smul.addr %s679, 16
      %s681 = smul.addr %s680, 8
      %s682 = scalar_lea.vmem %s2, %s681
      %p683 = scmp.lt.s32.totalorder %s32, 1
      %s684 = scalar_select %p683, %s32, 1
      %s685 = smul.addr %s684, 4
      %s686 = smul.addr %s685, 4
      %s687 = scalar_lea.vmem %s3, %s686
      %p688 = scmp.lt.s32.totalorder %s32, 1
      %s689 = scalar_select %p688, %s32, 1
      %s690 = smul.addr %s689, 8
      %s691 = smul.addr %s690, 8
      %s692 = scalar_lea.vmem %s19, %s691
      %p693 = scmp.lt.s32.totalorder %s32, 1
      %s694 = scalar_select %p693, %s32, 1
      %s695 = scalar_lea.vmem %s20, %s694
      %v697 = vld [vmem:[%s673] sm:$0xff]
      %v698 = vld [vmem:[%s673 + $0x8] sm:$0xff]
      %v699 = vld [vmem:[%s673 + $0x10] sm:$0xff]
      %v700 = vld [vmem:[%s673 + $0x18] sm:$0xff]
      %v701 = vld [vmem:[%s673 + $0x20] sm:$0xff]
      %v702 = vld [vmem:[%s673 + $0x28] sm:$0xff]
      %v703 = vld [vmem:[%s673 + $0x30] sm:$0xff]
      %v704 = vld [vmem:[%s673 + $0x38] sm:$0xff]
      %v705 = vld [vmem:[%s4] sm:$0xff]
      %v706 = vld [vmem:[%s4 + $0x8] sm:$0xff]
      %v707 = vld [vmem:[%s4 + $0x10] sm:$0xff]
      %v708 = vld [vmem:[%s4 + $0x18] sm:$0xff]
      %v709 = vld [vmem:[%s4 + $0x20] sm:$0xff]
      %v710 = vld [vmem:[%s4 + $0x28] sm:$0xff]
      %v711 = vld [vmem:[%s4 + $0x30] sm:$0xff]
      %v712 = vld [vmem:[%s4 + $0x38] sm:$0xff]
      %v713 = vpack.c.bf16 %v698, %v697
      %v714 = vpack.c.bf16 %v700, %v699
      %v715 = vpack.c.bf16 %v702, %v701
      %v716 = vpack.c.bf16 %v704, %v703
      %v717 = vpack.c.bf16 %v706, %v705
      %v718 = vpack.c.bf16 %v708, %v707
      %v719 = vpack.c.bf16 %v710, %v709
      %v720 = vpack.c.bf16 %v712, %v711
      %v721 = vld [vmem:[%s7 + $0xb] sm:$0x1]
      %v722 = vlaneseq
      %v723 = vshrl.u32 %v722, 7
      %v724 = vsub.s32 0, %v723
      %v725 = vrot.slane %v721, %v724
      %vm726 = vcmask 523264
      %v728 = vsel %vm726, %v713, 0
      %v731 = vsel %vm726, %v714, 0
      %v734 = vsel %vm726, %v715, 0
      %v737 = vsel %vm726, %v716, 0
      %739 = vmatprep.subr.bf16.mxu0 0
      %740 = vmatpush1.bf16.msra.mxu0 %v717
      %741 = vmatprep.subr.bf16.mxu0 0
      %742 = vmatpush1.bf16.msra.mxu0 %v718
      %743 = vmatprep.subr.bf16.mxu0 0
      %744 = vmatpush1.bf16.msra.mxu0 %v719
      %745 = vmatprep.subr.bf16.mxu0 0
      %746 = vmatpush1.bf16.msra.mxu0 %v720
      %747 = vmatprep.subr.bf16.mxu0 0
      %748 = vmatpush1.bf16.msra.mxu0 0
      %749 = vmatprep.subr.bf16.mxu0 0
      %750 = vmatpush1.bf16.msra.mxu0 0
      %751 = vmatprep.subr.bf16.mxu0 0
      %752 = vmatpush1.bf16.msra.mxu0 0
      %753 = vmatprep.subr.bf16.mxu0 0
      %754 = vmatpush1.bf16.msra.mxu0 0
      %755 = vmatprep.subr.bf16.mxu0 0
      %756 = vmatpush1.bf16.msra.mxu0 0
      %757 = vmatprep.subr.bf16.mxu0 0
      %758 = vmatpush1.bf16.msra.mxu0 0
      %759 = vmatprep.subr.bf16.mxu0 0
      %760 = vmatpush1.bf16.msra.mxu0 0
      %761 = vmatprep.subr.bf16.mxu0 0
      %762 = vmatpush1.bf16.msra.mxu0 0
      %763 = vmatprep.subr.bf16.mxu0 0
      %764 = vmatpush1.bf16.msra.mxu0 0
      %765 = vmatprep.subr.bf16.mxu0 0
      %766 = vmatpush1.bf16.msra.mxu0 0
      %767 = vmatprep.subr.bf16.mxu0 0
      %768 = vmatpush1.bf16.msra.mxu0 0
      %769 = vmatprep.subr.bf16.mxu0 0
      %770 = vmatpush1.bf16.msra.mxu0 0
      %771 = vmatprep.mubr.bf16.mxu0 0
      %772 = vmatmul.mubr.bf16.gmra.mrb[0].mxu0 %v728
      %v773 = vpop.f32.mrb[0].mxu0
      %v774 = vadd.f32 %v725, %v773
      %v775 = vpop.f32.mrb[0].mxu0
      %v776 = vpop.f32.mrb[0].mxu0
      %v777 = vadd.f32 %v725, %v776
      %v778 = vpop.f32.mrb[0].mxu0
      %779 = vmatprep.mubr.bf16.mxu0 0
      %780 = vmatmul.mubr.bf16.gmra.mrb[0].mxu0 %v731
      %v781 = vpop.f32.mrb[0].mxu0
      %v782 = vadd.f32 %v725, %v781
      %v783 = vpop.f32.mrb[0].mxu0
      %v784 = vpop.f32.mrb[0].mxu0
      %v785 = vadd.f32 %v725, %v784
      %v786 = vpop.f32.mrb[0].mxu0
      %787 = vmatprep.mubr.bf16.mxu0 0
      %788 = vmatmul.mubr.bf16.gmra.mrb[0].mxu0 %v734
      %v789 = vpop.f32.mrb[0].mxu0
      %v790 = vadd.f32 %v725, %v789
      %v791 = vpop.f32.mrb[0].mxu0
      %v792 = vpop.f32.mrb[0].mxu0
      %v793 = vadd.f32 %v725, %v792
      %v794 = vpop.f32.mrb[0].mxu0
      %795 = vmatprep.mubr.bf16.mxu0 0
      %796 = vmatmul.mubr.bf16.gmra.mrb[0].mxu0 %v737
      %v797 = vpop.f32.mrb[0].mxu0
      %v798 = vadd.f32 %v725, %v797
      %v799 = vpop.f32.mrb[0].mxu0
      %v800 = vpop.f32.mrb[0].mxu0
      %v801 = vadd.f32 %v725, %v800
      %v802 = vpop.f32.mrb[0].mxu0
      %803 = vdwg.mxu0
      %v804 = vld [vmem:[%s7 + $0xc] sm:$0x1]
      %v805 = vlaneseq
      %v806 = vshrl.u32 %v805, 7
      %v807 = vsub.s32 0, %v806
      %v808 = vrot.slane %v804, %v807
      %v809 = vadd.f32 %v774, %v808
      %v810 = vadd.f32 %v777, %v808
      %v811 = vadd.f32 %v782, %v808
      %v812 = vadd.f32 %v785, %v808
      %v813 = vadd.f32 %v790, %v808
      %v814 = vadd.f32 %v793, %v808
      %v815 = vadd.f32 %v798, %v808
      %v816 = vadd.f32 %v801, %v808
      %v817 = vld [vmem:[%s5] sm:$0xff]
      %v818 = vld [vmem:[%s5 + $0x8] sm:$0xff]
      %v819 = vld [vmem:[%s5 + $0x10] sm:$0xff]
      %v820 = vld [vmem:[%s5 + $0x18] sm:$0xff]
      %v821 = vld [vmem:[%s5 + $0x20] sm:$0xff]
      %v822 = vld [vmem:[%s5 + $0x28] sm:$0xff]
      %v823 = vld [vmem:[%s5 + $0x30] sm:$0xff]
      %v824 = vld [vmem:[%s5 + $0x38] sm:$0xff]
      %v825 = vld [vmem:[%s677] sm:$0x7f]
      %v826 = vld [vmem:[%s682] sm:$0xff]
      %v827 = vld [vmem:[%s682 + $0x8] sm:$0xff]
      %v828 = vld [vmem:[%s682 + $0x10] sm:$0xff]
      %v829 = vld [vmem:[%s682 + $0x18] sm:$0xff]
      %v830 = vld [vmem:[%s687] sm:$0xf]
      %v831 = vpack.c.bf16 %v827, %v826
      %v832 = vpack.c.bf16 %v829, %v828
      %v833 = vpack.c.bf16 %v830, %v830
      %vm834 = vcmask 31744
      %v836 = vsel %vm834, %v831, 0
      %v839 = vsel %vm834, %v832, 0
      %vm841 = vcmask 1041408
      %v843 = vsel %vm841, %v833, 0
      %845 = vmatprep.subr.bf16.mxu0 0
      %846 = vmatpush1.bf16.msra.mxu0 %v843
      %847 = vmatprep.subr.bf16.mxu0 0
      %848 = vmatpush1.bf16.msra.mxu0 0
      %849 = vmatprep.subr.bf16.mxu0 0
      %850 = vmatpush1.bf16.msra.mxu0 0
      %851 = vmatprep.subr.bf16.mxu0 0
      %852 = vmatpush1.bf16.msra.mxu0 0
      %853 = vmatprep.subr.bf16.mxu0 0
      %854 = vmatpush1.bf16.msra.mxu0 0
      %855 = vmatprep.subr.bf16.mxu0 0
      %856 = vmatpush1.bf16.msra.mxu0 0
      %857 = vmatprep.subr.bf16.mxu0 0
      %858 = vmatpush1.bf16.msra.mxu0 0
      %859 = vmatprep.subr.bf16.mxu0 0
      %860 = vmatpush1.bf16.msra.mxu0 0
      %861 = vmatprep.subr.bf16.mxu0 0
      %862 = vmatpush1.bf16.msra.mxu0 0
      %863 = vmatprep.subr.bf16.mxu0 0
      %864 = vmatpush1.bf16.msra.mxu0 0
      %865 = vmatprep.subr.bf16.mxu0 0
      %866 = vmatpush1.bf16.msra.mxu0 0
      %867 = vmatprep.subr.bf16.mxu0 0
      %868 = vmatpush1.bf16.msra.mxu0 0
      %869 = vmatprep.subr.bf16.mxu0 0
      %870 = vmatpush1.bf16.msra.mxu0 0
      %871 = vmatprep.subr.bf16.mxu0 0
      %872 = vmatpush1.bf16.msra.mxu0 0
      %873 = vmatprep.subr.bf16.mxu0 0
      %874 = vmatpush1.bf16.msra.mxu0 0
      %875 = vmatprep.subr.bf16.mxu0 0
      %876 = vmatpush1.bf16.msra.mxu0 0
      %877 = vmatprep.mubr.bf16.mxu0 0
      %878 = vmatmul.mubr.bf16.gmra.mrb[0].mxu0 %v836
      %v879 = vpop.f32.mrb[0].mxu0
      %v880 = vadd.f32 0.0, %v879
      %v881 = vpop.f32.mrb[0].mxu0
      %v882 = vpop.f32.mrb[0].mxu0
      %v883 = vadd.f32 0.0, %v882
      %v884 = vpop.f32.mrb[0].mxu0
      %885 = vmatprep.mubr.bf16.mxu0 0
      %886 = vmatmul.mubr.bf16.gmra.mrb[0].mxu0 %v839
      %v887 = vpop.f32.mrb[0].mxu0
      %v888 = vadd.f32 0.0, %v887
      %v889 = vpop.f32.mrb[0].mxu0
      %v890 = vpop.f32.mrb[0].mxu0
      %v891 = vadd.f32 0.0, %v890
      %v892 = vpop.f32.mrb[0].mxu0
      %893 = vdwg.mxu0
      %v894 = vld [vmem:[%s6] sm:$0xff]
      %v895 = vld [vmem:[%s6 + $0x8] sm:$0xff]
      %v896 = vld [vmem:[%s6 + $0x10] sm:$0xff]
      %v897 = vld [vmem:[%s6 + $0x18] sm:$0xff]
      %v898 = vmul.f32 %v880, 4.0
      %v899 = vmul.f32 %v883, 4.0
      %v900 = vmul.f32 %v888, 4.0
      %v901 = vmul.f32 %v891, 4.0
      %v902 = vadd.f32 %v894, %v898
      %v903 = vadd.f32 %v895, %v899
      %v904 = vadd.f32 %v896, %v900
      %v905 = vadd.f32 %v897, %v901
      %v906 = vmul.f32 %v902, 0.17677669
      %v907 = vmul.f32 %v903, 0.17677669
      %v908 = vmul.f32 %v904, 0.17677669
      %v909 = vmul.f32 %v905, 0.17677669
      %s910 = scalar_lea.vmem %s682, 32
      %v911 = vld [vmem:[%s910] sm:$0xff]
      %v912 = vld [vmem:[%s910 + $0x8] sm:$0xff]
      %v913 = vld [vmem:[%s910 + $0x10] sm:$0xff]
      %v914 = vld [vmem:[%s910 + $0x18] sm:$0xff]
      %s915 = scalar_lea.vmem %s687, 4
      %v916 = vld [vmem:[%s915] sm:$0xf]
      %v917 = vpack.c.bf16 %v912, %v911
      %v918 = vpack.c.bf16 %v914, %v913
      %v919 = vpack.c.bf16 %v916, %v916
      %v921 = vsel %vm834, %v917, 0
      %v924 = vsel %vm834, %v918, 0
      %v927 = vsel %vm841, %v919, 0
      %929 = vmatprep.subr.bf16.mxu0 0
      %930 = vmatpush1.bf16.msra.mxu0 %v927
      %931 = vmatprep.subr.bf16.mxu0 0
      %932 = vmatpush1.bf16.msra.mxu0 0
      %933 = vmatprep.subr.bf16.mxu0 0
      %934 = vmatpush1.bf16.msra.mxu0 0
      %935 = vmatprep.subr.bf16.mxu0 0
      %936 = vmatpush1.bf16.msra.mxu0 0
      %937 = vmatprep.subr.bf16.mxu0 0
      %938 = vmatpush1.bf16.msra.mxu0 0
      %939 = vmatprep.subr.bf16.mxu0 0
      %940 = vmatpush1.bf16.msra.mxu0 0
      %941 = vmatprep.subr.bf16.mxu0 0
      %942 = vmatpush1.bf16.msra.mxu0 0
      %943 = vmatprep.subr.bf16.mxu0 0
      %944 = vmatpush1.bf16.msra.mxu0 0
      %945 = vmatprep.subr.bf16.mxu0 0
      %946 = vmatpush1.bf16.msra.mxu0 0
      %947 = vmatprep.subr.bf16.mxu0 0
      %948 = vmatpush1.bf16.msra.mxu0 0
      %949 = vmatprep.subr.bf16.mxu0 0
      %950 = vmatpush1.bf16.msra.mxu0 0
      %951 = vmatprep.subr.bf16.mxu0 0
      %952 = vmatpush1.bf16.msra.mxu0 0
      %953 = vmatprep.subr.bf16.mxu0 0
      %954 = vmatpush1.bf16.msra.mxu0 0
      %955 = vmatprep.subr.bf16.mxu0 0
      %956 = vmatpush1.bf16.msra.mxu0 0
      %957 = vmatprep.subr.bf16.mxu0 0
      %958 = vmatpush1.bf16.msra.mxu0 0
      %959 = vmatprep.subr.bf16.mxu0 0
      %960 = vmatpush1.bf16.msra.mxu0 0
      %961 = vmatprep.mubr.bf16.mxu0 0
      %962 = vmatmul.mubr.bf16.gmra.mrb[0].mxu0 %v921
      %v963 = vpop.f32.mrb[0].mxu0
      %v964 = vadd.f32 0.0, %v963
      %v965 = vpop.f32.mrb[0].mxu0
      %v966 = vpop.f32.mrb[0].mxu0
      %v967 = vadd.f32 0.0, %v966
      %v968 = vpop.f32.mrb[0].mxu0
      %969 = vmatprep.mubr.bf16.mxu0 0
      %970 = vmatmul.mubr.bf16.gmra.mrb[0].mxu0 %v924
      %v971 = vpop.f32.mrb[0].mxu0
      %v972 = vadd.f32 0.0, %v971
      %v973 = vpop.f32.mrb[0].mxu0
      %v974 = vpop.f32.mrb[0].mxu0
      %v975 = vadd.f32 0.0, %v974
      %v976 = vpop.f32.mrb[0].mxu0
      %977 = vdwg.mxu0
      %s978 = scalar_lea.vmem %s6, 64
      %v979 = vld [vmem:[%s978] sm:$0xff]
      %v980 = vld [vmem:[%s978 + $0x8] sm:$0xff]
      %v981 = vld [vmem:[%s978 + $0x10] sm:$0xff]
      %v982 = vld [vmem:[%s978 + $0x18] sm:$0xff]
      %v983 = vmul.f32 %v964, 4.0
      %v984 = vmul.f32 %v967, 4.0
      %v985 = vmul.f32 %v972, 4.0
      %v986 = vmul.f32 %v975, 4.0
      %v987 = vadd.f32 %v979, %v983
      %v988 = vadd.f32 %v980, %v984
      %v989 = vadd.f32 %v981, %v985
      %v990 = vadd.f32 %v982, %v986
      %s991 = scalar_lea.vmem %s682, 64
      %v992 = vld [vmem:[%s991] sm:$0xff]
      %v993 = vld [vmem:[%s991 + $0x8] sm:$0xff]
      %v994 = vld [vmem:[%s991 + $0x10] sm:$0xff]
      %v995 = vld [vmem:[%s991 + $0x18] sm:$0xff]
      %s996 = scalar_lea.vmem %s687, 8
      %v997 = vld [vmem:[%s996] sm:$0xf]
      %v998 = vpack.c.bf16 %v993, %v992
      %v999 = vpack.c.bf16 %v995, %v994
      %v1000 = vpack.c.bf16 %v997, %v997
      %v1002 = vsel %vm834, %v998, 0
      %v1005 = vsel %vm834, %v999, 0
      %v1008 = vsel %vm841, %v1000, 0
      %1010 = vmatprep.subr.bf16.mxu0 0
      %1011 = vmatpush1.bf16.msra.mxu0 %v1008
      %1012 = vmatprep.subr.bf16.mxu0 0
      %1013 = vmatpush1.bf16.msra.mxu0 0
      %1014 = vmatprep.subr.bf16.mxu0 0
      %1015 = vmatpush1.bf16.msra.mxu0 0
      %1016 = vmatprep.subr.bf16.mxu0 0
      %1017 = vmatpush1.bf16.msra.mxu0 0
      %1018 = vmatprep.subr.bf16.mxu0 0
      %1019 = vmatpush1.bf16.msra.mxu0 0
      %1020 = vmatprep.subr.bf16.mxu0 0
      %1021 = vmatpush1.bf16.msra.mxu0 0
      %1022 = vmatprep.subr.bf16.mxu0 0
      %1023 = vmatpush1.bf16.msra.mxu0 0
      %1024 = vmatprep.subr.bf16.mxu0 0
      %1025 = vmatpush1.bf16.msra.mxu0 0
      %1026 = vmatprep.subr.bf16.mxu0 0
      %1027 = vmatpush1.bf16.msra.mxu0 0
      %1028 = vmatprep.subr.bf16.mxu0 0
      %1029 = vmatpush1.bf16.msra.mxu0 0
      %1030 = vmatprep.subr.bf16.mxu0 0
      %1031 = vmatpush1.bf16.msra.mxu0 0
      %1032 = vmatprep.subr.bf16.mxu0 0
      %1033 = vmatpush1.bf16.msra.mxu0 0
      %1034 = vmatprep.subr.bf16.mxu0 0
      %1035 = vmatpush1.bf16.msra.mxu0 0
      %1036 = vmatprep.subr.bf16.mxu0 0
      %1037 = vmatpush1.bf16.msra.mxu0 0
      %1038 = vmatprep.subr.bf16.mxu0 0
      %1039 = vmatpush1.bf16.msra.mxu0 0
      %1040 = vmatprep.subr.bf16.mxu0 0
      %1041 = vmatpush1.bf16.msra.mxu0 0
      %1042 = vmatprep.mubr.bf16.mxu0 0
      %1043 = vmatmul.mubr.bf16.gmra.mrb[0].mxu0 %v1002
      %v1044 = vpop.f32.mrb[0].mxu0
      %v1045 = vadd.f32 0.0, %v1044
      %v1046 = vpop.f32.mrb[0].mxu0
      %v1047 = vpop.f32.mrb[0].mxu0
      %v1048 = vadd.f32 0.0, %v1047
      %v1049 = vpop.f32.mrb[0].mxu0
      %1050 = vmatprep.mubr.bf16.mxu0 0
      %1051 = vmatmul.mubr.bf16.gmra.mrb[0].mxu0 %v1005
      %v1052 = vpop.f32.mrb[0].mxu0
      %v1053 = vadd.f32 0.0, %v1052
      %v1054 = vpop.f32.mrb[0].mxu0
      %v1055 = vpop.f32.mrb[0].mxu0
      %v1056 = vadd.f32 0.0, %v1055
      %v1057 = vpop.f32.mrb[0].mxu0
      %1058 = vdwg.mxu0
      %s1059 = scalar_lea.vmem %s6, 128
      %v1060 = vld [vmem:[%s1059] sm:$0xff]
      %v1061 = vld [vmem:[%s1059 + $0x8] sm:$0xff]
      %v1062 = vld [vmem:[%s1059 + $0x10] sm:$0xff]
      %v1063 = vld [vmem:[%s1059 + $0x18] sm:$0xff]
      %v1064 = vmul.f32 %v1045, 4.0
      %v1065 = vmul.f32 %v1048, 4.0
      %v1066 = vmul.f32 %v1053, 4.0
      %v1067 = vmul.f32 %v1056, 4.0
      %v1068 = vadd.f32 %v1060, %v1064
      %v1069 = vadd.f32 %v1061, %v1065
      %v1070 = vadd.f32 %v1062, %v1066
      %v1071 = vadd.f32 %v1063, %v1067
      %v1072 = vmul.f32 %v1068, 0.17677669
      %v1073 = vmul.f32 %v1069, 0.17677669
      %v1074 = vmul.f32 %v1070, 0.17677669
      %v1075 = vmul.f32 %v1071, 0.17677669
      %s1076 = scalar_lea.vmem %s682, 96
      %v1077 = vld [vmem:[%s1076] sm:$0xff]
      %v1078 = vld [vmem:[%s1076 + $0x8] sm:$0xff]
      %v1079 = vld [vmem:[%s1076 + $0x10] sm:$0xff]
      %v1080 = vld [vmem:[%s1076 + $0x18] sm:$0xff]
      %s1081 = scalar_lea.vmem %s687, 12
      %v1082 = vld [vmem:[%s1081] sm:$0xf]
      %v1083 = vpack.c.bf16 %v1078, %v1077
      %v1084 = vpack.c.bf16 %v1080, %v1079
      %v1085 = vpack.c.bf16 %v1082, %v1082
      %v1087 = vsel %vm834, %v1083, 0
      %v1090 = vsel %vm834, %v1084, 0
      %v1093 = vsel %vm841, %v1085, 0
      %1095 = vmatprep.subr.bf16.mxu0 0
      %1096 = vmatpush1.bf16.msra.mxu0 %v1093
      %1097 = vmatprep.subr.bf16.mxu0 0
      %1098 = vmatpush1.bf16.msra.mxu0 0
      %1099 = vmatprep.subr.bf16.mxu0 0
      %1100 = vmatpush1.bf16.msra.mxu0 0
      %1101 = vmatprep.subr.bf16.mxu0 0
      %1102 = vmatpush1.bf16.msra.mxu0 0
      %1103 = vmatprep.subr.bf16.mxu0 0
      %1104 = vmatpush1.bf16.msra.mxu0 0
      %1105 = vmatprep.subr.bf16.mxu0 0
      %1106 = vmatpush1.bf16.msra.mxu0 0
      %1107 = vmatprep.subr.bf16.mxu0 0
      %1108 = vmatpush1.bf16.msra.mxu0 0
      %1109 = vmatprep.subr.bf16.mxu0 0
      %1110 = vmatpush1.bf16.msra.mxu0 0
      %1111 = vmatprep.subr.bf16.mxu0 0
      %1112 = vmatpush1.bf16.msra.mxu0 0
      %1113 = vmatprep.subr.bf16.mxu0 0
      %1114 = vmatpush1.bf16.msra.mxu0 0
      %1115 = vmatprep.subr.bf16.mxu0 0
      %1116 = vmatpush1.bf16.msra.mxu0 0
      %1117 = vmatprep.subr.bf16.mxu0 0
      %1118 = vmatpush1.bf16.msra.mxu0 0
      %1119 = vmatprep.subr.bf16.mxu0 0
      %1120 = vmatpush1.bf16.msra.mxu0 0
      %1121 = vmatprep.subr.bf16.mxu0 0
      %1122 = vmatpush1.bf16.msra.mxu0 0
      %1123 = vmatprep.subr.bf16.mxu0 0
      %1124 = vmatpush1.bf16.msra.mxu0 0
      %1125 = vmatprep.subr.bf16.mxu0 0
      %1126 = vmatpush1.bf16.msra.mxu0 0
      %1127 = vmatprep.mubr.bf16.mxu0 0
      %1128 = vmatmul.mubr.bf16.gmra.mrb[0].mxu0 %v1087
      %v1129 = vpop.f32.mrb[0].mxu0
      %v1130 = vadd.f32 0.0, %v1129
      %v1131 = vpop.f32.mrb[0].mxu0
      %v1132 = vpop.f32.mrb[0].mxu0
      %v1133 = vadd.f32 0.0, %v1132
      %v1134 = vpop.f32.mrb[0].mxu0
      %1135 = vmatprep.mubr.bf16.mxu0 0
      %1136 = vmatmul.mubr.bf16.gmra.mrb[0].mxu0 %v1090
      %v1137 = vpop.f32.mrb[0].mxu0
      %v1138 = vadd.f32 0.0, %v1137
      %v1139 = vpop.f32.mrb[0].mxu0
      %v1140 = vpop.f32.mrb[0].mxu0
      %v1141 = vadd.f32 0.0, %v1140
      %v1142 = vpop.f32.mrb[0].mxu0
      %1143 = vdwg.mxu0
      %s1144 = scalar_lea.vmem %s6, 192
      %v1145 = vld [vmem:[%s1144] sm:$0xff]
      %v1146 = vld [vmem:[%s1144 + $0x8] sm:$0xff]
      %v1147 = vld [vmem:[%s1144 + $0x10] sm:$0xff]
      %v1148 = vld [vmem:[%s1144 + $0x18] sm:$0xff]
      %v1149 = vmul.f32 %v1130, 4.0
      %v1150 = vmul.f32 %v1133, 4.0
      %v1151 = vmul.f32 %v1138, 4.0
      %v1152 = vmul.f32 %v1141, 4.0
      %v1153 = vadd.f32 %v1145, %v1149
      %v1154 = vadd.f32 %v1146, %v1150
      %v1155 = vadd.f32 %v1147, %v1151
      %v1156 = vadd.f32 %v1148, %v1152
      %v1157 = vpack.c.bf16 %v825, %v825
      %v1158 = vpack.c.bf16 %v907, %v906
      %v1159 = vpack.c.bf16 %v909, %v908
      %v1160 = vld [vmem:[%s7] sm:$0x1]
      %v1161 = vmul.f32 %v1160, 0.17677669
      %v1162 = vlaneseq
      %v1163 = vshrl.u32 %v1162, 7
      %v1164 = vsub.s32 0, %v1163
      %v1165 = vrot.slane %v1161, %v1164
      %vm1166 = vcmask 261120
      %v1168 = vsel %vm1166, %v1157, 0
      %1170 = vmatprep.subr.bf16.mxu0 0
      %1171 = vmatpush1.bf16.msra.mxu0 %v1158
      %1172 = vmatprep.subr.bf16.mxu0 0
      %1173 = vmatpush1.bf16.msra.mxu0 %v1159
      %1174 = vmatprep.subr.bf16.mxu0 0
      %1175 = vmatpush1.bf16.msra.mxu0 0
      %1176 = vmatprep.subr.bf16.mxu0 0
      %1177 = vmatpush1.bf16.msra.mxu0 0
      %1178 = vmatprep.subr.bf16.mxu0 0
      %1179 = vmatpush1.bf16.msra.mxu0 0
      %1180 = vmatprep.subr.bf16.mxu0 0
      %1181 = vmatpush1.bf16.msra.mxu0 0
      %1182 = vmatprep.subr.bf16.mxu0 0
      %1183 = vmatpush1.bf16.msra.mxu0 0
      %1184 = vmatprep.subr.bf16.mxu0 0
      %1185 = vmatpush1.bf16.msra.mxu0 0
      %1186 = vmatprep.subr.bf16.mxu0 0
      %1187 = vmatpush1.bf16.msra.mxu0 0
      %1188 = vmatprep.subr.bf16.mxu0 0
      %1189 = vmatpush1.bf16.msra.mxu0 0
      %1190 = vmatprep.subr.bf16.mxu0 0
      %1191 = vmatpush1.bf16.msra.mxu0 0
      %1192 = vmatprep.subr.bf16.mxu0 0
      %1193 = vmatpush1.bf16.msra.mxu0 0
      %1194 = vmatprep.subr.bf16.mxu0 0
      %1195 = vmatpush1.bf16.msra.mxu0 0
      %1196 = vmatprep.subr.bf16.mxu0 0
      %1197 = vmatpush1.bf16.msra.mxu0 0
      %1198 = vmatprep.subr.bf16.mxu0 0
      %1199 = vmatpush1.bf16.msra.mxu0 0
      %1200 = vmatprep.subr.bf16.mxu0 0
      %1201 = vmatpush1.bf16.msra.mxu0 0
      %1202 = vmatprep.mubr.bf16.mxu0 0
      %1203 = vmatmul.mubr.bf16.gmra.mrb[0].mxu0 %v1168
      %v1204 = vpop.f32.mrb[0].mxu0
      %v1205 = vadd.f32 %v1165, %v1204
      %v1206 = vpop.f32.mrb[0].mxu0
      %v1207 = vpop.f32.mrb[0].mxu0
      %v1208 = vpop.f32.mrb[0].mxu0
      %1209 = vdwg.mxu0
      %s1210 = scalar_lea.vmem %s6, 32
      %v1211 = vld [vmem:[%s1210] sm:$0xff]
      %v1212 = vld [vmem:[%s1210 + $0x8] sm:$0xff]
      %v1213 = vld [vmem:[%s1210 + $0x10] sm:$0xff]
      %v1214 = vld [vmem:[%s1210 + $0x18] sm:$0xff]
      %v1215 = vpack.c.bf16 %v1212, %v1211
      %v1216 = vpack.c.bf16 %v1214, %v1213
      %v1217 = vld [vmem:[%s7 + $0x1] sm:$0x1]
      %v1218 = vlaneseq
      %v1219 = vshrl.u32 %v1218, 7
      %v1220 = vsub.s32 0, %v1219
      %v1221 = vrot.slane %v1217, %v1220
      %1222 = vmatprep.subr.bf16.mxu0 0
      %1223 = vmatpush1.bf16.msra.mxu0 %v1215
      %1224 = vmatprep.subr.bf16.mxu0 0
      %1225 = vmatpush1.bf16.msra.mxu0 %v1216
      %1226 = vmatprep.subr.bf16.mxu0 0
      %1227 = vmatpush1.bf16.msra.mxu0 0
      %1228 = vmatprep.subr.bf16.mxu0 0
      %1229 = vmatpush1.bf16.msra.mxu0 0
      %1230 = vmatprep.subr.bf16.mxu0 0
      %1231 = vmatpush1.bf16.msra.mxu0 0
      %1232 = vmatprep.subr.bf16.mxu0 0
      %1233 = vmatpush1.bf16.msra.mxu0 0
      %1234 = vmatprep.subr.bf16.mxu0 0
      %1235 = vmatpush1.bf16.msra.mxu0 0
      %1236 = vmatprep.subr.bf16.mxu0 0
      %1237 = vmatpush1.bf16.msra.mxu0 0
      %1238 = vmatprep.subr.bf16.mxu0 0
      %1239 = vmatpush1.bf16.msra.mxu0 0
      %1240 = vmatprep.subr.bf16.mxu0 0
      %1241 = vmatpush1.bf16.msra.mxu0 0
      %1242 = vmatprep.subr.bf16.mxu0 0
      %1243 = vmatpush1.bf16.msra.mxu0 0
      %1244 = vmatprep.subr.bf16.mxu0 0
      %1245 = vmatpush1.bf16.msra.mxu0 0
      %1246 = vmatprep.subr.bf16.mxu0 0
      %1247 = vmatpush1.bf16.msra.mxu0 0
      %1248 = vmatprep.subr.bf16.mxu0 0
      %1249 = vmatpush1.bf16.msra.mxu0 0
      %1250 = vmatprep.subr.bf16.mxu0 0
      %1251 = vmatpush1.bf16.msra.mxu0 0
      %1252 = vmatprep.subr.bf16.mxu0 0
      %1253 = vmatpush1.bf16.msra.mxu0 0
      %1254 = vmatprep.mubr.bf16.mxu0 0
      %1255 = vmatmul.mubr.bf16.gmra.mrb[0].mxu0 %v1168
      %v1256 = vpop.f32.mrb[0].mxu0
      %v1257 = vadd.f32 %v1221, %v1256
      %v1258 = vpop.f32.mrb[0].mxu0
      %v1259 = vpop.f32.mrb[0].mxu0
      %v1260 = vpop.f32.mrb[0].mxu0
      %1261 = vdwg.mxu0
      %v1262 = vpack.c.bf16 %v988, %v987
      %v1263 = vpack.c.bf16 %v990, %v989
      %v1264 = vld [vmem:[%s7 + $0x2] sm:$0x1]
      %v1265 = vlaneseq
      %v1266 = vshrl.u32 %v1265, 7
      %v1267 = vsub.s32 0, %v1266
      %v1268 = vrot.slane %v1264, %v1267
      %1269 = vmatprep.subr.bf16.mxu0 0
      %1270 = vmatpush1.bf16.msra.mxu0 %v1262
      %1271 = vmatprep.subr.bf16.mxu0 0
      %1272 = vmatpush1.bf16.msra.mxu0 %v1263
      %1273 = vmatprep.subr.bf16.mxu0 0
      %1274 = vmatpush1.bf16.msra.mxu0 0
      %1275 = vmatprep.subr.bf16.mxu0 0
      %1276 = vmatpush1.bf16.msra.mxu0 0
      %1277 = vmatprep.subr.bf16.mxu0 0
      %1278 = vmatpush1.bf16.msra.mxu0 0
      %1279 = vmatprep.subr.bf16.mxu0 0
      %1280 = vmatpush1.bf16.msra.mxu0 0
      %1281 = vmatprep.subr.bf16.mxu0 0
      %1282 = vmatpush1.bf16.msra.mxu0 0
      %1283 = vmatprep.subr.bf16.mxu0 0
      %1284 = vmatpush1.bf16.msra.mxu0 0
      %1285 = vmatprep.subr.bf16.mxu0 0
      %1286 = vmatpush1.bf16.msra.mxu0 0
      %1287 = vmatprep.subr.bf16.mxu0 0
      %1288 = vmatpush1.bf16.msra.mxu0 0
      %1289 = vmatprep.subr.bf16.mxu0 0
      %1290 = vmatpush1.bf16.msra.mxu0 0
      %1291 = vmatprep.subr.bf16.mxu0 0
      %1292 = vmatpush1.bf16.msra.mxu0 0
      %1293 = vmatprep.subr.bf16.mxu0 0
      %1294 = vmatpush1.bf16.msra.mxu0 0
      %1295 = vmatprep.subr.bf16.mxu0 0
      %1296 = vmatpush1.bf16.msra.mxu0 0
      %1297 = vmatprep.subr.bf16.mxu0 0
      %1298 = vmatpush1.bf16.msra.mxu0 0
      %1299 = vmatprep.subr.bf16.mxu0 0
      %1300 = vmatpush1.bf16.msra.mxu0 0
      %1301 = vmatprep.mubr.bf16.mxu0 0
      %1302 = vmatmul.mubr.bf16.gmra.mrb[0].mxu0 %v1168
      %v1303 = vpop.f32.mrb[0].mxu0
      %v1304 = vadd.f32 %v1268, %v1303
      %v1305 = vpop.f32.mrb[0].mxu0
      %v1306 = vpop.f32.mrb[0].mxu0
      %v1307 = vpop.f32.mrb[0].mxu0
      %1308 = vdwg.mxu0
      %v1309 = vpack.c.bf16 %v1205, %v1205
      %v1310 = vpack.c.bf16 %v1257, %v1257
      %v1312 = vsel %vm1166, %v1309, 0
      %v1315 = vsel %vm1166, %v1310, 0
      %1317 = vmatprep.subr.bf16.mxu0 0
      %1318 = vmatpush1.bf16.xpose.msra.mxu0 %v1315
      %1319 = vmatprep.subr.bf16.mxu0 0
      %1320 = vmatpush1.bf16.xpose.msra.mxu0 0
      %1321 = vmatprep.subr.bf16.mxu0 0
      %1322 = vmatpush1.bf16.xpose.msra.mxu0 0
      %1323 = vmatprep.subr.bf16.mxu0 0
      %1324 = vmatpush1.bf16.xpose.msra.mxu0 0
      %1325 = vmatprep.subr.bf16.mxu0 0
      %1326 = vmatpush1.bf16.xpose.msra.mxu0 0
      %1327 = vmatprep.subr.bf16.mxu0 0
      %1328 = vmatpush1.bf16.xpose.msra.mxu0 0
      %1329 = vmatprep.subr.bf16.mxu0 0
      %1330 = vmatpush1.bf16.xpose.msra.mxu0 0
      %1331 = vmatprep.subr.bf16.mxu0 0
      %1332 = vmatpush1.bf16.xpose.msra.mxu0 0
      %1333 = vmatprep.subr.bf16.mxu0 0
      %1334 = vmatpush1.bf16.xpose.msra.mxu0 0
      %1335 = vmatprep.subr.bf16.mxu0 0
      %1336 = vmatpush1.bf16.xpose.msra.mxu0 0
      %1337 = vmatprep.subr.bf16.mxu0 0
      %1338 = vmatpush1.bf16.xpose.msra.mxu0 0
      %1339 = vmatprep.subr.bf16.mxu0 0
      %1340 = vmatpush1.bf16.xpose.msra.mxu0 0
      %1341 = vmatprep.subr.bf16.mxu0 0
      %1342 = vmatpush1.bf16.xpose.msra.mxu0 0
      %1343 = vmatprep.subr.bf16.mxu0 0
      %1344 = vmatpush1.bf16.xpose.msra.mxu0 0
      %1345 = vmatprep.subr.bf16.mxu0 0
      %1346 = vmatpush1.bf16.xpose.msra.mxu0 0
      %1347 = vmatprep.subr.bf16.mxu0 0
      %1348 = vmatpush1.bf16.xpose.msra.mxu0 0
      %1349 = vmatprep.mubr.bf16.mxu0 0
      %1350 = vmatmul.mubr.bf16.gmra.mrb[0].mxu0 %v1312
      %v1351 = vpop.f32.mrb[0].mxu0
      %v1352 = vadd.f32 0.0, %v1351
      %v1353 = vpop.f32.mrb[0].mxu0
      %v1354 = vpop.f32.mrb[0].mxu0
      %v1355 = vpop.f32.mrb[0].mxu0
      %1356 = vdwg.mxu0
      %vm1357 = vcmask 55296
      %v1358 = vsel %vm1357, %v1352, -inf
      %1359 = vmax.xlane.f32.xlu0 %v1358
      %v1360 = vpop.xlane.xlu0 %1359
      %v1361 = vsub.f32 %v1352, %v1360
      %v1362 = vmul.f32 %v1361, 1.442695
      %v1363 = vpow.pop %v1362
      %v1364 = vsel %vm1357, %v1363, 0.0
      %1365 = vadd.xlane.f32.xlu0 %v1364
      %v1366 = vpop.xlane.xlu0 %1365
      %v1367 = vrcp.pop %v1366
      %v1368 = vmul.f32 %v1363, %v1367
      %v1369 = vpack.c.bf16 %v1368, %v1368
      %v1370 = vpack.c.bf16 %v1304, %v1304
      %vm1371 = vcmask 56320
      %v1373 = vsel %vm1371, %v1369, 0
      %vm1375 = vcmask 1042432
      %vm1376 = vcmask 1043456
      %v1377 = vsel %vm1375, 4294967295, 65535
      %v1378 = vsel %vm1376, %v1377, 0
      %v1380 = vand.u32 %v1370, %v1378
      %1382 = vmatprep.subr.bf16.mxu0 0
      %1383 = vmatpush1.bf16.msra.mxu0 %v1380
      %1384 = vmatprep.subr.bf16.mxu0 0
      %1385 = vmatpush1.bf16.msra.mxu0 0
      %1386 = vmatprep.subr.bf16.mxu0 0
      %1387 = vmatpush1.bf16.msra.mxu0 0
      %1388 = vmatprep.subr.bf16.mxu0 0
      %1389 = vmatpush1.bf16.msra.mxu0 0
      %1390 = vmatprep.subr.bf16.mxu0 0
      %1391 = vmatpush1.bf16.msra.mxu0 0
      %1392 = vmatprep.subr.bf16.mxu0 0
      %1393 = vmatpush1.bf16.msra.mxu0 0
      %1394 = vmatprep.subr.bf16.mxu0 0
      %1395 = vmatpush1.bf16.msra.mxu0 0
      %1396 = vmatprep.subr.bf16.mxu0 0
      %1397 = vmatpush1.bf16.msra.mxu0 0
      %1398 = vmatprep.subr.bf16.mxu0 0
      %1399 = vmatpush1.bf16.msra.mxu0 0
      %1400 = vmatprep.subr.bf16.mxu0 0
      %1401 = vmatpush1.bf16.msra.mxu0 0
      %1402 = vmatprep.subr.bf16.mxu0 0
      %1403 = vmatpush1.bf16.msra.mxu0 0
      %1404 = vmatprep.subr.bf16.mxu0 0
      %1405 = vmatpush1.bf16.msra.mxu0 0
      %1406 = vmatprep.subr.bf16.mxu0 0
      %1407 = vmatpush1.bf16.msra.mxu0 0
      %1408 = vmatprep.subr.bf16.mxu0 0
      %1409 = vmatpush1.bf16.msra.mxu0 0
      %1410 = vmatprep.subr.bf16.mxu0 0
      %1411 = vmatpush1.bf16.msra.mxu0 0
      %1412 = vmatprep.subr.bf16.mxu0 0
      %1413 = vmatpush1.bf16.msra.mxu0 0
      %1414 = vmatprep.mubr.bf16.mxu0 0
      %1415 = vmatmul.mubr.bf16.gmra.mrb[0].mxu0 %v1373
      %v1416 = vpop.f32.mrb[0].mxu0
      %v1417 = vadd.f32 0.0, %v1416
      %v1418 = vpop.f32.mrb[0].mxu0
      %v1419 = vpop.f32.mrb[0].mxu0
      %v1420 = vpop.f32.mrb[0].mxu0
      %1421 = vdwg.mxu0
      %s1422 = scalar_lea.vmem %s6, 96
      %v1423 = vld [vmem:[%s1422] sm:$0xff]
      %v1424 = vld [vmem:[%s1422 + $0x8] sm:$0xff]
      %v1425 = vld [vmem:[%s1422 + $0x10] sm:$0xff]
      %v1426 = vld [vmem:[%s1422 + $0x18] sm:$0xff]
      %v1427 = vpack.c.bf16 %v1417, %v1417
      %v1428 = vpack.c.bf16 %v1424, %v1423
      %v1429 = vpack.c.bf16 %v1426, %v1425
      %v1430 = vld [vmem:[%s7 + $0x3] sm:$0x1]
      %v1431 = vlaneseq
      %v1432 = vshrl.u32 %v1431, 7
      %v1433 = vsub.s32 0, %v1432
      %v1434 = vrot.slane %v1430, %v1433
      %v1436 = vsel %vm1166, %v1427, 0
      %1438 = vmatprep.subr.bf16.mxu0 0
      %1439 = vmatpush1.bf16.msra.mxu0 %v1428
      %1440 = vmatprep.subr.bf16.mxu0 0
      %1441 = vmatpush1.bf16.msra.mxu0 %v1429
      %1442 = vmatprep.subr.bf16.mxu0 0
      %1443 = vmatpush1.bf16.msra.mxu0 0
      %1444 = vmatprep.subr.bf16.mxu0 0
      %1445 = vmatpush1.bf16.msra.mxu0 0
      %1446 = vmatprep.subr.bf16.mxu0 0
      %1447 = vmatpush1.bf16.msra.mxu0 0
      %1448 = vmatprep.subr.bf16.mxu0 0
      %1449 = vmatpush1.bf16.msra.mxu0 0
      %1450 = vmatprep.subr.bf16.mxu0 0
      %1451 = vmatpush1.bf16.msra.mxu0 0
      %1452 = vmatprep.subr.bf16.mxu0 0
      %1453 = vmatpush1.bf16.msra.mxu0 0
      %1454 = vmatprep.subr.bf16.mxu0 0
      %1455 = vmatpush1.bf16.msra.mxu0 0
      %1456 = vmatprep.subr.bf16.mxu0 0
      %1457 = vmatpush1.bf16.msra.mxu0 0
      %1458 = vmatprep.subr.bf16.mxu0 0
      %1459 = vmatpush1.bf16.msra.mxu0 0
      %1460 = vmatprep.subr.bf16.mxu0 0
      %1461 = vmatpush1.bf16.msra.mxu0 0
      %1462 = vmatprep.subr.bf16.mxu0 0
      %1463 = vmatpush1.bf16.msra.mxu0 0
      %1464 = vmatprep.subr.bf16.mxu0 0
      %1465 = vmatpush1.bf16.msra.mxu0 0
      %1466 = vmatprep.subr.bf16.mxu0 0
      %1467 = vmatpush1.bf16.msra.mxu0 0
      %1468 = vmatprep.subr.bf16.mxu0 0
      %1469 = vmatpush1.bf16.msra.mxu0 0
      %1470 = vmatprep.mubr.bf16.mxu0 0
      %1471 = vmatmul.mubr.bf16.gmra.mrb[0].mxu0 %v1436
      %v1472 = vpop.f32.mrb[0].mxu0
      %v1473 = vadd.f32 %v1434, %v1472
      %v1474 = vpop.f32.mrb[0].mxu0
      %v1475 = vpop.f32.mrb[0].mxu0
      %v1476 = vpop.f32.mrb[0].mxu0
      %1477 = vdwg.mxu0
      %v1478 = vadd.f32 %v825, %v1473
      %vm1479 = vcmask 260096
      %v1480 = vsel %vm1479, %v1478, 0.0
      %1481 = vadd.xlane.f32.xlu0 %v1480
      %v1482 = vpop.xlane.xlu0 %1481
      %v1483 = vrcp.pop 32.0
      %v1484 = vmul.f32 %v1482, %v1483
      %v1485 = vsub.f32 %v1478, %v1484
      %v1486 = vmul.f32 %v1485, %v1485
      %v1487 = vsel %vm1479, %v1486, 0.0
      %1488 = vadd.xlane.f32.xlu0 %v1487
      %v1489 = vpop.xlane.xlu0 %1488
      %v1490 = vmul.f32 %v1489, %v1483
      %v1491 = vadd.f32 %v1490, 1e-05
      %v1492 = vrsqrt.pop %v1491
      %v1493 = vmul.f32 %v1485, %v1492
      %v1494 = vld [vmem:[%s7 + $0xd] sm:$0x1]
      %v1495 = vlaneseq
      %v1496 = vshrl.u32 %v1495, 7
      %v1497 = vsub.s32 0, %v1496
      %v1498 = vrot.slane %v1494, %v1497
      %v1499 = vmul.f32 %v1493, %v1498
      %v1500 = vld [vmem:[%s7 + $0xe] sm:$0x1]
      %v1501 = vlaneseq
      %v1502 = vshrl.u32 %v1501, 7
      %v1503 = vsub.s32 0, %v1502
      %v1504 = vrot.slane %v1500, %v1503
      %v1505 = vadd.f32 %v1499, %v1504
      %v1506 = vpack.c.bf16 %v1505, %v1505
      %v1507 = vpack.c.bf16 %v1073, %v1072
      %v1508 = vpack.c.bf16 %v1075, %v1074
      %v1509 = vld [vmem:[%s7 + $0x4] sm:$0x1]
      %v1510 = vmul.f32 %v1509, 0.17677669
      %v1511 = vlaneseq
      %v1512 = vshrl.u32 %v1511, 7
      %v1513 = vsub.s32 0, %v1512
      %v1514 = vrot.slane %v1510, %v1513
      %v1516 = vsel %vm1166, %v1506, 0
      %1518 = vmatprep.subr.bf16.mxu0 0
      %1519 = vmatpush1.bf16.msra.mxu0 %v1507
      %1520 = vmatprep.subr.bf16.mxu0 0
      %1521 = vmatpush1.bf16.msra.mxu0 %v1508
      %1522 = vmatprep.subr.bf16.mxu0 0
      %1523 = vmatpush1.bf16.msra.mxu0 0
      %1524 = vmatprep.subr.bf16.mxu0 0
      %1525 = vmatpush1.bf16.msra.mxu0 0
      %1526 = vmatprep.subr.bf16.mxu0 0
      %1527 = vmatpush1.bf16.msra.mxu0 0
      %1528 = vmatprep.subr.bf16.mxu0 0
      %1529 = vmatpush1.bf16.msra.mxu0 0
      %1530 = vmatprep.subr.bf16.mxu0 0
      %1531 = vmatpush1.bf16.msra.mxu0 0
      %1532 = vmatprep.subr.bf16.mxu0 0
      %1533 = vmatpush1.bf16.msra.mxu0 0
      %1534 = vmatprep.subr.bf16.mxu0 0
      %1535 = vmatpush1.bf16.msra.mxu0 0
      %1536 = vmatprep.subr.bf16.mxu0 0
      %1537 = vmatpush1.bf16.msra.mxu0 0
      %1538 = vmatprep.subr.bf16.mxu0 0
      %1539 = vmatpush1.bf16.msra.mxu0 0
      %1540 = vmatprep.subr.bf16.mxu0 0
      %1541 = vmatpush1.bf16.msra.mxu0 0
      %1542 = vmatprep.subr.bf16.mxu0 0
      %1543 = vmatpush1.bf16.msra.mxu0 0
      %1544 = vmatprep.subr.bf16.mxu0 0
      %1545 = vmatpush1.bf16.msra.mxu0 0
      %1546 = vmatprep.subr.bf16.mxu0 0
      %1547 = vmatpush1.bf16.msra.mxu0 0
      %1548 = vmatprep.subr.bf16.mxu0 0
      %1549 = vmatpush1.bf16.msra.mxu0 0
      %1550 = vmatprep.mubr.bf16.mxu0 0
      %1551 = vmatmul.mubr.bf16.gmra.mrb[0].mxu0 %v1516
      %v1552 = vpop.f32.mrb[0].mxu0
      %v1553 = vadd.f32 %v1514, %v1552
      %v1554 = vpop.f32.mrb[0].mxu0
      %v1555 = vpop.f32.mrb[0].mxu0
      %v1556 = vpop.f32.mrb[0].mxu0
      %1557 = vdwg.mxu0
      %v1558 = vadd.f32 %v809, %v817
      %v1559 = vadd.f32 %v810, %v818
      %v1560 = vadd.f32 %v811, %v819
      %v1561 = vadd.f32 %v812, %v820
      %v1562 = vadd.f32 %v813, %v821
      %v1563 = vadd.f32 %v814, %v822
      %v1564 = vadd.f32 %v815, %v823
      %v1565 = vadd.f32 %v816, %v824
      %s1566 = scalar_lea.vmem %s6, 160
      %v1567 = vld [vmem:[%s1566] sm:$0xff]
      %v1568 = vld [vmem:[%s1566 + $0x8] sm:$0xff]
      %v1569 = vld [vmem:[%s1566 + $0x10] sm:$0xff]
      %v1570 = vld [vmem:[%s1566 + $0x18] sm:$0xff]
      %v1571 = vpack.c.bf16 %v1559, %v1558
      %v1572 = vpack.c.bf16 %v1561, %v1560
      %v1573 = vpack.c.bf16 %v1563, %v1562
      %v1574 = vpack.c.bf16 %v1565, %v1564
      %v1575 = vpack.c.bf16 %v1568, %v1567
      %v1576 = vpack.c.bf16 %v1570, %v1569
      %v1577 = vld [vmem:[%s7 + $0x5] sm:$0x1]
      %v1578 = vlaneseq
      %v1579 = vshrl.u32 %v1578, 7
      %v1580 = vsub.s32 0, %v1579
      %v1581 = vrot.slane %v1577, %v1580
      %v1583 = vsel %vm1166, %v1571, 0
      %v1586 = vsel %vm1166, %v1572, 0
      %v1589 = vsel %vm1166, %v1573, 0
      %v1592 = vsel %vm1166, %v1574, 0
      %1594 = vmatprep.subr.bf16.mxu0 0
      %1595 = vmatpush1.bf16.msra.mxu0 %v1575
      %1596 = vmatprep.subr.bf16.mxu0 0
      %1597 = vmatpush1.bf16.msra.mxu0 %v1576
      %1598 = vmatprep.subr.bf16.mxu0 0
      %1599 = vmatpush1.bf16.msra.mxu0 0
      %1600 = vmatprep.subr.bf16.mxu0 0
      %1601 = vmatpush1.bf16.msra.mxu0 0
      %1602 = vmatprep.subr.bf16.mxu0 0
      %1603 = vmatpush1.bf16.msra.mxu0 0
      %1604 = vmatprep.subr.bf16.mxu0 0
      %1605 = vmatpush1.bf16.msra.mxu0 0
      %1606 = vmatprep.subr.bf16.mxu0 0
      %1607 = vmatpush1.bf16.msra.mxu0 0
      %1608 = vmatprep.subr.bf16.mxu0 0
      %1609 = vmatpush1.bf16.msra.mxu0 0
      %1610 = vmatprep.subr.bf16.mxu0 0
      %1611 = vmatpush1.bf16.msra.mxu0 0
      %1612 = vmatprep.subr.bf16.mxu0 0
      %1613 = vmatpush1.bf16.msra.mxu0 0
      %1614 = vmatprep.subr.bf16.mxu0 0
      %1615 = vmatpush1.bf16.msra.mxu0 0
      %1616 = vmatprep.subr.bf16.mxu0 0
      %1617 = vmatpush1.bf16.msra.mxu0 0
      %1618 = vmatprep.subr.bf16.mxu0 0
      %1619 = vmatpush1.bf16.msra.mxu0 0
      %1620 = vmatprep.subr.bf16.mxu0 0
      %1621 = vmatpush1.bf16.msra.mxu0 0
      %1622 = vmatprep.subr.bf16.mxu0 0
      %1623 = vmatpush1.bf16.msra.mxu0 0
      %1624 = vmatprep.subr.bf16.mxu0 0
      %1625 = vmatpush1.bf16.msra.mxu0 0
      %1626 = vmatprep.mubr.bf16.mxu0 0
      %1627 = vmatmul.mubr.bf16.gmra.mrb[0].mxu0 %v1583
      %v1628 = vpop.f32.mrb[0].mxu0
      %v1629 = vadd.f32 %v1581, %v1628
      %v1630 = vpop.f32.mrb[0].mxu0
      %v1631 = vpop.f32.mrb[0].mxu0
      %v1632 = vadd.f32 %v1581, %v1631
      %v1633 = vpop.f32.mrb[0].mxu0
      %1634 = vmatprep.mubr.bf16.mxu0 0
      %1635 = vmatmul.mubr.bf16.gmra.mrb[0].mxu0 %v1586
      %v1636 = vpop.f32.mrb[0].mxu0
      %v1637 = vadd.f32 %v1581, %v1636
      %v1638 = vpop.f32.mrb[0].mxu0
      %v1639 = vpop.f32.mrb[0].mxu0
      %v1640 = vadd.f32 %v1581, %v1639
      %v1641 = vpop.f32.mrb[0].mxu0
      %1642 = vmatprep.mubr.bf16.mxu0 0
      %1643 = vmatmul.mubr.bf16.gmra.mrb[0].mxu0 %v1589
      %v1644 = vpop.f32.mrb[0].mxu0
      %v1645 = vadd.f32 %v1581, %v1644
      %v1646 = vpop.f32.mrb[0].mxu0
      %v1647 = vpop.f32.mrb[0].mxu0
      %v1648 = vadd.f32 %v1581, %v1647
      %v1649 = vpop.f32.mrb[0].mxu0
      %1650 = vmatprep.mubr.bf16.mxu0 0
      %1651 = vmatmul.mubr.bf16.gmra.mrb[0].mxu0 %v1592
      %v1652 = vpop.f32.mrb[0].mxu0
      %v1653 = vadd.f32 %v1581, %v1652
      %v1654 = vpop.f32.mrb[0].mxu0
      %v1655 = vpop.f32.mrb[0].mxu0
      %v1656 = vadd.f32 %v1581, %v1655
      %v1657 = vpop.f32.mrb[0].mxu0
      %1658 = vdwg.mxu0
      %v1659 = vpack.c.bf16 %v810, %v809
      %v1660 = vpack.c.bf16 %v812, %v811
      %v1661 = vpack.c.bf16 %v814, %v813
      %v1662 = vpack.c.bf16 %v816, %v815
      %v1663 = vpack.c.bf16 %v1154, %v1153
      %v1664 = vpack.c.bf16 %v1156, %v1155
      %v1665 = vld [vmem:[%s7 + $0x6] sm:$0x1]
      %v1666 = vlaneseq
      %v1667 = vshrl.u32 %v1666, 7
      %v1668 = vsub.s32 0, %v1667
      %v1669 = vrot.slane %v1665, %v1668
      %v1671 = vsel %vm1166, %v1659, 0
      %v1674 = vsel %vm1166, %v1660, 0
      %v1677 = vsel %vm1166, %v1661, 0
      %v1680 = vsel %vm1166, %v1662, 0
      %1682 = vmatprep.subr.bf16.mxu0 0
      %1683 = vmatpush1.bf16.msra.mxu0 %v1663
      %1684 = vmatprep.subr.bf16.mxu0 0
      %1685 = vmatpush1.bf16.msra.mxu0 %v1664
      %1686 = vmatprep.subr.bf16.mxu0 0
      %1687 = vmatpush1.bf16.msra.mxu0 0
      %1688 = vmatprep.subr.bf16.mxu0 0
      %1689 = vmatpush1.bf16.msra.mxu0 0
      %1690 = vmatprep.subr.bf16.mxu0 0
      %1691 = vmatpush1.bf16.msra.mxu0 0
      %1692 = vmatprep.subr.bf16.mxu0 0
      %1693 = vmatpush1.bf16.msra.mxu0 0
      %1694 = vmatprep.subr.bf16.mxu0 0
      %1695 = vmatpush1.bf16.msra.mxu0 0
      %1696 = vmatprep.subr.bf16.mxu0 0
      %1697 = vmatpush1.bf16.msra.mxu0 0
      %1698 = vmatprep.subr.bf16.mxu0 0
      %1699 = vmatpush1.bf16.msra.mxu0 0
      %1700 = vmatprep.subr.bf16.mxu0 0
      %1701 = vmatpush1.bf16.msra.mxu0 0
      %1702 = vmatprep.subr.bf16.mxu0 0
      %1703 = vmatpush1.bf16.msra.mxu0 0
      %1704 = vmatprep.subr.bf16.mxu0 0
      %1705 = vmatpush1.bf16.msra.mxu0 0
      %1706 = vmatprep.subr.bf16.mxu0 0
      %1707 = vmatpush1.bf16.msra.mxu0 0
      %1708 = vmatprep.subr.bf16.mxu0 0
      %1709 = vmatpush1.bf16.msra.mxu0 0
      %1710 = vmatprep.subr.bf16.mxu0 0
      %1711 = vmatpush1.bf16.msra.mxu0 0
      %1712 = vmatprep.subr.bf16.mxu0 0
      %1713 = vmatpush1.bf16.msra.mxu0 0
      %1714 = vmatprep.mubr.bf16.mxu0 0
      %1715 = vmatmul.mubr.bf16.gmra.mrb[0].mxu0 %v1671
      %v1716 = vpop.f32.mrb[0].mxu0
      %v1717 = vadd.f32 %v1669, %v1716
      %v1718 = vpop.f32.mrb[0].mxu0
      %v1719 = vpop.f32.mrb[0].mxu0
      %v1720 = vadd.f32 %v1669, %v1719
      %v1721 = vpop.f32.mrb[0].mxu0
      %1722 = vmatprep.mubr.bf16.mxu0 0
      %1723 = vmatmul.mubr.bf16.gmra.mrb[0].mxu0 %v1674
      %v1724 = vpop.f32.mrb[0].mxu0
      %v1725 = vadd.f32 %v1669, %v1724
      %v1726 = vpop.f32.mrb[0].mxu0
      %v1727 = vpop.f32.mrb[0].mxu0
      %v1728 = vadd.f32 %v1669, %v1727
      %v1729 = vpop.f32.mrb[0].mxu0
      %1730 = vmatprep.mubr.bf16.mxu0 0
      %1731 = vmatmul.mubr.bf16.gmra.mrb[0].mxu0 %v1677
      %v1732 = vpop.f32.mrb[0].mxu0
      %v1733 = vadd.f32 %v1669, %v1732
      %v1734 = vpop.f32.mrb[0].mxu0
      %v1735 = vpop.f32.mrb[0].mxu0
      %v1736 = vadd.f32 %v1669, %v1735
      %v1737 = vpop.f32.mrb[0].mxu0
      %1738 = vmatprep.mubr.bf16.mxu0 0
      %1739 = vmatmul.mubr.bf16.gmra.mrb[0].mxu0 %v1680
      %v1740 = vpop.f32.mrb[0].mxu0
      %v1741 = vadd.f32 %v1669, %v1740
      %v1742 = vpop.f32.mrb[0].mxu0
      %v1743 = vpop.f32.mrb[0].mxu0
      %v1744 = vadd.f32 %v1669, %v1743
      %v1745 = vpop.f32.mrb[0].mxu0
      %1746 = vdwg.mxu0
      %v1747 = vpack.c.bf16 %v1553, %v1553
      %v1748 = vpack.c.bf16 %v1632, %v1629
      %v1749 = vpack.c.bf16 %v1640, %v1637
      %v1750 = vpack.c.bf16 %v1648, %v1645
      %v1751 = vpack.c.bf16 %v1656, %v1653
      %v1753 = vsel %vm1166, %v1747, 0
      %v1756 = vsel %vm1166, %v1748, 0
      %v1759 = vsel %vm1166, %v1749, 0
      %v1762 = vsel %vm1166, %v1750, 0
      %v1765 = vsel %vm1166, %v1751, 0
      %1767 = vmatprep.subr.bf16.mxu0 0
      %1768 = vmatpush1.bf16.xpose.msra.mxu0 %v1756
      %1769 = vmatprep.subr.bf16.mxu0 0
      %1770 = vmatpush1.bf16.xpose.msra.mxu0 %v1759
      %1771 = vmatprep.subr.bf16.mxu0 0
      %1772 = vmatpush1.bf16.xpose.msra.mxu0 %v1762
      %1773 = vmatprep.subr.bf16.mxu0 0
      %1774 = vmatpush1.bf16.xpose.msra.mxu0 %v1765
      %1775 = vmatprep.subr.bf16.mxu0 0
      %1776 = vmatpush1.bf16.xpose.msra.mxu0 0
      %1777 = vmatprep.subr.bf16.mxu0 0
      %1778 = vmatpush1.bf16.xpose.msra.mxu0 0
      %1779 = vmatprep.subr.bf16.mxu0 0
      %1780 = vmatpush1.bf16.xpose.msra.mxu0 0
      %1781 = vmatprep.subr.bf16.mxu0 0
      %1782 = vmatpush1.bf16.xpose.msra.mxu0 0
      %1783 = vmatprep.subr.bf16.mxu0 0
      %1784 = vmatpush1.bf16.xpose.msra.mxu0 0
      %1785 = vmatprep.subr.bf16.mxu0 0
      %1786 = vmatpush1.bf16.xpose.msra.mxu0 0
      %1787 = vmatprep.subr.bf16.mxu0 0
      %1788 = vmatpush1.bf16.xpose.msra.mxu0 0
      %1789 = vmatprep.subr.bf16.mxu0 0
      %1790 = vmatpush1.bf16.xpose.msra.mxu0 0
      %1791 = vmatprep.subr.bf16.mxu0 0
      %1792 = vmatpush1.bf16.xpose.msra.mxu0 0
      %1793 = vmatprep.subr.bf16.mxu0 0
      %1794 = vmatpush1.bf16.xpose.msra.mxu0 0
      %1795 = vmatprep.subr.bf16.mxu0 0
      %1796 = vmatpush1.bf16.xpose.msra.mxu0 0
      %1797 = vmatprep.subr.bf16.mxu0 0
      %1798 = vmatpush1.bf16.xpose.msra.mxu0 0
      %1799 = vmatprep.mubr.bf16.mxu0 0
      %1800 = vmatmul.mubr.bf16.gmra.mrb[0].mxu0 %v1753
      %v1801 = vpop.f32.mrb[0].mxu0
      %v1802 = vadd.f32 0.0, %v1801
      %v1803 = vpop.f32.mrb[0].mxu0
      %v1804 = vpop.f32.mrb[0].mxu0
      %v1805 = vpop.f32.mrb[0].mxu0
      %1806 = vdwg.mxu0
      %vm1807 = vcmask 522240
      %v1808 = vsel %vm1807, %v1802, -inf
      %1809 = vmax.xlane.f32.xlu0 %v1808
      %v1810 = vpop.xlane.xlu0 %1809
      %v1811 = vsub.f32 %v1802, %v1810
      %v1812 = vmul.f32 %v1811, 1.442695
      %v1813 = vpow.pop %v1812
      %v1814 = vsel %vm1807, %v1813, 0.0
      %1815 = vadd.xlane.f32.xlu0 %v1814
      %v1816 = vpop.xlane.xlu0 %1815
      %v1817 = vrcp.pop %v1816
      %v1818 = vmul.f32 %v1813, %v1817
      %v1819 = vpack.c.bf16 %v1818, %v1818
      %v1820 = vpack.c.bf16 %v1720, %v1717
      %v1821 = vpack.c.bf16 %v1728, %v1725
      %v1822 = vpack.c.bf16 %v1736, %v1733
      %v1823 = vpack.c.bf16 %v1744, %v1741
      %v1825 = vsel %vm726, %v1819, 0
      %1827 = vmatprep.subr.bf16.mxu0 0
      %1828 = vmatpush1.bf16.msra.mxu0 %v1820
      %1829 = vmatprep.subr.bf16.mxu0 0
      %1830 = vmatpush1.bf16.msra.mxu0 %v1821
      %1831 = vmatprep.subr.bf16.mxu0 0
      %1832 = vmatpush1.bf16.msra.mxu0 %v1822
      %1833 = vmatprep.subr.bf16.mxu0 0
      %1834 = vmatpush1.bf16.msra.mxu0 %v1823
      %1835 = vmatprep.subr.bf16.mxu0 0
      %1836 = vmatpush1.bf16.msra.mxu0 0
      %1837 = vmatprep.subr.bf16.mxu0 0
      %1838 = vmatpush1.bf16.msra.mxu0 0
      %1839 = vmatprep.subr.bf16.mxu0 0
      %1840 = vmatpush1.bf16.msra.mxu0 0
      %1841 = vmatprep.subr.bf16.mxu0 0
      %1842 = vmatpush1.bf16.msra.mxu0 0
      %1843 = vmatprep.subr.bf16.mxu0 0
      %1844 = vmatpush1.bf16.msra.mxu0 0
      %1845 = vmatprep.subr.bf16.mxu0 0
      %1846 = vmatpush1.bf16.msra.mxu0 0
      %1847 = vmatprep.subr.bf16.mxu0 0
      %1848 = vmatpush1.bf16.msra.mxu0 0
      %1849 = vmatprep.subr.bf16.mxu0 0
      %1850 = vmatpush1.bf16.msra.mxu0 0
      %1851 = vmatprep.subr.bf16.mxu0 0
      %1852 = vmatpush1.bf16.msra.mxu0 0
      %1853 = vmatprep.subr.bf16.mxu0 0
      %1854 = vmatpush1.bf16.msra.mxu0 0
      %1855 = vmatprep.subr.bf16.mxu0 0
      %1856 = vmatpush1.bf16.msra.mxu0 0
      %1857 = vmatprep.subr.bf16.mxu0 0
      %1858 = vmatpush1.bf16.msra.mxu0 0
      %1859 = vmatprep.mubr.bf16.mxu0 0
      %1860 = vmatmul.mubr.bf16.gmra.mrb[0].mxu0 %v1825
      %v1861 = vpop.f32.mrb[0].mxu0
      %v1862 = vadd.f32 0.0, %v1861
      %v1863 = vpop.f32.mrb[0].mxu0
      %v1864 = vpop.f32.mrb[0].mxu0
      %v1865 = vpop.f32.mrb[0].mxu0
      %1866 = vdwg.mxu0
      %s1867 = scalar_lea.vmem %s6, 224
      %v1868 = vld [vmem:[%s1867] sm:$0xff]
      %v1869 = vld [vmem:[%s1867 + $0x8] sm:$0xff]
      %v1870 = vld [vmem:[%s1867 + $0x10] sm:$0xff]
      %v1871 = vld [vmem:[%s1867 + $0x18] sm:$0xff]
      %v1872 = vpack.c.bf16 %v1862, %v1862
      %v1873 = vpack.c.bf16 %v1869, %v1868
      %v1874 = vpack.c.bf16 %v1871, %v1870
      %v1875 = vld [vmem:[%s7 + $0x7] sm:$0x1]
      %v1876 = vlaneseq
      %v1877 = vshrl.u32 %v1876, 7
      %v1878 = vsub.s32 0, %v1877
      %v1879 = vrot.slane %v1875, %v1878
      %v1881 = vsel %vm1166, %v1872, 0
      %1883 = vmatprep.subr.bf16.mxu0 0
      %1884 = vmatpush1.bf16.msra.mxu0 %v1873
      %1885 = vmatprep.subr.bf16.mxu0 0
      %1886 = vmatpush1.bf16.msra.mxu0 %v1874
      %1887 = vmatprep.subr.bf16.mxu0 0
      %1888 = vmatpush1.bf16.msra.mxu0 0
      %1889 = vmatprep.subr.bf16.mxu0 0
      %1890 = vmatpush1.bf16.msra.mxu0 0
      %1891 = vmatprep.subr.bf16.mxu0 0
      %1892 = vmatpush1.bf16.msra.mxu0 0
      %1893 = vmatprep.subr.bf16.mxu0 0
      %1894 = vmatpush1.bf16.msra.mxu0 0
      %1895 = vmatprep.subr.bf16.mxu0 0
      %1896 = vmatpush1.bf16.msra.mxu0 0
      %1897 = vmatprep.subr.bf16.mxu0 0
      %1898 = vmatpush1.bf16.msra.mxu0 0
      %1899 = vmatprep.subr.bf16.mxu0 0
      %1900 = vmatpush1.bf16.msra.mxu0 0
      %1901 = vmatprep.subr.bf16.mxu0 0
      %1902 = vmatpush1.bf16.msra.mxu0 0
      %1903 = vmatprep.subr.bf16.mxu0 0
      %1904 = vmatpush1.bf16.msra.mxu0 0
      %1905 = vmatprep.subr.bf16.mxu0 0
      %1906 = vmatpush1.bf16.msra.mxu0 0
      %1907 = vmatprep.subr.bf16.mxu0 0
      %1908 = vmatpush1.bf16.msra.mxu0 0
      %1909 = vmatprep.subr.bf16.mxu0 0
      %1910 = vmatpush1.bf16.msra.mxu0 0
      %1911 = vmatprep.subr.bf16.mxu0 0
      %1912 = vmatpush1.bf16.msra.mxu0 0
      %1913 = vmatprep.subr.bf16.mxu0 0
      %1914 = vmatpush1.bf16.msra.mxu0 0
      %1915 = vmatprep.mubr.bf16.mxu0 0
      %1916 = vmatmul.mubr.bf16.gmra.mrb[0].mxu0 %v1881
      %v1917 = vpop.f32.mrb[0].mxu0
      %v1918 = vadd.f32 %v1879, %v1917
      %v1919 = vpop.f32.mrb[0].mxu0
      %v1920 = vpop.f32.mrb[0].mxu0
      %v1921 = vpop.f32.mrb[0].mxu0
      %1922 = vdwg.mxu0
      %v1923 = vadd.f32 %v1505, %v1918
      %v1924 = vsel %vm1479, %v1923, 0.0
      %1925 = vadd.xlane.f32.xlu0 %v1924
      %v1926 = vpop.xlane.xlu0 %1925
      %v1927 = vmul.f32 %v1926, %v1483
      %v1928 = vsub.f32 %v1923, %v1927
      %v1929 = vmul.f32 %v1928, %v1928
      %v1930 = vsel %vm1479, %v1929, 0.0
      %1931 = vadd.xlane.f32.xlu0 %v1930
      %v1932 = vpop.xlane.xlu0 %1931
      %v1933 = vmul.f32 %v1932, %v1483
      %v1934 = vadd.f32 %v1933, 1e-05
      %v1935 = vrsqrt.pop %v1934
      %v1936 = vmul.f32 %v1928, %v1935
      %v1937 = vld [vmem:[%s7 + $0xf] sm:$0x1]
      %v1938 = vlaneseq
      %v1939 = vshrl.u32 %v1938, 7
      %v1940 = vsub.s32 0, %v1939
      %v1941 = vrot.slane %v1937, %v1940
      %v1942 = vmul.f32 %v1936, %v1941
      %v1943 = vld [vmem:[%s7 + $0x10] sm:$0x1]
      %v1944 = vlaneseq
      %v1945 = vshrl.u32 %v1944, 7
      %v1946 = vsub.s32 0, %v1945
      %v1947 = vrot.slane %v1943, %v1946
      %v1948 = vadd.f32 %v1942, %v1947
      %v1949 = vld [vmem:[%s8] sm:$0xff]
      %v1950 = vld [vmem:[%s8 + $0x8] sm:$0xff]
      %v1951 = vld [vmem:[%s8 + $0x10] sm:$0xff]
      %v1952 = vld [vmem:[%s8 + $0x18] sm:$0xff]
      %v1953 = vpack.c.bf16 %v1948, %v1948
      %v1954 = vpack.c.bf16 %v1950, %v1949
      %v1955 = vpack.c.bf16 %v1952, %v1951
      %v1956 = vld [vmem:[%s9] sm:$0x1]
      %v1958 = vlaneseq
      %v1959 = vshrl.u32 %v1958, 7
      %v1960 = vsub.s32 0, %v1959
      %v1961 = vrot.slane %v1956, %v1960
      %v1964 = vsel %vm1166, %v1953, 0
      %1966 = vmatprep.subr.bf16.mxu0 0
      %1967 = vmatpush1.bf16.msra.mxu0 %v1954
      %1968 = vmatprep.subr.bf16.mxu0 0
      %1969 = vmatpush1.bf16.msra.mxu0 %v1955
      %1970 = vmatprep.subr.bf16.mxu0 0
      %1971 = vmatpush1.bf16.msra.mxu0 0
      %1972 = vmatprep.subr.bf16.mxu0 0
      %1973 = vmatpush1.bf16.msra.mxu0 0
      %1974 = vmatprep.subr.bf16.mxu0 0
      %1975 = vmatpush1.bf16.msra.mxu0 0
      %1976 = vmatprep.subr.bf16.mxu0 0
      %1977 = vmatpush1.bf16.msra.mxu0 0
      %1978 = vmatprep.subr.bf16.mxu0 0
      %1979 = vmatpush1.bf16.msra.mxu0 0
      %1980 = vmatprep.subr.bf16.mxu0 0
      %1981 = vmatpush1.bf16.msra.mxu0 0
      %1982 = vmatprep.subr.bf16.mxu0 0
      %1983 = vmatpush1.bf16.msra.mxu0 0
      %1984 = vmatprep.subr.bf16.mxu0 0
      %1985 = vmatpush1.bf16.msra.mxu0 0
      %1986 = vmatprep.subr.bf16.mxu0 0
      %1987 = vmatpush1.bf16.msra.mxu0 0
      %1988 = vmatprep.subr.bf16.mxu0 0
      %1989 = vmatpush1.bf16.msra.mxu0 0
      %1990 = vmatprep.subr.bf16.mxu0 0
      %1991 = vmatpush1.bf16.msra.mxu0 0
      %1992 = vmatprep.subr.bf16.mxu0 0
      %1993 = vmatpush1.bf16.msra.mxu0 0
      %1994 = vmatprep.subr.bf16.mxu0 0
      %1995 = vmatpush1.bf16.msra.mxu0 0
      %1996 = vmatprep.subr.bf16.mxu0 0
      %1997 = vmatpush1.bf16.msra.mxu0 0
      %1998 = vmatprep.mubr.bf16.mxu0 0
      %1999 = vmatmul.mubr.bf16.gmra.mrb[0].mxu0 %v1964
      %v2000 = vpop.f32.mrb[0].mxu0
      %v2001 = vadd.f32 %v1961, %v2000
      %v2002 = vpop.f32.mrb[0].mxu0
      %v2003 = vpop.f32.mrb[0].mxu0
      %v2004 = vpop.f32.mrb[0].mxu0
      %2005 = vdwg.mxu0
      %v2006 = vmax.f32 %v2001, 0.0
      %v2007 = vld [vmem:[%s10] sm:$0xff]
      %v2008 = vld [vmem:[%s10 + $0x8] sm:$0xff]
      %v2009 = vld [vmem:[%s10 + $0x10] sm:$0xff]
      %v2010 = vld [vmem:[%s10 + $0x18] sm:$0xff]
      %v2011 = vld [vmem:[%s10 + $0x20] sm:$0xff]
      %v2012 = vld [vmem:[%s10 + $0x28] sm:$0xff]
      %v2013 = vld [vmem:[%s10 + $0x30] sm:$0xff]
      %v2014 = vld [vmem:[%s10 + $0x38] sm:$0xff]
      %v2015 = vpack.c.bf16 %v2006, %v2006
      %v2016 = vpack.c.bf16 %v2008, %v2007
      %v2017 = vpack.c.bf16 %v2010, %v2009
      %v2018 = vpack.c.bf16 %v2012, %v2011
      %v2019 = vpack.c.bf16 %v2014, %v2013
      %v2021 = vsel %vm726, %v2015, 0
      %2023 = vmatprep.subr.bf16.mxu0 0
      %2024 = vmatpush1.bf16.msra.mxu0 %v2016
      %2025 = vmatprep.subr.bf16.mxu0 0
      %2026 = vmatpush1.bf16.msra.mxu0 %v2017
      %2027 = vmatprep.subr.bf16.mxu0 0
      %2028 = vmatpush1.bf16.msra.mxu0 %v2018
      %2029 = vmatprep.subr.bf16.mxu0 0
      %2030 = vmatpush1.bf16.msra.mxu0 %v2019
      %2031 = vmatprep.subr.bf16.mxu0 0
      %2032 = vmatpush1.bf16.msra.mxu0 0
      %2033 = vmatprep.subr.bf16.mxu0 0
      %2034 = vmatpush1.bf16.msra.mxu0 0
      %2035 = vmatprep.subr.bf16.mxu0 0
      %2036 = vmatpush1.bf16.msra.mxu0 0
      %2037 = vmatprep.subr.bf16.mxu0 0
      %2038 = vmatpush1.bf16.msra.mxu0 0
      %2039 = vmatprep.subr.bf16.mxu0 0
      %2040 = vmatpush1.bf16.msra.mxu0 0
      %2041 = vmatprep.subr.bf16.mxu0 0
      %2042 = vmatpush1.bf16.msra.mxu0 0
      %2043 = vmatprep.subr.bf16.mxu0 0
      %2044 = vmatpush1.bf16.msra.mxu0 0
      %2045 = vmatprep.subr.bf16.mxu0 0
      %2046 = vmatpush1.bf16.msra.mxu0 0
      %2047 = vmatprep.subr.bf16.mxu0 0
      %2048 = vmatpush1.bf16.msra.mxu0 0
      %2049 = vmatprep.subr.bf16.mxu0 0
      %2050 = vmatpush1.bf16.msra.mxu0 0
      %2051 = vmatprep.subr.bf16.mxu0 0
      %2052 = vmatpush1.bf16.msra.mxu0 0
      %2053 = vmatprep.subr.bf16.mxu0 0
      %2054 = vmatpush1.bf16.msra.mxu0 0
      %2055 = vmatprep.mubr.bf16.mxu0 0
      %2056 = vmatmul.mubr.bf16.gmra.mrb[0].mxu0 %v2021
      %v2057 = vpop.f32.mrb[0].mxu0
      %v2058 = vadd.f32 0.0, %v2057
      %v2059 = vpop.f32.mrb[0].mxu0
      %v2060 = vpop.f32.mrb[0].mxu0
      %v2061 = vpop.f32.mrb[0].mxu0
      %2062 = vdwg.mxu0
      %v2063 = vadd.f32 %v1948, %v2058
      %v2064 = vld [vmem:[%s7 + $0x8] sm:$0x1]
      %v2065 = vlaneseq
      %v2066 = vshrl.u32 %v2065, 7
      %v2067 = vsub.s32 0, %v2066
      %v2068 = vrot.slane %v2064, %v2067
      %v2069 = vadd.f32 %v2063, %v2068
      %v2070 = vsel %vm1479, %v2069, 0.0
      %2071 = vadd.xlane.f32.xlu0 %v2070
      %v2072 = vpop.xlane.xlu0 %2071
      %v2073 = vmul.f32 %v2072, %v1483
      %v2074 = vsub.f32 %v2069, %v2073
      %v2075 = vmul.f32 %v2074, %v2074
      %v2076 = vsel %vm1479, %v2075, 0.0
      %2077 = vadd.xlane.f32.xlu0 %v2076
      %v2078 = vpop.xlane.xlu0 %2077
      %v2079 = vmul.f32 %v2078, %v1483
      %v2080 = vadd.f32 %v2079, 1e-05
      %v2081 = vrsqrt.pop %v2080
      %v2082 = vmul.f32 %v2074, %v2081
      %v2083 = vld [vmem:[%s7 + $0x11] sm:$0x1]
      %v2084 = vlaneseq
      %v2085 = vshrl.u32 %v2084, 7
      %v2086 = vsub.s32 0, %v2085
      %v2087 = vrot.slane %v2083, %v2086
      %v2088 = vmul.f32 %v2082, %v2087
      %v2089 = vld [vmem:[%s7 + $0x12] sm:$0x1]
      %v2090 = vlaneseq
      %v2091 = vshrl.u32 %v2090, 7
      %v2092 = vsub.s32 0, %v2091
      %v2093 = vrot.slane %v2089, %v2092
      %v2094 = vadd.f32 %v2088, %v2093
      %s2095 = scalar_lea.vmem %s6, 256
      %v2096 = vld [vmem:[%s2095] sm:$0xff]
      %v2097 = vld [vmem:[%s2095 + $0x8] sm:$0xff]
      %v2098 = vld [vmem:[%s2095 + $0x10] sm:$0xff]
      %v2099 = vld [vmem:[%s2095 + $0x18] sm:$0xff]
      %v2100 = vpack.c.bf16 %v2094, %v2094
      %v2101 = vpack.c.bf16 %v2097, %v2096
      %v2102 = vpack.c.bf16 %v2099, %v2098
      %v2103 = vld [vmem:[%s7 + $0x9] sm:$0x1]
      %v2105 = vshrl.u32 %v2100, 16
      %v2108 = vsel %vm1166, %v2105, 0
      %2110 = vmatprep.subr.bf16.mxu0 0
      %2111 = vmatpush1.bf16.msra.mxu0 %v2101
      %2112 = vmatprep.subr.bf16.mxu0 0
      %2113 = vmatpush1.bf16.msra.mxu0 %v2102
      %2114 = vmatprep.subr.bf16.mxu0 0
      %2115 = vmatpush1.bf16.msra.mxu0 0
      %2116 = vmatprep.subr.bf16.mxu0 0
      %2117 = vmatpush1.bf16.msra.mxu0 0
      %2118 = vmatprep.subr.bf16.mxu0 0
      %2119 = vmatpush1.bf16.msra.mxu0 0
      %2120 = vmatprep.subr.bf16.mxu0 0
      %2121 = vmatpush1.bf16.msra.mxu0 0
      %2122 = vmatprep.subr.bf16.mxu0 0
      %2123 = vmatpush1.bf16.msra.mxu0 0
      %2124 = vmatprep.subr.bf16.mxu0 0
      %2125 = vmatpush1.bf16.msra.mxu0 0
      %2126 = vmatprep.subr.bf16.mxu0 0
      %2127 = vmatpush1.bf16.msra.mxu0 0
      %2128 = vmatprep.subr.bf16.mxu0 0
      %2129 = vmatpush1.bf16.msra.mxu0 0
      %2130 = vmatprep.subr.bf16.mxu0 0
      %2131 = vmatpush1.bf16.msra.mxu0 0
      %2132 = vmatprep.subr.bf16.mxu0 0
      %2133 = vmatpush1.bf16.msra.mxu0 0
      %2134 = vmatprep.subr.bf16.mxu0 0
      %2135 = vmatpush1.bf16.msra.mxu0 0
      %2136 = vmatprep.subr.bf16.mxu0 0
      %2137 = vmatpush1.bf16.msra.mxu0 0
      %2138 = vmatprep.subr.bf16.mxu0 0
      %2139 = vmatpush1.bf16.msra.mxu0 0
      %2140 = vmatprep.subr.bf16.mxu0 0
      %2141 = vmatpush1.bf16.msra.mxu0 0
      %2142 = vmatprep.mubr.bf16.mxu0 0
      %2143 = vmatmul.mubr.bf16.gmra.mrb[0].mxu0 %v2108
      %v2144 = vpop.f32.mrb[0].mxu0
      %v2145 = vadd.f32 %v2103, %v2144
      %v2146 = vpop.f32.mrb[0].mxu0
      %v2147 = vpop.f32.mrb[0].mxu0
      %v2148 = vpop.f32.mrb[0].mxu0
      %2149 = vdwg.mxu0
      %v2150 = vmax.f32 %v2145, 0.0
      %v2151 = vld [vmem:[%s15] sm:$0xff]
      %v2152 = vld [vmem:[%s15 + $0x8] sm:$0xff]
      %v2153 = vld [vmem:[%s15 + $0x10] sm:$0xff]
      %v2154 = vld [vmem:[%s15 + $0x18] sm:$0xff]
      %v2155 = vpack.c.bf16 %v2150, %v2150
      %v2156 = vpack.c.bf16 %v2152, %v2151
      %v2157 = vpack.c.bf16 %v2154, %v2153
      %v2158 = vld [vmem:[%s16] sm:$0x1]
      %v2160 = vsel %vm1166, %v2155, 0
      %2162 = vmatprep.subr.bf16.mxu0 0
      %2163 = vmatpush1.bf16.msra.mxu0 %v2156
      %2164 = vmatprep.subr.bf16.mxu0 0
      %2165 = vmatpush1.bf16.msra.mxu0 %v2157
      %2166 = vmatprep.subr.bf16.mxu0 0
      %2167 = vmatpush1.bf16.msra.mxu0 0
      %2168 = vmatprep.subr.bf16.mxu0 0
      %2169 = vmatpush1.bf16.msra.mxu0 0
      %2170 = vmatprep.subr.bf16.mxu0 0
      %2171 = vmatpush1.bf16.msra.mxu0 0
      %2172 = vmatprep.subr.bf16.mxu0 0
      %2173 = vmatpush1.bf16.msra.mxu0 0
      %2174 = vmatprep.subr.bf16.mxu0 0
      %2175 = vmatpush1.bf16.msra.mxu0 0
      %2176 = vmatprep.subr.bf16.mxu0 0
      %2177 = vmatpush1.bf16.msra.mxu0 0
      %2178 = vmatprep.subr.bf16.mxu0 0
      %2179 = vmatpush1.bf16.msra.mxu0 0
      %2180 = vmatprep.subr.bf16.mxu0 0
      %2181 = vmatpush1.bf16.msra.mxu0 0
      %2182 = vmatprep.subr.bf16.mxu0 0
      %2183 = vmatpush1.bf16.msra.mxu0 0
      %2184 = vmatprep.subr.bf16.mxu0 0
      %2185 = vmatpush1.bf16.msra.mxu0 0
      %2186 = vmatprep.subr.bf16.mxu0 0
      %2187 = vmatpush1.bf16.msra.mxu0 0
      %2188 = vmatprep.subr.bf16.mxu0 0
      %2189 = vmatpush1.bf16.msra.mxu0 0
      %2190 = vmatprep.subr.bf16.mxu0 0
      %2191 = vmatpush1.bf16.msra.mxu0 0
      %2192 = vmatprep.subr.bf16.mxu0 0
      %2193 = vmatpush1.bf16.msra.mxu0 0
      %2194 = vmatprep.mubr.bf16.mxu0 0
      %2195 = vmatmul.mubr.bf16.gmra.mrb[0].mxu0 %v2160
      %v2196 = vpop.f32.mrb[0].mxu0
      %v2197 = vadd.f32 %v2158, %v2196
      %v2198 = vpop.f32.mrb[0].mxu0
      %v2199 = vpop.f32.mrb[0].mxu0
      %v2200 = vpop.f32.mrb[0].mxu0
      %2201 = vdwg.mxu0
      %v2202 = vld [vmem:[%s11] sm:$0xff]
      %v2203 = vld [vmem:[%s11 + $0x8] sm:$0xff]
      %v2204 = vld [vmem:[%s11 + $0x10] sm:$0xff]
      %v2205 = vld [vmem:[%s11 + $0x18] sm:$0xff]
      %v2206 = vpack.c.bf16 %v2203, %v2202
      %v2207 = vpack.c.bf16 %v2205, %v2204
      %v2208 = vld [vmem:[%s12] sm:$0x1]
      %v2210 = vlaneseq
      %v2211 = vshrl.u32 %v2210, 7
      %v2212 = vsub.s32 0, %v2211
      %v2213 = vrot.slane %v2208, %v2212
      %2215 = vmatprep.subr.bf16.mxu0 0
      %2216 = vmatpush1.bf16.msra.mxu0 %v2206
      %2217 = vmatprep.subr.bf16.mxu0 0
      %2218 = vmatpush1.bf16.msra.mxu0 %v2207
      %2219 = vmatprep.subr.bf16.mxu0 0
      %2220 = vmatpush1.bf16.msra.mxu0 0
      %2221 = vmatprep.subr.bf16.mxu0 0
      %2222 = vmatpush1.bf16.msra.mxu0 0
      %2223 = vmatprep.subr.bf16.mxu0 0
      %2224 = vmatpush1.bf16.msra.mxu0 0
      %2225 = vmatprep.subr.bf16.mxu0 0
      %2226 = vmatpush1.bf16.msra.mxu0 0
      %2227 = vmatprep.subr.bf16.mxu0 0
      %2228 = vmatpush1.bf16.msra.mxu0 0
      %2229 = vmatprep.subr.bf16.mxu0 0
      %2230 = vmatpush1.bf16.msra.mxu0 0
      %2231 = vmatprep.subr.bf16.mxu0 0
      %2232 = vmatpush1.bf16.msra.mxu0 0
      %2233 = vmatprep.subr.bf16.mxu0 0
      %2234 = vmatpush1.bf16.msra.mxu0 0
      %2235 = vmatprep.subr.bf16.mxu0 0
      %2236 = vmatpush1.bf16.msra.mxu0 0
      %2237 = vmatprep.subr.bf16.mxu0 0
      %2238 = vmatpush1.bf16.msra.mxu0 0
      %2239 = vmatprep.subr.bf16.mxu0 0
      %2240 = vmatpush1.bf16.msra.mxu0 0
      %2241 = vmatprep.subr.bf16.mxu0 0
      %2242 = vmatpush1.bf16.msra.mxu0 0
      %2243 = vmatprep.subr.bf16.mxu0 0
      %2244 = vmatpush1.bf16.msra.mxu0 0
      %2245 = vmatprep.subr.bf16.mxu0 0
      %2246 = vmatpush1.bf16.msra.mxu0 0
      %2247 = vmatprep.mubr.bf16.mxu0 0
      %2248 = vmatmul.mubr.bf16.gmra.mrb[0].mxu0 %v1671
      %v2249 = vpop.f32.mrb[0].mxu0
      %v2250 = vadd.f32 %v2213, %v2249
      %v2251 = vpop.f32.mrb[0].mxu0
      %v2252 = vpop.f32.mrb[0].mxu0
      %v2253 = vadd.f32 %v2213, %v2252
      %v2254 = vpop.f32.mrb[0].mxu0
      %2255 = vmatprep.mubr.bf16.mxu0 0
      %2256 = vmatmul.mubr.bf16.gmra.mrb[0].mxu0 %v1674
      %v2257 = vpop.f32.mrb[0].mxu0
      %v2258 = vadd.f32 %v2213, %v2257
      %v2259 = vpop.f32.mrb[0].mxu0
      %v2260 = vpop.f32.mrb[0].mxu0
      %v2261 = vadd.f32 %v2213, %v2260
      %v2262 = vpop.f32.mrb[0].mxu0
      %2263 = vmatprep.mubr.bf16.mxu0 0
      %2264 = vmatmul.mubr.bf16.gmra.mrb[0].mxu0 %v1677
      %v2265 = vpop.f32.mrb[0].mxu0
      %v2266 = vadd.f32 %v2213, %v2265
      %v2267 = vpop.f32.mrb[0].mxu0
      %v2268 = vpop.f32.mrb[0].mxu0
      %v2269 = vadd.f32 %v2213, %v2268
      %v2270 = vpop.f32.mrb[0].mxu0
      %2271 = vmatprep.mubr.bf16.mxu0 0
      %2272 = vmatmul.mubr.bf16.gmra.mrb[0].mxu0 %v1680
      %v2273 = vpop.f32.mrb[0].mxu0
      %v2274 = vadd.f32 %v2213, %v2273
      %v2275 = vpop.f32.mrb[0].mxu0
      %v2276 = vpop.f32.mrb[0].mxu0
      %v2277 = vadd.f32 %v2213, %v2276
      %v2278 = vpop.f32.mrb[0].mxu0
      %2279 = vdwg.mxu0
      %v2280 = vmul.f32 %v2250, %v2250
      %v2281 = vmul.f32 %v2253, %v2253
      %v2282 = vmul.f32 %v2258, %v2258
      %v2283 = vmul.f32 %v2261, %v2261
      %v2284 = vmul.f32 %v2266, %v2266
      %v2285 = vmul.f32 %v2269, %v2269
      %v2286 = vmul.f32 %v2274, %v2274
      %v2287 = vmul.f32 %v2277, %v2277
      %v2288 = vmul.f32 %v2250, %v2280
      %v2289 = vmul.f32 %v2253, %v2281
      %v2290 = vmul.f32 %v2258, %v2282
      %v2291 = vmul.f32 %v2261, %v2283
      %v2292 = vmul.f32 %v2266, %v2284
      %v2293 = vmul.f32 %v2269, %v2285
      %v2294 = vmul.f32 %v2274, %v2286
      %v2295 = vmul.f32 %v2277, %v2287
      %v2296 = vmul.f32 %v2288, 0.044715
      %v2297 = vmul.f32 %v2289, 0.044715
      %v2298 = vmul.f32 %v2290, 0.044715
      %v2299 = vmul.f32 %v2291, 0.044715
      %v2300 = vmul.f32 %v2292, 0.044715
      %v2301 = vmul.f32 %v2293, 0.044715
      %v2302 = vmul.f32 %v2294, 0.044715
      %v2303 = vmul.f32 %v2295, 0.044715
      %v2304 = vadd.f32 %v2250, %v2296
      %v2305 = vadd.f32 %v2253, %v2297
      %v2306 = vadd.f32 %v2258, %v2298
      %v2307 = vadd.f32 %v2261, %v2299
      %v2308 = vadd.f32 %v2266, %v2300
      %v2309 = vadd.f32 %v2269, %v2301
      %v2310 = vadd.f32 %v2274, %v2302
      %v2311 = vadd.f32 %v2277, %v2303
      %v2312 = vmul.f32 %v2304, 0.7978846
      %v2313 = vmul.f32 %v2305, 0.7978846
      %v2314 = vmul.f32 %v2306, 0.7978846
      %v2315 = vmul.f32 %v2307, 0.7978846
      %v2316 = vmul.f32 %v2308, 0.7978846
      %v2317 = vmul.f32 %v2309, 0.7978846
      %v2318 = vmul.f32 %v2310, 0.7978846
      %v2319 = vmul.f32 %v2311, 0.7978846
      %v2320 = vtanh.pop %v2312
      %v2321 = vtanh.pop %v2313
      %v2322 = vtanh.pop %v2314
      %v2323 = vtanh.pop %v2315
      %v2324 = vtanh.pop %v2316
      %v2325 = vtanh.pop %v2317
      %v2326 = vtanh.pop %v2318
      %v2327 = vtanh.pop %v2319
      %v2328 = vadd.f32 %v2320, 1.0
      %v2329 = vadd.f32 %v2321, 1.0
      %v2330 = vadd.f32 %v2322, 1.0
      %v2331 = vadd.f32 %v2323, 1.0
      %v2332 = vadd.f32 %v2324, 1.0
      %v2333 = vadd.f32 %v2325, 1.0
      %v2334 = vadd.f32 %v2326, 1.0
      %v2335 = vadd.f32 %v2327, 1.0
      %v2336 = vmul.f32 %v2328, 0.5
      %v2337 = vmul.f32 %v2329, 0.5
      %v2338 = vmul.f32 %v2330, 0.5
      %v2339 = vmul.f32 %v2331, 0.5
      %v2340 = vmul.f32 %v2332, 0.5
      %v2341 = vmul.f32 %v2333, 0.5
      %v2342 = vmul.f32 %v2334, 0.5
      %v2343 = vmul.f32 %v2335, 0.5
      %v2344 = vmul.f32 %v2250, %v2336
      %v2345 = vmul.f32 %v2253, %v2337
      %v2346 = vmul.f32 %v2258, %v2338
      %v2347 = vmul.f32 %v2261, %v2339
      %v2348 = vmul.f32 %v2266, %v2340
      %v2349 = vmul.f32 %v2269, %v2341
      %v2350 = vmul.f32 %v2274, %v2342
      %v2351 = vmul.f32 %v2277, %v2343
      %v2352 = vld [vmem:[%s13] sm:$0xf]
      %v2353 = vpack.c.bf16 %v2197, %v2197
      %v2354 = vpack.c.bf16 %v2352, %v2352
      %v2356 = vsel %vm834, %v2353, 0
      %v2359 = vsel %vm841, %v2354, 0
      %2361 = vmatprep.subr.bf16.mxu0 0
      %2362 = vmatpush1.bf16.msra.mxu0 %v2359
      %2363 = vmatprep.subr.bf16.mxu0 0
      %2364 = vmatpush1.bf16.msra.mxu0 0
      %2365 = vmatprep.subr.bf16.mxu0 0
      %2366 = vmatpush1.bf16.msra.mxu0 0
      %2367 = vmatprep.subr.bf16.mxu0 0
      %2368 = vmatpush1.bf16.msra.mxu0 0
      %2369 = vmatprep.subr.bf16.mxu0 0
      %2370 = vmatpush1.bf16.msra.mxu0 0
      %2371 = vmatprep.subr.bf16.mxu0 0
      %2372 = vmatpush1.bf16.msra.mxu0 0
      %2373 = vmatprep.subr.bf16.mxu0 0
      %2374 = vmatpush1.bf16.msra.mxu0 0
      %2375 = vmatprep.subr.bf16.mxu0 0
      %2376 = vmatpush1.bf16.msra.mxu0 0
      %2377 = vmatprep.subr.bf16.mxu0 0
      %2378 = vmatpush1.bf16.msra.mxu0 0
      %2379 = vmatprep.subr.bf16.mxu0 0
      %2380 = vmatpush1.bf16.msra.mxu0 0
      %2381 = vmatprep.subr.bf16.mxu0 0
      %2382 = vmatpush1.bf16.msra.mxu0 0
      %2383 = vmatprep.subr.bf16.mxu0 0
      %2384 = vmatpush1.bf16.msra.mxu0 0
      %2385 = vmatprep.subr.bf16.mxu0 0
      %2386 = vmatpush1.bf16.msra.mxu0 0
      %2387 = vmatprep.subr.bf16.mxu0 0
      %2388 = vmatpush1.bf16.msra.mxu0 0
      %2389 = vmatprep.subr.bf16.mxu0 0
      %2390 = vmatpush1.bf16.msra.mxu0 0
      %2391 = vmatprep.subr.bf16.mxu0 0
      %2392 = vmatpush1.bf16.msra.mxu0 0
      %2393 = vmatprep.mubr.bf16.mxu0 0
      %2394 = vmatmul.mubr.bf16.gmra.mrb[0].mxu0 %v2356
      %v2395 = vpop.f32.mrb[0].mxu0
      %v2396 = vadd.f32 0.0, %v2395
      %v2397 = vpop.f32.mrb[0].mxu0
      %v2398 = vpop.f32.mrb[0].mxu0
      %v2399 = vpop.f32.mrb[0].mxu0
      %2400 = vdwg.mxu0
      %v2401 = vlaneseq
      %v2402 = vshrl.u32 %v2401, 7
      %v2403 = vsub.s32 0, %v2402
      %v2404 = vrot.slane %v2396, %v2403
      %v2405 = vmul.f32 %v2344, %v2404
      %v2406 = vmul.f32 %v2345, %v2404
      %v2407 = vmul.f32 %v2346, %v2404
      %v2408 = vmul.f32 %v2347, %v2404
      %v2409 = vmul.f32 %v2348, %v2404
      %v2410 = vmul.f32 %v2349, %v2404
      %v2411 = vmul.f32 %v2350, %v2404
      %v2412 = vmul.f32 %v2351, %v2404
      %v2413 = vld [vmem:[%s14] sm:$0xff]
      %v2414 = vld [vmem:[%s14 + $0x8] sm:$0xff]
      %v2415 = vld [vmem:[%s14 + $0x10] sm:$0xff]
      %v2416 = vld [vmem:[%s14 + $0x18] sm:$0xff]
      %v2417 = vld [vmem:[%s14 + $0x20] sm:$0xff]
      %v2418 = vld [vmem:[%s14 + $0x28] sm:$0xff]
      %v2419 = vld [vmem:[%s14 + $0x30] sm:$0xff]
      %v2420 = vld [vmem:[%s14 + $0x38] sm:$0xff]
      %v2421 = vpack.c.bf16 %v2406, %v2405
      %v2422 = vpack.c.bf16 %v2408, %v2407
      %v2423 = vpack.c.bf16 %v2410, %v2409
      %v2424 = vpack.c.bf16 %v2412, %v2411
      %v2425 = vpack.c.bf16 %v2414, %v2413
      %v2426 = vpack.c.bf16 %v2416, %v2415
      %v2427 = vpack.c.bf16 %v2418, %v2417
      %v2428 = vpack.c.bf16 %v2420, %v2419
      %v2430 = vsel %vm726, %v2421, 0
      %v2433 = vsel %vm726, %v2422, 0
      %v2436 = vsel %vm726, %v2423, 0
      %v2439 = vsel %vm726, %v2424, 0
      %2441 = vmatprep.subr.bf16.mxu0 0
      %2442 = vmatpush1.bf16.msra.mxu0 %v2425
      %2443 = vmatprep.subr.bf16.mxu0 0
      %2444 = vmatpush1.bf16.msra.mxu0 %v2426
      %2445 = vmatprep.subr.bf16.mxu0 0
      %2446 = vmatpush1.bf16.msra.mxu0 %v2427
      %2447 = vmatprep.subr.bf16.mxu0 0
      %2448 = vmatpush1.bf16.msra.mxu0 %v2428
      %2449 = vmatprep.subr.bf16.mxu0 0
      %2450 = vmatpush1.bf16.msra.mxu0 0
      %2451 = vmatprep.subr.bf16.mxu0 0
      %2452 = vmatpush1.bf16.msra.mxu0 0
      %2453 = vmatprep.subr.bf16.mxu0 0
      %2454 = vmatpush1.bf16.msra.mxu0 0
      %2455 = vmatprep.subr.bf16.mxu0 0
      %2456 = vmatpush1.bf16.msra.mxu0 0
      %2457 = vmatprep.subr.bf16.mxu0 0
      %2458 = vmatpush1.bf16.msra.mxu0 0
      %2459 = vmatprep.subr.bf16.mxu0 0
      %2460 = vmatpush1.bf16.msra.mxu0 0
      %2461 = vmatprep.subr.bf16.mxu0 0
      %2462 = vmatpush1.bf16.msra.mxu0 0
      %2463 = vmatprep.subr.bf16.mxu0 0
      %2464 = vmatpush1.bf16.msra.mxu0 0
      %2465 = vmatprep.subr.bf16.mxu0 0
      %2466 = vmatpush1.bf16.msra.mxu0 0
      %2467 = vmatprep.subr.bf16.mxu0 0
      %2468 = vmatpush1.bf16.msra.mxu0 0
      %2469 = vmatprep.subr.bf16.mxu0 0
      %2470 = vmatpush1.bf16.msra.mxu0 0
      %2471 = vmatprep.subr.bf16.mxu0 0
      %2472 = vmatpush1.bf16.msra.mxu0 0
      %2473 = vmatprep.mubr.bf16.mxu0 0
      %2474 = vmatmul.mubr.bf16.gmra.mrb[0].mxu0 %v2430
      %v2475 = vpop.f32.mrb[0].mxu0
      %v2476 = vadd.f32 0.0, %v2475
      %v2477 = vpop.f32.mrb[0].mxu0
      %v2478 = vpop.f32.mrb[0].mxu0
      %v2479 = vadd.f32 0.0, %v2478
      %v2480 = vpop.f32.mrb[0].mxu0
      %2481 = vmatprep.mubr.bf16.mxu0 0
      %2482 = vmatmul.mubr.bf16.gmra.mrb[0].mxu0 %v2433
      %v2483 = vpop.f32.mrb[0].mxu0
      %v2484 = vadd.f32 0.0, %v2483
      %v2485 = vpop.f32.mrb[0].mxu0
      %v2486 = vpop.f32.mrb[0].mxu0
      %v2487 = vadd.f32 0.0, %v2486
      %v2488 = vpop.f32.mrb[0].mxu0
      %2489 = vmatprep.mubr.bf16.mxu0 0
      %2490 = vmatmul.mubr.bf16.gmra.mrb[0].mxu0 %v2436
      %v2491 = vpop.f32.mrb[0].mxu0
      %v2492 = vadd.f32 0.0, %v2491
      %v2493 = vpop.f32.mrb[0].mxu0
      %v2494 = vpop.f32.mrb[0].mxu0
      %v2495 = vadd.f32 0.0, %v2494
      %v2496 = vpop.f32.mrb[0].mxu0
      %2497 = vmatprep.mubr.bf16.mxu0 0
      %2498 = vmatmul.mubr.bf16.gmra.mrb[0].mxu0 %v2439
      %v2499 = vpop.f32.mrb[0].mxu0
      %v2500 = vadd.f32 0.0, %v2499
      %v2501 = vpop.f32.mrb[0].mxu0
      %v2502 = vpop.f32.mrb[0].mxu0
      %v2503 = vadd.f32 0.0, %v2502
      %v2504 = vpop.f32.mrb[0].mxu0
      %2505 = vdwg.mxu0
      %vm2506 = vcmask 130048
      %2507 = vst.msk [vmem:[%s692] sm:$0xff] %vm2506, %v2476
      %2508 = vst.msk [vmem:[%s692 + $0x8] sm:$0xff] %vm2506, %v2479
      %2509 = vst.msk [vmem:[%s692 + $0x10] sm:$0xff] %vm2506, %v2484
      %2510 = vst.msk [vmem:[%s692 + $0x18] sm:$0xff] %vm2506, %v2487
      %2511 = vst.msk [vmem:[%s692 + $0x20] sm:$0xff] %vm2506, %v2492
      %2512 = vst.msk [vmem:[%s692 + $0x28] sm:$0xff] %vm2506, %v2495
      %2513 = vst.msk [vmem:[%s692 + $0x30] sm:$0xff] %vm2506, %v2500
      %2514 = vst.msk [vmem:[%s692 + $0x38] sm:$0xff] %vm2506, %v2503
      %s2515 = scalar_lea.vmem %s6, 288
      %v2516 = vld [vmem:[%s2515] sm:$0xff]
      %v2517 = vld [vmem:[%s2515 + $0x8] sm:$0xff]
      %v2518 = vld [vmem:[%s2515 + $0x10] sm:$0xff]
      %v2519 = vld [vmem:[%s2515 + $0x18] sm:$0xff]
      %v2520 = vpack.c.bf16 %v2517, %v2516
      %v2521 = vpack.c.bf16 %v2519, %v2518
      %v2522 = vld [vmem:[%s7 + $0xa] sm:$0x1]
      %v2523 = vsel %vm1166, %v2100, 0
      %2525 = vmatprep.subr.bf16.mxu0 0
      %2526 = vmatpush1.bf16.msra.mxu0 %v2520
      %2527 = vmatprep.subr.bf16.mxu0 0
      %2528 = vmatpush1.bf16.msra.mxu0 %v2521
      %2529 = vmatprep.subr.bf16.mxu0 0
      %2530 = vmatpush1.bf16.msra.mxu0 0
      %2531 = vmatprep.subr.bf16.mxu0 0
      %2532 = vmatpush1.bf16.msra.mxu0 0
      %2533 = vmatprep.subr.bf16.mxu0 0
      %2534 = vmatpush1.bf16.msra.mxu0 0
      %2535 = vmatprep.subr.bf16.mxu0 0
      %2536 = vmatpush1.bf16.msra.mxu0 0
      %2537 = vmatprep.subr.bf16.mxu0 0
      %2538 = vmatpush1.bf16.msra.mxu0 0
      %2539 = vmatprep.subr.bf16.mxu0 0
      %2540 = vmatpush1.bf16.msra.mxu0 0
      %2541 = vmatprep.subr.bf16.mxu0 0
      %2542 = vmatpush1.bf16.msra.mxu0 0
      %2543 = vmatprep.subr.bf16.mxu0 0
      %2544 = vmatpush1.bf16.msra.mxu0 0
      %2545 = vmatprep.subr.bf16.mxu0 0
      %2546 = vmatpush1.bf16.msra.mxu0 0
      %2547 = vmatprep.subr.bf16.mxu0 0
      %2548 = vmatpush1.bf16.msra.mxu0 0
      %2549 = vmatprep.subr.bf16.mxu0 0
      %2550 = vmatpush1.bf16.msra.mxu0 0
      %2551 = vmatprep.subr.bf16.mxu0 0
      %2552 = vmatpush1.bf16.msra.mxu0 0
      %2553 = vmatprep.subr.bf16.mxu0 0
      %2554 = vmatpush1.bf16.msra.mxu0 0
      %2555 = vmatprep.subr.bf16.mxu0 0
      %2556 = vmatpush1.bf16.msra.mxu0 0
      %2557 = vmatprep.mubr.bf16.mxu0 0
      %2558 = vmatmul.mubr.bf16.gmra.mrb[0].mxu0 %v2523
      %v2559 = vpop.f32.mrb[0].mxu0
      %v2560 = vadd.f32 %v2522, %v2559
      %v2561 = vpop.f32.mrb[0].mxu0
      %v2562 = vpop.f32.mrb[0].mxu0
      %v2563 = vpop.f32.mrb[0].mxu0
      %2564 = vdwg.mxu0
      %v2565 = vmax.f32 %v2560, 0.0
      %v2566 = vld [vmem:[%s17] sm:$0xff]
      %v2567 = vld [vmem:[%s17 + $0x8] sm:$0xff]
      %v2568 = vld [vmem:[%s17 + $0x10] sm:$0xff]
      %v2569 = vld [vmem:[%s17 + $0x18] sm:$0xff]
      %v2570 = vpack.c.bf16 %v2565, %v2565
      %v2571 = vpack.c.bf16 %v2567, %v2566
      %v2572 = vpack.c.bf16 %v2569, %v2568
      %v2573 = vld [vmem:[%s18] sm:$0x1]
      %v2575 = vsel %vm1166, %v2570, 0
      %2577 = vmatprep.subr.bf16.mxu0 0
      %2578 = vmatpush1.bf16.msra.mxu0 %v2571
      %2579 = vmatprep.subr.bf16.mxu0 0
      %2580 = vmatpush1.bf16.msra.mxu0 %v2572
      %2581 = vmatprep.subr.bf16.mxu0 0
      %2582 = vmatpush1.bf16.msra.mxu0 0
      %2583 = vmatprep.subr.bf16.mxu0 0
      %2584 = vmatpush1.bf16.msra.mxu0 0
      %2585 = vmatprep.subr.bf16.mxu0 0
      %2586 = vmatpush1.bf16.msra.mxu0 0
      %2587 = vmatprep.subr.bf16.mxu0 0
      %2588 = vmatpush1.bf16.msra.mxu0 0
      %2589 = vmatprep.subr.bf16.mxu0 0
      %2590 = vmatpush1.bf16.msra.mxu0 0
      %2591 = vmatprep.subr.bf16.mxu0 0
      %2592 = vmatpush1.bf16.msra.mxu0 0
      %2593 = vmatprep.subr.bf16.mxu0 0
      %2594 = vmatpush1.bf16.msra.mxu0 0
      %2595 = vmatprep.subr.bf16.mxu0 0
      %2596 = vmatpush1.bf16.msra.mxu0 0
      %2597 = vmatprep.subr.bf16.mxu0 0
      %2598 = vmatpush1.bf16.msra.mxu0 0
      %2599 = vmatprep.subr.bf16.mxu0 0
      %2600 = vmatpush1.bf16.msra.mxu0 0
      %2601 = vmatprep.subr.bf16.mxu0 0
      %2602 = vmatpush1.bf16.msra.mxu0 0
      %2603 = vmatprep.subr.bf16.mxu0 0
      %2604 = vmatpush1.bf16.msra.mxu0 0
      %2605 = vmatprep.subr.bf16.mxu0 0
      %2606 = vmatpush1.bf16.msra.mxu0 0
      %2607 = vmatprep.subr.bf16.mxu0 0
      %2608 = vmatpush1.bf16.msra.mxu0 0
      %2609 = vmatprep.mubr.bf16.mxu0 0
      %2610 = vmatmul.mubr.bf16.gmra.mrb[0].mxu0 %v2575
      %v2611 = vpop.f32.mrb[0].mxu0
      %v2612 = vadd.f32 %v2573, %v2611
      %v2613 = vpop.f32.mrb[0].mxu0
      %v2614 = vpop.f32.mrb[0].mxu0
      %v2615 = vpop.f32.mrb[0].mxu0
      %2616 = vdwg.mxu0
      %vm2617 = vcmask 24576
      %2618 = vst.msk [vmem:[%s695] sm:$0x1] %vm2617, %v2612
      %p2619 = scmp.lt.s32.totalorder %s32, 1
      %s2620 = scalar_select %p2619, %s32, 1
      %s2621 = smul.addr %s2620, 8
      %s2622 = smul.addr %s2621, 8
      %s2623 = scalar_lea.vmem %s19, %s2622
      %p2624 = scmp.lt.s32.totalorder %s32, 1
      %s2625 = scalar_select %p2624, %s32, 1
      %s2626 = scalar_lea.vmem %s20, %s2625
      // Predicated region
      $region97: #{task_aware_sam_forward.3} parent=95 // pred_check
        %p2627 = pneg %p469
      $region98: #{task_aware_sam_forward.3} parent=95 // pred_check_branch
        %2629 = sbr.rel (%p2627) target = $region100
      $region99: #{task_aware_sam_forward.3} parent=95 // pred_region
        _
      $region100: #{task_aware_sam_forward.3} parent=95 // pred_fallthru
        _
      // Predicated region
      $region101: #{task_aware_sam_forward.3} parent=95 // pred_check
        %p2630 = pneg %p495
      $region102: #{task_aware_sam_forward.3} parent=95 // pred_check_branch
        %2632 = sbr.rel (%p2630) target = $region104
      $region103: #{task_aware_sam_forward.3} parent=95 // pred_region
        _
      $region104: #{task_aware_sam_forward.3} parent=95 // pred_fallthru
        _
    $region96: #{task_aware_sam_forward.3} parent=5 // pred_fallthru
      _
    %p2633 = scmp.le.s32.totalorder 2, %s27
    // Predicated region
    $region105: #{task_aware_sam_forward.3} parent=5 // pred_check
      %p2634 = pneg %p2633
    $region106: #{task_aware_sam_forward.3} parent=5 // pred_check_branch
      %2636 = sbr.rel (%p2634) target = $region108
    $region107: #{task_aware_sam_forward.3} parent=5 // pred_region
      %s2637 = ssub.s32 %s27, 2
      // Predicated region
      $region109: #{task_aware_sam_forward.3} parent=107 // pred_check
        %p2638 = pneg %p475
      $region110: #{task_aware_sam_forward.3} parent=107 // pred_check_branch
        %2640 = sbr.rel (%p2638) target = $region112
      $region111: #{task_aware_sam_forward.3} parent=107 // pred_region
        %p2641 = scmp.lt.s32.totalorder %s33, 1
        %s2642 = scalar_select %p2641, %s33, 1
        %s2643 = smul.addr %s2642, 8
        %s2644 = smul.addr %s2643, 8
        %s2645 = scalar_lea.vmem %s19, %s2644
      $region112: #{task_aware_sam_forward.3} parent=107 // pred_fallthru
        _
      // Predicated region
      $region113: #{task_aware_sam_forward.3} parent=107 // pred_check
        %p2646 = pneg %p501
      $region114: #{task_aware_sam_forward.3} parent=107 // pred_check_branch
        %2648 = sbr.rel (%p2646) target = $region116
      $region115: #{task_aware_sam_forward.3} parent=107 // pred_region
        %p2649 = scmp.lt.s32.totalorder %s33, 1
        %s2650 = scalar_select %p2649, %s33, 1
        %s2651 = scalar_lea.vmem %s20, %s2650
      $region116: #{task_aware_sam_forward.3} parent=107 // pred_fallthru
        _
    $region108: #{task_aware_sam_forward.3} parent=5 // pred_fallthru
      _
  $region6: #{task_aware_sam_forward.3} parent=0 // loop_footer
    %s31 = sadd.s32 1, %s27
  $region7: #{task_aware_sam_forward.3} parent=0 // loop_footer_branch
    %26 = sbr.rel target = $region3
  $region8: #{task_aware_sam_forward.3} parent=0 // loop_exit
    _

</llo_original>
